<compile_context>
chip_gen: v7x
topology: tpu7x:2x2x1
jax: 0.10.0
libtpu: 0.0.40
codegen_flags: <defaults>
</compile_context>

<pallas_src>
import jax
import jax.numpy as jnp
from jax.experimental import pallas as pl
from jax.experimental.pallas import tpu as pltpu

H = 32          # hidden_size
V = 64          # output_size (vocab)
L = 8           # max_length
OUT_SLAB = 128  # packed per-step output: [logp(64) | h(32) | attn_w(8) | pad(24)]
K_STEPS = 8     # decode steps per grid iteration (one (8,128) output block)


def attn_decoder_kernel(tok_ref,        # SMEM (T_pad,) int32   (scalar prefetch)
                        emb_ref,        # (V, H)     resident embedding table
                        hidden0_ref,    # (1, H)     initial hidden
                        enc_comb_ref,   # (L, H)     encoder_outputs @ combine.W[:,H:].T (pre-folded)
                        w_emb_ref,      # (H, H+L)   [combine.W[:,:H].T | attn.W[:,:H].T]
                        b_emb_ref,      # (1, H+L)   [combine.b | attn.b]
                        w_hid_ref,      # (H, 3H+L)  [gru.W_hh.T | attn.W[:,H:].T]
                        b_hid_ref,      # (1, 3H+L)  [gru.b_hh | 0]
                        gru_wih_ref,    # (H, 3H)    gru.W_ih.T
                        gru_bih_ref,    # (1, 3H)
                        out_w_ref,      # (H, V)     out.W.T
                        out_b_ref,      # (1, V)
                        out_ref,        # OUT (K_STEPS, 128) packed slabs for this chunk
                        h_scratch):     # VMEM (1, H) hidden state, persistent across grid
    chunk = pl.program_id(0)
    base = chunk * K_STEPS

    @pl.when(chunk == 0)
    def _():
        h_scratch[...] = hidden0_ref[...]

    # Hoisted resident operands (read once per grid iteration).
    emb_w = w_emb_ref[...]
    emb_b = b_emb_ref[...]
    hid_w = w_hid_ref[...]
    hid_b = b_hid_ref[...]
    enc_comb = enc_comb_ref[...]
    gru_wih = gru_wih_ref[...]
    gru_bih = gru_bih_ref[...]
    out_w = out_w_ref[...]
    out_b = out_b_ref[...]
    pad = jnp.zeros((1, OUT_SLAB - V - H - L), dtype=jnp.float32)

    def step(i, h):
        tok = tok_ref[base + i]
        embedded = emb_ref[pl.ds(tok, 1), :]                 # (1, H) in-VMEM gather
        # TODO(synk): dropout omitted (eval-mode identity); training-mode parity
        # would need pltpu.prng_seed / prng_random_bits masking of `embedded`.

        # Fused same-LHS projections (wide slices at lane offset 0).
        emb_proj = jnp.dot(embedded, emb_w,
                           preferred_element_type=jnp.float32) + emb_b      # (1, H+L)
        hid_proj = jnp.dot(h, hid_w,
                           preferred_element_type=jnp.float32) + hid_b      # (1, 3H+L)

        # attn(cat(embedded, hidden)) -> softmax over L
        attn_logits = emb_proj[:, H:H + L] + hid_proj[:, 3 * H:3 * H + L]   # (1, L)
        m = jnp.max(attn_logits, axis=1, keepdims=True)
        e = jnp.exp(attn_logits - m)
        s = jnp.sum(e, axis=1, keepdims=True)
        r0 = pl.reciprocal(s, approx=True)        # EUP seed (free slot)
        rcp = r0 * (2.0 - s * r0)                 # one Newton step -> ~f32 accuracy
        attn_w = e * rcp                                                    # (1, L)

        # relu(attn_combine(cat(embedded, attn_applied)))
        # attn_applied @ comb_hi folded: attn_w @ (enc @ comb_hi) = attn_w @ enc_comb
        comb = emb_proj[:, 0:H] + jnp.dot(attn_w, enc_comb,
                                          preferred_element_type=jnp.float32)
        x = jnp.maximum(comb, 0.0)                                          # (1, H)

        # single-step GRU cell (PyTorch gate order r, z, n)
        gi = jnp.dot(x, gru_wih,
                     preferred_element_type=jnp.float32) + gru_bih          # (1, 3H)
        gh = hid_proj[:, 0:3 * H]                                           # (1, 3H)
        rz = jax.nn.sigmoid(gi[:, 0:2 * H] + gh[:, 0:2 * H])   # fused r/z  (1, 2H)
        r = rz[:, 0:H]
        z = rz[:, H:2 * H]
        n = jnp.tanh(gi[:, 2 * H:3 * H] + r * gh[:, 2 * H:3 * H])
        h_new = (1.0 - z) * n + z * h

        # log_softmax(out(h_new), dim=1)
        logits = jnp.dot(h_new, out_w,
                         preferred_element_type=jnp.float32) + out_b        # (1, V)
        lm = jnp.max(logits, axis=1, keepdims=True)
        lse = jnp.log(jnp.sum(jnp.exp(logits - lm), axis=1, keepdims=True))
        logp = logits - lm - lse

        # Pack one lane-dense 128-wide slab: [logp | h_new | attn_w | zero-pad]
        slab = jnp.concatenate([logp, h_new, attn_w, pad], axis=1)          # (1, 128)
        out_ref[pl.ds(i, 1), :] = slab
        return h_new

    h_final = jax.lax.fori_loop(0, K_STEPS, step, h_scratch[...], unroll=True)
    h_scratch[...] = h_final


def _resident(shape):
    """Full-array block, constant index_map -> DMA'd once, stays in VMEM."""
    nd = len(shape)
    return pl.BlockSpec(shape, lambda i, tok, nd=nd: (0,) * nd)


@jax.jit
def attn_decoder_decode(tokens, hidden, encoder_outputs, params):
    """Run T decode steps of AttnDecoderRNN in one fused kernel.

    tokens: (T,) int32 token ids (teacher-forced sequence)
    hidden: (1,1,H) initial hidden
    encoder_outputs: (L,H)
    Returns (log_probs (T,V), final hidden (1,1,H), attn_weights (T,L)).
    """
    T = tokens.shape[0]
    num_chunks = pl.cdiv(T, K_STEPS)
    T_pad = num_chunks * K_STEPS
    tokens_pad = jnp.pad(tokens, (0, T_pad - T))          # pad with valid token 0

    hidden2d = hidden.reshape(1, H)

    # Fused-weight construction (JAX glue, not in-kernel compute).
    # Wide slices at lane offset 0; tiny L=8 attn slices at the tail.
    w_emb = jnp.concatenate([params["comb_w"][:H], params["attn_w"][:H]], axis=1)   # (H, H+L)
    b_emb = jnp.concatenate([params["comb_b"], params["attn_b"]], axis=1)           # (1, H+L)
    w_hid = jnp.concatenate([params["gru_whh"], params["attn_w"][H:]], axis=1)      # (H, 3H+L)
    b_hid = jnp.concatenate([params["gru_bhh"], jnp.zeros((1, L), jnp.float32)], axis=1)
    # Pre-fold encoder_outputs @ combine_hi: removes one serial MXU round per step.
    enc_comb = jnp.dot(encoder_outputs, params["comb_w"][H:],
                       precision=jax.lax.Precision.HIGHEST)                          # (L, H)

    tensor_inputs = (params["emb_w"], hidden2d, enc_comb,
                     w_emb, b_emb, w_hid, b_hid,
                     params["gru_wih"], params["gru_bih"],
                     params["out_w"], params["out_b"])

    in_specs = [
        _resident((V, H)),                 # embedding table (8 KB, resident)
        _resident((1, H)),                 # initial hidden
        _resident((L, H)),                 # enc_comb
        _resident((H, H + L)),             # w_emb
        _resident((1, H + L)),             # b_emb
        _resident((H, 3 * H + L)),         # w_hid
        _resident((1, 3 * H + L)),         # b_hid
        _resident((H, 3 * H)),             # gru_wih
        _resident((1, 3 * H)),             # gru_bih
        _resident((H, V)),                 # out_w
        _resident((1, V)),                 # out_b
    ]
    out_specs = pl.BlockSpec((K_STEPS, OUT_SLAB), lambda i, tok: (i, 0))
    out_shape = jax.ShapeDtypeStruct((T_pad, OUT_SLAB), jnp.float32)

    slab = pl.pallas_call(
        attn_decoder_kernel,
        out_shape=out_shape,
        grid_spec=pltpu.PrefetchScalarGridSpec(
            num_scalar_prefetch=1,
            grid=(num_chunks,),             # K_STEPS decode steps per grid iteration
            in_specs=in_specs,
            out_specs=out_specs,
            scratch_shapes=[pltpu.VMEM((1, H), jnp.float32)],   # resident hidden state
        ),
        compiler_params=pltpu.CompilerParams(
            dimension_semantics=("arbitrary",)),   # carries hidden across chunks
    )(tokens_pad, *tensor_inputs)

    logp = slab[:T, 0:V]                       # (T, V)
    hiddens = slab[:T, V:V + H]                # (T, H)  per-step hidden
    attn_ws = slab[:T, V + H:V + H + L]        # (T, L)
    return logp, hiddens[T - 1].reshape(1, 1, H), attn_ws


def _reference(tokens, hidden, enc, p):
    """Pure-JAX reference: the PyTorch forward applied sequentially T times."""
    with jax.default_matmul_precision("highest"):
        h = hidden.reshape(1, H)
        logps, aws = [], []
        for t in range(tokens.shape[0]):
            embedded = p["emb_w"][tokens[t]][None, :]                # (1,H)
            cat = jnp.concatenate([embedded, h], axis=1)             # (1,2H)
            aw = jax.nn.softmax(cat @ p["attn_w"] + p["attn_b"], axis=1)
            applied = aw @ enc
            x = jnp.concatenate([embedded, applied], axis=1) @ p["comb_w"] + p["comb_b"]
            x = jnp.maximum(x, 0.0)
            gi = x @ p["gru_wih"] + p["gru_bih"]
            gh = h @ p["gru_whh"] + p["gru_bhh"]
            r = jax.nn.sigmoid(gi[:, :H] + gh[:, :H])
            z = jax.nn.sigmoid(gi[:, H:2 * H] + gh[:, H:2 * H])
            n = jnp.tanh(gi[:, 2 * H:] + r * gh[:, 2 * H:])
            h = (1 - z) * n + z * h
            logps.append(jax.nn.log_softmax(h @ p["out_w"] + p["out_b"], axis=1))
            aws.append(aw)
        return jnp.concatenate(logps, 0), h.reshape(1, 1, H), jnp.concatenate(aws, 0)


def make_params(key):
    keys = jax.random.split(key, 13)
    s = 0.1
    f = jnp.float32
    return {
        "emb_w":   (s * jax.random.normal(keys[0],  (V, H))).astype(f),
        "attn_w":  (s * jax.random.normal(keys[1],  (2 * H, L))).astype(f),
        "attn_b":  (s * jax.random.normal(keys[2],  (1, L))).astype(f),
        "comb_w":  (s * jax.random.normal(keys[3],  (2 * H, H))).astype(f),
        "comb_b":  (s * jax.random.normal(keys[4],  (1, H))).astype(f),
        "gru_wih": (s * jax.random.normal(keys[5],  (H, 3 * H))).astype(f),
        "gru_whh": (s * jax.random.normal(keys[6],  (H, 3 * H))).astype(f),
        "gru_bih": (s * jax.random.normal(keys[7],  (1, 3 * H))).astype(f),
        "gru_bhh": (s * jax.random.normal(keys[8],  (1, 3 * H))).astype(f),
        "out_w":   (s * jax.random.normal(keys[9],  (H, V))).astype(f),
        "out_b":   (s * jax.random.normal(keys[10], (1, V))).astype(f),
    }


if __name__ == "__main__":
    key = jax.random.PRNGKey(0)
    kp, kh, ke, kt = jax.random.split(key, 4)
    params = make_params(kp)

    T = 13                                                           # exercises padding path
    tokens = jax.random.randint(kt, (T,), 0, V, dtype=jnp.int32)
    hidden = (0.1 * jax.random.normal(kh, (1, 1, H))).astype(jnp.float32)
    encoder_outputs = (0.1 * jax.random.normal(ke, (L, H))).astype(jnp.float32)

    logp, h_new, attn_w = attn_decoder_decode(tokens, hidden, encoder_outputs, params)
    jax.block_until_ready((logp, h_new, attn_w))

    r_logp, r_h, r_aw = _reference(tokens, hidden, encoder_outputs, params)
    # tolerance accounts for MXU f32 accumulation order, the enc@comb_hi
    # re-association, and the EUP reciprocal seed (refined with one Newton
    # step) vs the highest-precision JAX reference.
    assert jnp.allclose(logp, r_logp, atol=1e-4), "log_softmax mismatch"
    assert jnp.allclose(h_new, r_h, atol=1e-4), "hidden mismatch"
    assert jnp.allclose(attn_w, r_aw, atol=1e-4), "attn_weights mismatch"

    print("KERNEL_OK")
</pallas_src>

<mosaic_0001>
module attributes {stable_mosaic.version = 11 : i64} {
  func.func @attn_decoder_kernel(%arg0: i32, %arg1: memref<16xi32, #tpu.memory_space<smem>>, %arg2: memref<64x32xf32, #tpu.memory_space<vmem>>, %arg3: memref<1x32xf32, #tpu.memory_space<vmem>>, %arg4: memref<8x32xf32, #tpu.memory_space<vmem>>, %arg5: memref<32x40xf32, #tpu.memory_space<vmem>>, %arg6: memref<1x40xf32, #tpu.memory_space<vmem>>, %arg7: memref<32x104xf32, #tpu.memory_space<vmem>>, %arg8: memref<1x104xf32, #tpu.memory_space<vmem>>, %arg9: memref<32x96xf32, #tpu.memory_space<vmem>>, %arg10: memref<1x96xf32, #tpu.memory_space<vmem>>, %arg11: memref<32x64xf32, #tpu.memory_space<vmem>>, %arg12: memref<1x64xf32, #tpu.memory_space<vmem>>, %arg13: memref<8x128xf32, #tpu.memory_space<vmem>>, %arg14: memref<1x32xf32, #tpu.memory_space<vmem>>) attributes {dimension_semantics = [#tpu.dimension_semantics<arbitrary>], iteration_bounds = array<i64: 2>, scalar_prefetch = 1 : i64, scratch_operands = 1 : i64, tpu.core_type = #tpu.core_type<tc>, window_params = [{pipeline_mode = #tpu.pipeline_mode<synchronous>, transform_indices = @transform_0, window_bounds = array<i64: 64, 32>}, {pipeline_mode = #tpu.pipeline_mode<synchronous>, transform_indices = @transform_1, window_bounds = array<i64: 1, 32>}, {pipeline_mode = #tpu.pipeline_mode<synchronous>, transform_indices = @transform_2, window_bounds = array<i64: 8, 32>}, {pipeline_mode = #tpu.pipeline_mode<synchronous>, transform_indices = @transform_3, window_bounds = array<i64: 32, 40>}, {pipeline_mode = #tpu.pipeline_mode<synchronous>, transform_indices = @transform_4, window_bounds = array<i64: 1, 40>}, {pipeline_mode = #tpu.pipeline_mode<synchronous>, transform_indices = @transform_5, window_bounds = array<i64: 32, 104>}, {pipeline_mode = #tpu.pipeline_mode<synchronous>, transform_indices = @transform_6, window_bounds = array<i64: 1, 104>}, {pipeline_mode = #tpu.pipeline_mode<synchronous>, transform_indices = @transform_7, window_bounds = array<i64: 32, 96>}, {pipeline_mode = #tpu.pipeline_mode<synchronous>, transform_indices = @transform_8, window_bounds = array<i64: 1, 96>}, {pipeline_mode = #tpu.pipeline_mode<synchronous>, transform_indices = @transform_9, window_bounds = array<i64: 32, 64>}, {pipeline_mode = #tpu.pipeline_mode<synchronous>, transform_indices = @transform_10, window_bounds = array<i64: 1, 64>}, {transform_indices = @transform_11, window_bounds = array<i64: 8, 128>}]} {
    %c8_i32 = arith.constant 8 : i32
    %0 = arith.muli %arg0, %c8_i32 : i32
    %c0_i32 = arith.constant 0 : i32
    %1 = arith.cmpi eq, %arg0, %c0_i32 : i32
    %2 = arith.extui %1 : i1 to i32
    %c0_i32_0 = arith.constant 0 : i32
    %3 = arith.cmpi ne, %2, %c0_i32_0 : i32
    scf.if %3 {
      %c0_144 = arith.constant 0 : index
      %c0_145 = arith.constant 0 : index
      %584 = vector.load %arg3[%c0_144, %c0_145] : memref<1x32xf32, #tpu.memory_space<vmem>>, vector<1x32xf32>
      %c0_146 = arith.constant 0 : index
      %c0_147 = arith.constant 0 : index
      %585 = vector.load %arg14[%c0_146, %c0_147] : memref<1x32xf32, #tpu.memory_space<vmem>>, vector<1x32xf32>
      tpu.vector_store %arg14[%c0_146, %c0_147], %584 {strides = array<i32>} : memref<1x32xf32, #tpu.memory_space<vmem>>, vector<1x32xf32>,
    } else {
    }
    %c0 = arith.constant 0 : index
    %c0_1 = arith.constant 0 : index
    %4 = vector.load %arg5[%c0, %c0_1] : memref<32x40xf32, #tpu.memory_space<vmem>>, vector<32x40xf32>
    %c0_2 = arith.constant 0 : index
    %c0_3 = arith.constant 0 : index
    %5 = vector.load %arg6[%c0_2, %c0_3] : memref<1x40xf32, #tpu.memory_space<vmem>>, vector<1x40xf32>
    %c0_4 = arith.constant 0 : index
    %c0_5 = arith.constant 0 : index
    %6 = vector.load %arg7[%c0_4, %c0_5] : memref<32x104xf32, #tpu.memory_space<vmem>>, vector<32x104xf32>
    %c0_6 = arith.constant 0 : index
    %c0_7 = arith.constant 0 : index
    %7 = vector.load %arg8[%c0_6, %c0_7] : memref<1x104xf32, #tpu.memory_space<vmem>>, vector<1x104xf32>
    %c0_8 = arith.constant 0 : index
    %c0_9 = arith.constant 0 : index
    %8 = vector.load %arg4[%c0_8, %c0_9] : memref<8x32xf32, #tpu.memory_space<vmem>>, vector<8x32xf32>
    %c0_10 = arith.constant 0 : index
    %c0_11 = arith.constant 0 : index
    %9 = vector.load %arg9[%c0_10, %c0_11] : memref<32x96xf32, #tpu.memory_space<vmem>>, vector<32x96xf32>
    %c0_12 = arith.constant 0 : index
    %c0_13 = arith.constant 0 : index
    %10 = vector.load %arg10[%c0_12, %c0_13] : memref<1x96xf32, #tpu.memory_space<vmem>>, vector<1x96xf32>
    %c0_14 = arith.constant 0 : index
    %c0_15 = arith.constant 0 : index
    %11 = vector.load %arg11[%c0_14, %c0_15] : memref<32x64xf32, #tpu.memory_space<vmem>>, vector<32x64xf32>
    %c0_16 = arith.constant 0 : index
    %c0_17 = arith.constant 0 : index
    %12 = vector.load %arg12[%c0_16, %c0_17] : memref<1x64xf32, #tpu.memory_space<vmem>>, vector<1x64xf32>
    %cst = arith.constant 0.000000e+00 : f32
    %13 = vector.broadcast %cst : f32 to vector<1x24xf32>
    %c0_18 = arith.constant 0 : index
    %c0_19 = arith.constant 0 : index
    %14 = vector.load %arg14[%c0_18, %c0_19] : memref<1x32xf32, #tpu.memory_space<vmem>>, vector<1x32xf32>
    %c0_i32_20 = arith.constant 0 : i32
    %15 = arith.addi %0, %c0_i32_20 : i32
    %16 = arith.index_cast %15 : i32 to index
    %17 = memref.load %arg1[%16] : memref<16xi32, #tpu.memory_space<smem>>
    %18 = arith.index_cast %17 : i32 to index
    %c0_21 = arith.constant 0 : index
    %19 = vector.load %arg2[%18, %c0_21] : memref<64x32xf32, #tpu.memory_space<vmem>>, vector<1x32xf32>
    %cst_22 = arith.constant dense<0.000000e+00> : vector<1x40xf32>
    %20 = tpu.matmul %19, %4, %cst_22 {dimension_numbers = #tpu.dot_dimension_numbers<[1], [0], [0], [1], [0, 0, 1, 1], [], []>} : vector<1x32xf32>, vector<32x40xf32>, vector<1x40xf32> -> vector<1x40xf32>
    %21 = arith.addf %20, %5 : vector<1x40xf32>
    %cst_23 = arith.constant dense<0.000000e+00> : vector<1x104xf32>
    %22 = tpu.matmul %14, %6, %cst_23 {dimension_numbers = #tpu.dot_dimension_numbers<[1], [0], [0], [1], [0, 0, 1, 1], [], []>} : vector<1x32xf32>, vector<32x104xf32>, vector<1x104xf32> -> vector<1x104xf32>
    %23 = arith.addf %22, %7 : vector<1x104xf32>
    %24 = vector.extract_strided_slice %21 {offsets = [0, 32], sizes = [1, 8], strides = [1, 1]} : vector<1x40xf32> to vector<1x8xf32>
    %25 = vector.extract_strided_slice %23 {offsets = [0, 96], sizes = [1, 8], strides = [1, 1]} : vector<1x104xf32> to vector<1x8xf32>
    %26 = arith.addf %24, %25 : vector<1x8xf32>
    %cst_24 = arith.constant dense<0xFF800000> : vector<1xf32>
    %27 = vector.multi_reduction <maximumf>, %26, %cst_24 [1] : vector<1x8xf32> to vector<1xf32>
    %28 = vector.shape_cast %27 : vector<1xf32> to vector<1x1xf32>
    %29 = vector.broadcast %28 : vector<1x1xf32> to vector<1x8xf32>
    %30 = arith.subf %26, %29 : vector<1x8xf32>
    %31 = math.exp %30 : vector<1x8xf32>
    %cst_25 = arith.constant dense<0.000000e+00> : vector<1xf32>
    %32 = vector.multi_reduction <add>, %31, %cst_25 [1] : vector<1x8xf32> to vector<1xf32>
    %33 = vector.shape_cast %32 : vector<1xf32> to vector<1x1xf32>
    %34 = tpu.reciprocal %33 {approx = true} : vector<1x1xf32> -> vector<1x1xf32>
    %35 = arith.mulf %33, %34 : vector<1x1xf32>
    %cst_26 = arith.constant 2.000000e+00 : f32
    %36 = vector.broadcast %cst_26 : f32 to vector<1x1xf32>
    %37 = arith.subf %36, %35 : vector<1x1xf32>
    %38 = arith.mulf %34, %37 : vector<1x1xf32>
    %39 = vector.broadcast %38 : vector<1x1xf32> to vector<1x8xf32>
    %40 = arith.mulf %31, %39 : vector<1x8xf32>
    %41 = vector.extract_strided_slice %21 {offsets = [0, 0], sizes = [1, 32], strides = [1, 1]} : vector<1x40xf32> to vector<1x32xf32>
    %cst_27 = arith.constant dense<0.000000e+00> : vector<1x32xf32>
    %42 = tpu.matmul %40, %8, %cst_27 {dimension_numbers = #tpu.dot_dimension_numbers<[1], [0], [0], [1], [0, 0, 1, 1], [], []>} : vector<1x8xf32>, vector<8x32xf32>, vector<1x32xf32> -> vector<1x32xf32>
    %43 = arith.addf %41, %42 : vector<1x32xf32>
    %cst_28 = arith.constant 0.000000e+00 : f32
    %44 = vector.broadcast %cst_28 : f32 to vector<1x32xf32>
    %45 = arith.maximumf %43, %44 : vector<1x32xf32>
    %cst_29 = arith.constant dense<0.000000e+00> : vector<1x96xf32>
    %46 = tpu.matmul %45, %9, %cst_29 {dimension_numbers = #tpu.dot_dimension_numbers<[1], [0], [0], [1], [0, 0, 1, 1], [], []>} : vector<1x32xf32>, vector<32x96xf32>, vector<1x96xf32> -> vector<1x96xf32>
    %47 = arith.addf %46, %10 : vector<1x96xf32>
    %48 = vector.extract_strided_slice %23 {offsets = [0, 0], sizes = [1, 96], strides = [1, 1]} : vector<1x104xf32> to vector<1x96xf32>
    %49 = vector.extract_strided_slice %47 {offsets = [0, 0], sizes = [1, 64], strides = [1, 1]} : vector<1x96xf32> to vector<1x64xf32>
    %50 = vector.extract_strided_slice %48 {offsets = [0, 0], sizes = [1, 64], strides = [1, 1]} : vector<1x96xf32> to vector<1x64xf32>
    %51 = arith.addf %49, %50 : vector<1x64xf32>
    %52 = arith.negf %51 : vector<1x64xf32>
    %53 = math.exp %52 : vector<1x64xf32>
    %cst_30 = arith.constant 1.000000e+00 : f32
    %54 = vector.broadcast %cst_30 : f32 to vector<1x64xf32>
    %55 = arith.addf %54, %53 : vector<1x64xf32>
    %56 = arith.divf %54, %55 : vector<1x64xf32>
    %57 = vector.extract_strided_slice %56 {offsets = [0, 0], sizes = [1, 32], strides = [1, 1]} : vector<1x64xf32> to vector<1x32xf32>
    %58 = vector.extract_strided_slice %56 {offsets = [0, 32], sizes = [1, 32], strides = [1, 1]} : vector<1x64xf32> to vector<1x32xf32>
    %59 = vector.extract_strided_slice %47 {offsets = [0, 64], sizes = [1, 32], strides = [1, 1]} : vector<1x96xf32> to vector<1x32xf32>
    %60 = vector.extract_strided_slice %48 {offsets = [0, 64], sizes = [1, 32], strides = [1, 1]} : vector<1x96xf32> to vector<1x32xf32>
    %61 = arith.mulf %57, %60 : vector<1x32xf32>
    %62 = arith.addf %59, %61 : vector<1x32xf32>
    %63 = math.tanh %62 : vector<1x32xf32>
    %cst_31 = arith.constant 1.000000e+00 : f32
    %64 = vector.broadcast %cst_31 : f32 to vector<1x32xf32>
    %65 = arith.subf %64, %58 : vector<1x32xf32>
    %66 = arith.mulf %65, %63 : vector<1x32xf32>
    %67 = arith.mulf %58, %14 : vector<1x32xf32>
    %68 = arith.addf %66, %67 : vector<1x32xf32>
    %cst_32 = arith.constant dense<0.000000e+00> : vector<1x64xf32>
    %69 = tpu.matmul %68, %11, %cst_32 {dimension_numbers = #tpu.dot_dimension_numbers<[1], [0], [0], [1], [0, 0, 1, 1], [], []>} : vector<1x32xf32>, vector<32x64xf32>, vector<1x64xf32> -> vector<1x64xf32>
    %70 = arith.addf %69, %12 : vector<1x64xf32>
    %cst_33 = arith.constant dense<0xFF800000> : vector<1xf32>
    %71 = vector.multi_reduction <maximumf>, %70, %cst_33 [1] : vector<1x64xf32> to vector<1xf32>
    %72 = vector.shape_cast %71 : vector<1xf32> to vector<1x1xf32>
    %73 = vector.broadcast %72 : vector<1x1xf32> to vector<1x64xf32>
    %74 = arith.subf %70, %73 : vector<1x64xf32>
    %75 = math.exp %74 : vector<1x64xf32>
    %cst_34 = arith.constant dense<0.000000e+00> : vector<1xf32>
    %76 = vector.multi_reduction <add>, %75, %cst_34 [1] : vector<1x64xf32> to vector<1xf32>
    %77 = vector.shape_cast %76 : vector<1xf32> to vector<1x1xf32>
    %78 = math.log %77 : vector<1x1xf32>
    %79 = vector.broadcast %72 : vector<1x1xf32> to vector<1x64xf32>
    %80 = arith.subf %70, %79 : vector<1x64xf32>
    %81 = vector.broadcast %78 : vector<1x1xf32> to vector<1x64xf32>
    %82 = arith.subf %80, %81 : vector<1x64xf32>
    %83 = tpu.concatenate %82, %68, %40, %13 in 1 : vector<1x64xf32>, vector<1x32xf32>, vector<1x8xf32>, vector<1x24xf32> -> vector<1x128xf32>
    %84 = arith.index_cast %c0_i32_20 : i32 to index
    %c0_35 = arith.constant 0 : index
    %85 = vector.load %arg13[%84, %c0_35] : memref<8x128xf32, #tpu.memory_space<vmem>>, vector<1x128xf32>
    tpu.vector_store %arg13[%84, %c0_35], %83 {strides = array<i32>} : memref<8x128xf32, #tpu.memory_space<vmem>>, vector<1x128xf32>,
    %c1_i32 = arith.constant 1 : i32
    %86 = arith.addi %0, %c1_i32 : i32
    %87 = arith.index_cast %86 : i32 to index
    %88 = memref.load %arg1[%87] : memref<16xi32, #tpu.memory_space<smem>>
    %89 = arith.index_cast %88 : i32 to index
    %c0_36 = arith.constant 0 : index
    %90 = vector.load %arg2[%89, %c0_36] : memref<64x32xf32, #tpu.memory_space<vmem>>, vector<1x32xf32>
    %cst_37 = arith.constant dense<0.000000e+00> : vector<1x40xf32>
    %91 = tpu.matmul %90, %4, %cst_37 {dimension_numbers = #tpu.dot_dimension_numbers<[1], [0], [0], [1], [0, 0, 1, 1], [], []>} : vector<1x32xf32>, vector<32x40xf32>, vector<1x40xf32> -> vector<1x40xf32>
    %92 = arith.addf %91, %5 : vector<1x40xf32>
    %cst_38 = arith.constant dense<0.000000e+00> : vector<1x104xf32>
    %93 = tpu.matmul %68, %6, %cst_38 {dimension_numbers = #tpu.dot_dimension_numbers<[1], [0], [0], [1], [0, 0, 1, 1], [], []>} : vector<1x32xf32>, vector<32x104xf32>, vector<1x104xf32> -> vector<1x104xf32>
    %94 = arith.addf %93, %7 : vector<1x104xf32>
    %95 = vector.extract_strided_slice %92 {offsets = [0, 32], sizes = [1, 8], strides = [1, 1]} : vector<1x40xf32> to vector<1x8xf32>
    %96 = vector.extract_strided_slice %94 {offsets = [0, 96], sizes = [1, 8], strides = [1, 1]} : vector<1x104xf32> to vector<1x8xf32>
    %97 = arith.addf %95, %96 : vector<1x8xf32>
    %cst_39 = arith.constant dense<0xFF800000> : vector<1xf32>
    %98 = vector.multi_reduction <maximumf>, %97, %cst_39 [1] : vector<1x8xf32> to vector<1xf32>
    %99 = vector.shape_cast %98 : vector<1xf32> to vector<1x1xf32>
    %100 = vector.broadcast %99 : vector<1x1xf32> to vector<1x8xf32>
    %101 = arith.subf %97, %100 : vector<1x8xf32>
    %102 = math.exp %101 : vector<1x8xf32>
    %cst_40 = arith.constant dense<0.000000e+00> : vector<1xf32>
    %103 = vector.multi_reduction <add>, %102, %cst_40 [1] : vector<1x8xf32> to vector<1xf32>
    %104 = vector.shape_cast %103 : vector<1xf32> to vector<1x1xf32>
    %105 = tpu.reciprocal %104 {approx = true} : vector<1x1xf32> -> vector<1x1xf32>
    %106 = arith.mulf %104, %105 : vector<1x1xf32>
    %cst_41 = arith.constant 2.000000e+00 : f32
    %107 = vector.broadcast %cst_41 : f32 to vector<1x1xf32>
    %108 = arith.subf %107, %106 : vector<1x1xf32>
    %109 = arith.mulf %105, %108 : vector<1x1xf32>
    %110 = vector.broadcast %109 : vector<1x1xf32> to vector<1x8xf32>
    %111 = arith.mulf %102, %110 : vector<1x8xf32>
    %112 = vector.extract_strided_slice %92 {offsets = [0, 0], sizes = [1, 32], strides = [1, 1]} : vector<1x40xf32> to vector<1x32xf32>
    %cst_42 = arith.constant dense<0.000000e+00> : vector<1x32xf32>
    %113 = tpu.matmul %111, %8, %cst_42 {dimension_numbers = #tpu.dot_dimension_numbers<[1], [0], [0], [1], [0, 0, 1, 1], [], []>} : vector<1x8xf32>, vector<8x32xf32>, vector<1x32xf32> -> vector<1x32xf32>
    %114 = arith.addf %112, %113 : vector<1x32xf32>
    %cst_43 = arith.constant 0.000000e+00 : f32
    %115 = vector.broadcast %cst_43 : f32 to vector<1x32xf32>
    %116 = arith.maximumf %114, %115 : vector<1x32xf32>
    %cst_44 = arith.constant dense<0.000000e+00> : vector<1x96xf32>
    %117 = tpu.matmul %116, %9, %cst_44 {dimension_numbers = #tpu.dot_dimension_numbers<[1], [0], [0], [1], [0, 0, 1, 1], [], []>} : vector<1x32xf32>, vector<32x96xf32>, vector<1x96xf32> -> vector<1x96xf32>
    %118 = arith.addf %117, %10 : vector<1x96xf32>
    %119 = vector.extract_strided_slice %94 {offsets = [0, 0], sizes = [1, 96], strides = [1, 1]} : vector<1x104xf32> to vector<1x96xf32>
    %120 = vector.extract_strided_slice %118 {offsets = [0, 0], sizes = [1, 64], strides = [1, 1]} : vector<1x96xf32> to vector<1x64xf32>
    %121 = vector.extract_strided_slice %119 {offsets = [0, 0], sizes = [1, 64], strides = [1, 1]} : vector<1x96xf32> to vector<1x64xf32>
    %122 = arith.addf %120, %121 : vector<1x64xf32>
    %123 = arith.negf %122 : vector<1x64xf32>
    %124 = math.exp %123 : vector<1x64xf32>
    %cst_45 = arith.constant 1.000000e+00 : f32
    %125 = vector.broadcast %cst_45 : f32 to vector<1x64xf32>
    %126 = arith.addf %125, %124 : vector<1x64xf32>
    %127 = arith.divf %125, %126 : vector<1x64xf32>
    %128 = vector.extract_strided_slice %127 {offsets = [0, 0], sizes = [1, 32], strides = [1, 1]} : vector<1x64xf32> to vector<1x32xf32>
    %129 = vector.extract_strided_slice %127 {offsets = [0, 32], sizes = [1, 32], strides = [1, 1]} : vector<1x64xf32> to vector<1x32xf32>
    %130 = vector.extract_strided_slice %118 {offsets = [0, 64], sizes = [1, 32], strides = [1, 1]} : vector<1x96xf32> to vector<1x32xf32>
    %131 = vector.extract_strided_slice %119 {offsets = [0, 64], sizes = [1, 32], strides = [1, 1]} : vector<1x96xf32> to vector<1x32xf32>
    %132 = arith.mulf %128, %131 : vector<1x32xf32>
    %133 = arith.addf %130, %132 : vector<1x32xf32>
    %134 = math.tanh %133 : vector<1x32xf32>
    %cst_46 = arith.constant 1.000000e+00 : f32
    %135 = vector.broadcast %cst_46 : f32 to vector<1x32xf32>
    %136 = arith.subf %135, %129 : vector<1x32xf32>
    %137 = arith.mulf %136, %134 : vector<1x32xf32>
    %138 = arith.mulf %129, %68 : vector<1x32xf32>
    %139 = arith.addf %137, %138 : vector<1x32xf32>
    %cst_47 = arith.constant dense<0.000000e+00> : vector<1x64xf32>
    %140 = tpu.matmul %139, %11, %cst_47 {dimension_numbers = #tpu.dot_dimension_numbers<[1], [0], [0], [1], [0, 0, 1, 1], [], []>} : vector<1x32xf32>, vector<32x64xf32>, vector<1x64xf32> -> vector<1x64xf32>
    %141 = arith.addf %140, %12 : vector<1x64xf32>
    %cst_48 = arith.constant dense<0xFF800000> : vector<1xf32>
    %142 = vector.multi_reduction <maximumf>, %141, %cst_48 [1] : vector<1x64xf32> to vector<1xf32>
    %143 = vector.shape_cast %142 : vector<1xf32> to vector<1x1xf32>
    %144 = vector.broadcast %143 : vector<1x1xf32> to vector<1x64xf32>
    %145 = arith.subf %141, %144 : vector<1x64xf32>
    %146 = math.exp %145 : vector<1x64xf32>
    %cst_49 = arith.constant dense<0.000000e+00> : vector<1xf32>
    %147 = vector.multi_reduction <add>, %146, %cst_49 [1] : vector<1x64xf32> to vector<1xf32>
    %148 = vector.shape_cast %147 : vector<1xf32> to vector<1x1xf32>
    %149 = math.log %148 : vector<1x1xf32>
    %150 = vector.broadcast %143 : vector<1x1xf32> to vector<1x64xf32>
    %151 = arith.subf %141, %150 : vector<1x64xf32>
    %152 = vector.broadcast %149 : vector<1x1xf32> to vector<1x64xf32>
    %153 = arith.subf %151, %152 : vector<1x64xf32>
    %154 = tpu.concatenate %153, %139, %111, %13 in 1 : vector<1x64xf32>, vector<1x32xf32>, vector<1x8xf32>, vector<1x24xf32> -> vector<1x128xf32>
    %155 = arith.index_cast %c1_i32 : i32 to index
    %c0_50 = arith.constant 0 : index
    %156 = vector.load %arg13[%155, %c0_50] : memref<8x128xf32, #tpu.memory_space<vmem>>, vector<1x128xf32>
    tpu.vector_store %arg13[%155, %c0_50], %154 {strides = array<i32>} : memref<8x128xf32, #tpu.memory_space<vmem>>, vector<1x128xf32>,
    %c2_i32 = arith.constant 2 : i32
    %157 = arith.addi %0, %c2_i32 : i32
    %158 = arith.index_cast %157 : i32 to index
    %159 = memref.load %arg1[%158] : memref<16xi32, #tpu.memory_space<smem>>
    %160 = arith.index_cast %159 : i32 to index
    %c0_51 = arith.constant 0 : index
    %161 = vector.load %arg2[%160, %c0_51] : memref<64x32xf32, #tpu.memory_space<vmem>>, vector<1x32xf32>
    %cst_52 = arith.constant dense<0.000000e+00> : vector<1x40xf32>
    %162 = tpu.matmul %161, %4, %cst_52 {dimension_numbers = #tpu.dot_dimension_numbers<[1], [0], [0], [1], [0, 0, 1, 1], [], []>} : vector<1x32xf32>, vector<32x40xf32>, vector<1x40xf32> -> vector<1x40xf32>
    %163 = arith.addf %162, %5 : vector<1x40xf32>
    %cst_53 = arith.constant dense<0.000000e+00> : vector<1x104xf32>
    %164 = tpu.matmul %139, %6, %cst_53 {dimension_numbers = #tpu.dot_dimension_numbers<[1], [0], [0], [1], [0, 0, 1, 1], [], []>} : vector<1x32xf32>, vector<32x104xf32>, vector<1x104xf32> -> vector<1x104xf32>
    %165 = arith.addf %164, %7 : vector<1x104xf32>
    %166 = vector.extract_strided_slice %163 {offsets = [0, 32], sizes = [1, 8], strides = [1, 1]} : vector<1x40xf32> to vector<1x8xf32>
    %167 = vector.extract_strided_slice %165 {offsets = [0, 96], sizes = [1, 8], strides = [1, 1]} : vector<1x104xf32> to vector<1x8xf32>
    %168 = arith.addf %166, %167 : vector<1x8xf32>
    %cst_54 = arith.constant dense<0xFF800000> : vector<1xf32>
    %169 = vector.multi_reduction <maximumf>, %168, %cst_54 [1] : vector<1x8xf32> to vector<1xf32>
    %170 = vector.shape_cast %169 : vector<1xf32> to vector<1x1xf32>
    %171 = vector.broadcast %170 : vector<1x1xf32> to vector<1x8xf32>
    %172 = arith.subf %168, %171 : vector<1x8xf32>
    %173 = math.exp %172 : vector<1x8xf32>
    %cst_55 = arith.constant dense<0.000000e+00> : vector<1xf32>
    %174 = vector.multi_reduction <add>, %173, %cst_55 [1] : vector<1x8xf32> to vector<1xf32>
    %175 = vector.shape_cast %174 : vector<1xf32> to vector<1x1xf32>
    %176 = tpu.reciprocal %175 {approx = true} : vector<1x1xf32> -> vector<1x1xf32>
    %177 = arith.mulf %175, %176 : vector<1x1xf32>
    %cst_56 = arith.constant 2.000000e+00 : f32
    %178 = vector.broadcast %cst_56 : f32 to vector<1x1xf32>
    %179 = arith.subf %178, %177 : vector<1x1xf32>
    %180 = arith.mulf %176, %179 : vector<1x1xf32>
    %181 = vector.broadcast %180 : vector<1x1xf32> to vector<1x8xf32>
    %182 = arith.mulf %173, %181 : vector<1x8xf32>
    %183 = vector.extract_strided_slice %163 {offsets = [0, 0], sizes = [1, 32], strides = [1, 1]} : vector<1x40xf32> to vector<1x32xf32>
    %cst_57 = arith.constant dense<0.000000e+00> : vector<1x32xf32>
    %184 = tpu.matmul %182, %8, %cst_57 {dimension_numbers = #tpu.dot_dimension_numbers<[1], [0], [0], [1], [0, 0, 1, 1], [], []>} : vector<1x8xf32>, vector<8x32xf32>, vector<1x32xf32> -> vector<1x32xf32>
    %185 = arith.addf %183, %184 : vector<1x32xf32>
    %cst_58 = arith.constant 0.000000e+00 : f32
    %186 = vector.broadcast %cst_58 : f32 to vector<1x32xf32>
    %187 = arith.maximumf %185, %186 : vector<1x32xf32>
    %cst_59 = arith.constant dense<0.000000e+00> : vector<1x96xf32>
    %188 = tpu.matmul %187, %9, %cst_59 {dimension_numbers = #tpu.dot_dimension_numbers<[1], [0], [0], [1], [0, 0, 1, 1], [], []>} : vector<1x32xf32>, vector<32x96xf32>, vector<1x96xf32> -> vector<1x96xf32>
    %189 = arith.addf %188, %10 : vector<1x96xf32>
    %190 = vector.extract_strided_slice %165 {offsets = [0, 0], sizes = [1, 96], strides = [1, 1]} : vector<1x104xf32> to vector<1x96xf32>
    %191 = vector.extract_strided_slice %189 {offsets = [0, 0], sizes = [1, 64], strides = [1, 1]} : vector<1x96xf32> to vector<1x64xf32>
    %192 = vector.extract_strided_slice %190 {offsets = [0, 0], sizes = [1, 64], strides = [1, 1]} : vector<1x96xf32> to vector<1x64xf32>
    %193 = arith.addf %191, %192 : vector<1x64xf32>
    %194 = arith.negf %193 : vector<1x64xf32>
    %195 = math.exp %194 : vector<1x64xf32>
    %cst_60 = arith.constant 1.000000e+00 : f32
    %196 = vector.broadcast %cst_60 : f32 to vector<1x64xf32>
    %197 = arith.addf %196, %195 : vector<1x64xf32>
    %198 = arith.divf %196, %197 : vector<1x64xf32>
    %199 = vector.extract_strided_slice %198 {offsets = [0, 0], sizes = [1, 32], strides = [1, 1]} : vector<1x64xf32> to vector<1x32xf32>
    %200 = vector.extract_strided_slice %198 {offsets = [0, 32], sizes = [1, 32], strides = [1, 1]} : vector<1x64xf32> to vector<1x32xf32>
    %201 = vector.extract_strided_slice %189 {offsets = [0, 64], sizes = [1, 32], strides = [1, 1]} : vector<1x96xf32> to vector<1x32xf32>
    %202 = vector.extract_strided_slice %190 {offsets = [0, 64], sizes = [1, 32], strides = [1, 1]} : vector<1x96xf32> to vector<1x32xf32>
    %203 = arith.mulf %199, %202 : vector<1x32xf32>
    %204 = arith.addf %201, %203 : vector<1x32xf32>
    %205 = math.tanh %204 : vector<1x32xf32>
    %cst_61 = arith.constant 1.000000e+00 : f32
    %206 = vector.broadcast %cst_61 : f32 to vector<1x32xf32>
    %207 = arith.subf %206, %200 : vector<1x32xf32>
    %208 = arith.mulf %207, %205 : vector<1x32xf32>
    %209 = arith.mulf %200, %139 : vector<1x32xf32>
    %210 = arith.addf %208, %209 : vector<1x32xf32>
    %cst_62 = arith.constant dense<0.000000e+00> : vector<1x64xf32>
    %211 = tpu.matmul %210, %11, %cst_62 {dimension_numbers = #tpu.dot_dimension_numbers<[1], [0], [0], [1], [0, 0, 1, 1], [], []>} : vector<1x32xf32>, vector<32x64xf32>, vector<1x64xf32> -> vector<1x64xf32>
    %212 = arith.addf %211, %12 : vector<1x64xf32>
    %cst_63 = arith.constant dense<0xFF800000> : vector<1xf32>
    %213 = vector.multi_reduction <maximumf>, %212, %cst_63 [1] : vector<1x64xf32> to vector<1xf32>
    %214 = vector.shape_cast %213 : vector<1xf32> to vector<1x1xf32>
    %215 = vector.broadcast %214 : vector<1x1xf32> to vector<1x64xf32>
    %216 = arith.subf %212, %215 : vector<1x64xf32>
    %217 = math.exp %216 : vector<1x64xf32>
    %cst_64 = arith.constant dense<0.000000e+00> : vector<1xf32>
    %218 = vector.multi_reduction <add>, %217, %cst_64 [1] : vector<1x64xf32> to vector<1xf32>
    %219 = vector.shape_cast %218 : vector<1xf32> to vector<1x1xf32>
    %220 = math.log %219 : vector<1x1xf32>
    %221 = vector.broadcast %214 : vector<1x1xf32> to vector<1x64xf32>
    %222 = arith.subf %212, %221 : vector<1x64xf32>
    %223 = vector.broadcast %220 : vector<1x1xf32> to vector<1x64xf32>
    %224 = arith.subf %222, %223 : vector<1x64xf32>
    %225 = tpu.concatenate %224, %210, %182, %13 in 1 : vector<1x64xf32>, vector<1x32xf32>, vector<1x8xf32>, vector<1x24xf32> -> vector<1x128xf32>
    %226 = arith.index_cast %c2_i32 : i32 to index
    %c0_65 = arith.constant 0 : index
    %227 = vector.load %arg13[%226, %c0_65] : memref<8x128xf32, #tpu.memory_space<vmem>>, vector<1x128xf32>
    tpu.vector_store %arg13[%226, %c0_65], %225 {strides = array<i32>} : memref<8x128xf32, #tpu.memory_space<vmem>>, vector<1x128xf32>,
    %c3_i32 = arith.constant 3 : i32
    %228 = arith.addi %0, %c3_i32 : i32
    %229 = arith.index_cast %228 : i32 to index
    %230 = memref.load %arg1[%229] : memref<16xi32, #tpu.memory_space<smem>>
    %231 = arith.index_cast %230 : i32 to index
    %c0_66 = arith.constant 0 : index
    %232 = vector.load %arg2[%231, %c0_66] : memref<64x32xf32, #tpu.memory_space<vmem>>, vector<1x32xf32>
    %cst_67 = arith.constant dense<0.000000e+00> : vector<1x40xf32>
    %233 = tpu.matmul %232, %4, %cst_67 {dimension_numbers = #tpu.dot_dimension_numbers<[1], [0], [0], [1], [0, 0, 1, 1], [], []>} : vector<1x32xf32>, vector<32x40xf32>, vector<1x40xf32> -> vector<1x40xf32>
    %234 = arith.addf %233, %5 : vector<1x40xf32>
    %cst_68 = arith.constant dense<0.000000e+00> : vector<1x104xf32>
    %235 = tpu.matmul %210, %6, %cst_68 {dimension_numbers = #tpu.dot_dimension_numbers<[1], [0], [0], [1], [0, 0, 1, 1], [], []>} : vector<1x32xf32>, vector<32x104xf32>, vector<1x104xf32> -> vector<1x104xf32>
    %236 = arith.addf %235, %7 : vector<1x104xf32>
    %237 = vector.extract_strided_slice %234 {offsets = [0, 32], sizes = [1, 8], strides = [1, 1]} : vector<1x40xf32> to vector<1x8xf32>
    %238 = vector.extract_strided_slice %236 {offsets = [0, 96], sizes = [1, 8], strides = [1, 1]} : vector<1x104xf32> to vector<1x8xf32>
    %239 = arith.addf %237, %238 : vector<1x8xf32>
    %cst_69 = arith.constant dense<0xFF800000> : vector<1xf32>
    %240 = vector.multi_reduction <maximumf>, %239, %cst_69 [1] : vector<1x8xf32> to vector<1xf32>
    %241 = vector.shape_cast %240 : vector<1xf32> to vector<1x1xf32>
    %242 = vector.broadcast %241 : vector<1x1xf32> to vector<1x8xf32>
    %243 = arith.subf %239, %242 : vector<1x8xf32>
    %244 = math.exp %243 : vector<1x8xf32>
    %cst_70 = arith.constant dense<0.000000e+00> : vector<1xf32>
    %245 = vector.multi_reduction <add>, %244, %cst_70 [1] : vector<1x8xf32> to vector<1xf32>
    %246 = vector.shape_cast %245 : vector<1xf32> to vector<1x1xf32>
    %247 = tpu.reciprocal %246 {approx = true} : vector<1x1xf32> -> vector<1x1xf32>
    %248 = arith.mulf %246, %247 : vector<1x1xf32>
    %cst_71 = arith.constant 2.000000e+00 : f32
    %249 = vector.broadcast %cst_71 : f32 to vector<1x1xf32>
    %250 = arith.subf %249, %248 : vector<1x1xf32>
    %251 = arith.mulf %247, %250 : vector<1x1xf32>
    %252 = vector.broadcast %251 : vector<1x1xf32> to vector<1x8xf32>
    %253 = arith.mulf %244, %252 : vector<1x8xf32>
    %254 = vector.extract_strided_slice %234 {offsets = [0, 0], sizes = [1, 32], strides = [1, 1]} : vector<1x40xf32> to vector<1x32xf32>
    %cst_72 = arith.constant dense<0.000000e+00> : vector<1x32xf32>
    %255 = tpu.matmul %253, %8, %cst_72 {dimension_numbers = #tpu.dot_dimension_numbers<[1], [0], [0], [1], [0, 0, 1, 1], [], []>} : vector<1x8xf32>, vector<8x32xf32>, vector<1x32xf32> -> vector<1x32xf32>
    %256 = arith.addf %254, %255 : vector<1x32xf32>
    %cst_73 = arith.constant 0.000000e+00 : f32
    %257 = vector.broadcast %cst_73 : f32 to vector<1x32xf32>
    %258 = arith.maximumf %256, %257 : vector<1x32xf32>
    %cst_74 = arith.constant dense<0.000000e+00> : vector<1x96xf32>
    %259 = tpu.matmul %258, %9, %cst_74 {dimension_numbers = #tpu.dot_dimension_numbers<[1], [0], [0], [1], [0, 0, 1, 1], [], []>} : vector<1x32xf32>, vector<32x96xf32>, vector<1x96xf32> -> vector<1x96xf32>
    %260 = arith.addf %259, %10 : vector<1x96xf32>
    %261 = vector.extract_strided_slice %236 {offsets = [0, 0], sizes = [1, 96], strides = [1, 1]} : vector<1x104xf32> to vector<1x96xf32>
    %262 = vector.extract_strided_slice %260 {offsets = [0, 0], sizes = [1, 64], strides = [1, 1]} : vector<1x96xf32> to vector<1x64xf32>
    %263 = vector.extract_strided_slice %261 {offsets = [0, 0], sizes = [1, 64], strides = [1, 1]} : vector<1x96xf32> to vector<1x64xf32>
    %264 = arith.addf %262, %263 : vector<1x64xf32>
    %265 = arith.negf %264 : vector<1x64xf32>
    %266 = math.exp %265 : vector<1x64xf32>
    %cst_75 = arith.constant 1.000000e+00 : f32
    %267 = vector.broadcast %cst_75 : f32 to vector<1x64xf32>
    %268 = arith.addf %267, %266 : vector<1x64xf32>
    %269 = arith.divf %267, %268 : vector<1x64xf32>
    %270 = vector.extract_strided_slice %269 {offsets = [0, 0], sizes = [1, 32], strides = [1, 1]} : vector<1x64xf32> to vector<1x32xf32>
    %271 = vector.extract_strided_slice %269 {offsets = [0, 32], sizes = [1, 32], strides = [1, 1]} : vector<1x64xf32> to vector<1x32xf32>
    %272 = vector.extract_strided_slice %260 {offsets = [0, 64], sizes = [1, 32], strides = [1, 1]} : vector<1x96xf32> to vector<1x32xf32>
    %273 = vector.extract_strided_slice %261 {offsets = [0, 64], sizes = [1, 32], strides = [1, 1]} : vector<1x96xf32> to vector<1x32xf32>
    %274 = arith.mulf %270, %273 : vector<1x32xf32>
    %275 = arith.addf %272, %274 : vector<1x32xf32>
    %276 = math.tanh %275 : vector<1x32xf32>
    %cst_76 = arith.constant 1.000000e+00 : f32
    %277 = vector.broadcast %cst_76 : f32 to vector<1x32xf32>
    %278 = arith.subf %277, %271 : vector<1x32xf32>
    %279 = arith.mulf %278, %276 : vector<1x32xf32>
    %280 = arith.mulf %271, %210 : vector<1x32xf32>
    %281 = arith.addf %279, %280 : vector<1x32xf32>
    %cst_77 = arith.constant dense<0.000000e+00> : vector<1x64xf32>
    %282 = tpu.matmul %281, %11, %cst_77 {dimension_numbers = #tpu.dot_dimension_numbers<[1], [0], [0], [1], [0, 0, 1, 1], [], []>} : vector<1x32xf32>, vector<32x64xf32>, vector<1x64xf32> -> vector<1x64xf32>
    %283 = arith.addf %282, %12 : vector<1x64xf32>
    %cst_78 = arith.constant dense<0xFF800000> : vector<1xf32>
    %284 = vector.multi_reduction <maximumf>, %283, %cst_78 [1] : vector<1x64xf32> to vector<1xf32>
    %285 = vector.shape_cast %284 : vector<1xf32> to vector<1x1xf32>
    %286 = vector.broadcast %285 : vector<1x1xf32> to vector<1x64xf32>
    %287 = arith.subf %283, %286 : vector<1x64xf32>
    %288 = math.exp %287 : vector<1x64xf32>
    %cst_79 = arith.constant dense<0.000000e+00> : vector<1xf32>
    %289 = vector.multi_reduction <add>, %288, %cst_79 [1] : vector<1x64xf32> to vector<1xf32>
    %290 = vector.shape_cast %289 : vector<1xf32> to vector<1x1xf32>
    %291 = math.log %290 : vector<1x1xf32>
    %292 = vector.broadcast %285 : vector<1x1xf32> to vector<1x64xf32>
    %293 = arith.subf %283, %292 : vector<1x64xf32>
    %294 = vector.broadcast %291 : vector<1x1xf32> to vector<1x64xf32>
    %295 = arith.subf %293, %294 : vector<1x64xf32>
    %296 = tpu.concatenate %295, %281, %253, %13 in 1 : vector<1x64xf32>, vector<1x32xf32>, vector<1x8xf32>, vector<1x24xf32> -> vector<1x128xf32>
    %297 = arith.index_cast %c3_i32 : i32 to index
    %c0_80 = arith.constant 0 : index
    %298 = vector.load %arg13[%297, %c0_80] : memref<8x128xf32, #tpu.memory_space<vmem>>, vector<1x128xf32>
    tpu.vector_store %arg13[%297, %c0_80], %296 {strides = array<i32>} : memref<8x128xf32, #tpu.memory_space<vmem>>, vector<1x128xf32>,
    %c4_i32 = arith.constant 4 : i32
    %299 = arith.addi %0, %c4_i32 : i32
    %300 = arith.index_cast %299 : i32 to index
    %301 = memref.load %arg1[%300] : memref<16xi32, #tpu.memory_space<smem>>
    %302 = arith.index_cast %301 : i32 to index
    %c0_81 = arith.constant 0 : index
    %303 = vector.load %arg2[%302, %c0_81] : memref<64x32xf32, #tpu.memory_space<vmem>>, vector<1x32xf32>
    %cst_82 = arith.constant dense<0.000000e+00> : vector<1x40xf32>
    %304 = tpu.matmul %303, %4, %cst_82 {dimension_numbers = #tpu.dot_dimension_numbers<[1], [0], [0], [1], [0, 0, 1, 1], [], []>} : vector<1x32xf32>, vector<32x40xf32>, vector<1x40xf32> -> vector<1x40xf32>
    %305 = arith.addf %304, %5 : vector<1x40xf32>
    %cst_83 = arith.constant dense<0.000000e+00> : vector<1x104xf32>
    %306 = tpu.matmul %281, %6, %cst_83 {dimension_numbers = #tpu.dot_dimension_numbers<[1], [0], [0], [1], [0, 0, 1, 1], [], []>} : vector<1x32xf32>, vector<32x104xf32>, vector<1x104xf32> -> vector<1x104xf32>
    %307 = arith.addf %306, %7 : vector<1x104xf32>
    %308 = vector.extract_strided_slice %305 {offsets = [0, 32], sizes = [1, 8], strides = [1, 1]} : vector<1x40xf32> to vector<1x8xf32>
    %309 = vector.extract_strided_slice %307 {offsets = [0, 96], sizes = [1, 8], strides = [1, 1]} : vector<1x104xf32> to vector<1x8xf32>
    %310 = arith.addf %308, %309 : vector<1x8xf32>
    %cst_84 = arith.constant dense<0xFF800000> : vector<1xf32>
    %311 = vector.multi_reduction <maximumf>, %310, %cst_84 [1] : vector<1x8xf32> to vector<1xf32>
    %312 = vector.shape_cast %311 : vector<1xf32> to vector<1x1xf32>
    %313 = vector.broadcast %312 : vector<1x1xf32> to vector<1x8xf32>
    %314 = arith.subf %310, %313 : vector<1x8xf32>
    %315 = math.exp %314 : vector<1x8xf32>
    %cst_85 = arith.constant dense<0.000000e+00> : vector<1xf32>
    %316 = vector.multi_reduction <add>, %315, %cst_85 [1] : vector<1x8xf32> to vector<1xf32>
    %317 = vector.shape_cast %316 : vector<1xf32> to vector<1x1xf32>
    %318 = tpu.reciprocal %317 {approx = true} : vector<1x1xf32> -> vector<1x1xf32>
    %319 = arith.mulf %317, %318 : vector<1x1xf32>
    %cst_86 = arith.constant 2.000000e+00 : f32
    %320 = vector.broadcast %cst_86 : f32 to vector<1x1xf32>
    %321 = arith.subf %320, %319 : vector<1x1xf32>
    %322 = arith.mulf %318, %321 : vector<1x1xf32>
    %323 = vector.broadcast %322 : vector<1x1xf32> to vector<1x8xf32>
    %324 = arith.mulf %315, %323 : vector<1x8xf32>
    %325 = vector.extract_strided_slice %305 {offsets = [0, 0], sizes = [1, 32], strides = [1, 1]} : vector<1x40xf32> to vector<1x32xf32>
    %cst_87 = arith.constant dense<0.000000e+00> : vector<1x32xf32>
    %326 = tpu.matmul %324, %8, %cst_87 {dimension_numbers = #tpu.dot_dimension_numbers<[1], [0], [0], [1], [0, 0, 1, 1], [], []>} : vector<1x8xf32>, vector<8x32xf32>, vector<1x32xf32> -> vector<1x32xf32>
    %327 = arith.addf %325, %326 : vector<1x32xf32>
    %cst_88 = arith.constant 0.000000e+00 : f32
    %328 = vector.broadcast %cst_88 : f32 to vector<1x32xf32>
    %329 = arith.maximumf %327, %328 : vector<1x32xf32>
    %cst_89 = arith.constant dense<0.000000e+00> : vector<1x96xf32>
    %330 = tpu.matmul %329, %9, %cst_89 {dimension_numbers = #tpu.dot_dimension_numbers<[1], [0], [0], [1], [0, 0, 1, 1], [], []>} : vector<1x32xf32>, vector<32x96xf32>, vector<1x96xf32> -> vector<1x96xf32>
    %331 = arith.addf %330, %10 : vector<1x96xf32>
    %332 = vector.extract_strided_slice %307 {offsets = [0, 0], sizes = [1, 96], strides = [1, 1]} : vector<1x104xf32> to vector<1x96xf32>
    %333 = vector.extract_strided_slice %331 {offsets = [0, 0], sizes = [1, 64], strides = [1, 1]} : vector<1x96xf32> to vector<1x64xf32>
    %334 = vector.extract_strided_slice %332 {offsets = [0, 0], sizes = [1, 64], strides = [1, 1]} : vector<1x96xf32> to vector<1x64xf32>
    %335 = arith.addf %333, %334 : vector<1x64xf32>
    %336 = arith.negf %335 : vector<1x64xf32>
    %337 = math.exp %336 : vector<1x64xf32>
    %cst_90 = arith.constant 1.000000e+00 : f32
    %338 = vector.broadcast %cst_90 : f32 to vector<1x64xf32>
    %339 = arith.addf %338, %337 : vector<1x64xf32>
    %340 = arith.divf %338, %339 : vector<1x64xf32>
    %341 = vector.extract_strided_slice %340 {offsets = [0, 0], sizes = [1, 32], strides = [1, 1]} : vector<1x64xf32> to vector<1x32xf32>
    %342 = vector.extract_strided_slice %340 {offsets = [0, 32], sizes = [1, 32], strides = [1, 1]} : vector<1x64xf32> to vector<1x32xf32>
    %343 = vector.extract_strided_slice %331 {offsets = [0, 64], sizes = [1, 32], strides = [1, 1]} : vector<1x96xf32> to vector<1x32xf32>
    %344 = vector.extract_strided_slice %332 {offsets = [0, 64], sizes = [1, 32], strides = [1, 1]} : vector<1x96xf32> to vector<1x32xf32>
    %345 = arith.mulf %341, %344 : vector<1x32xf32>
    %346 = arith.addf %343, %345 : vector<1x32xf32>
    %347 = math.tanh %346 : vector<1x32xf32>
    %cst_91 = arith.constant 1.000000e+00 : f32
    %348 = vector.broadcast %cst_91 : f32 to vector<1x32xf32>
    %349 = arith.subf %348, %342 : vector<1x32xf32>
    %350 = arith.mulf %349, %347 : vector<1x32xf32>
    %351 = arith.mulf %342, %281 : vector<1x32xf32>
    %352 = arith.addf %350, %351 : vector<1x32xf32>
    %cst_92 = arith.constant dense<0.000000e+00> : vector<1x64xf32>
    %353 = tpu.matmul %352, %11, %cst_92 {dimension_numbers = #tpu.dot_dimension_numbers<[1], [0], [0], [1], [0, 0, 1, 1], [], []>} : vector<1x32xf32>, vector<32x64xf32>, vector<1x64xf32> -> vector<1x64xf32>
    %354 = arith.addf %353, %12 : vector<1x64xf32>
    %cst_93 = arith.constant dense<0xFF800000> : vector<1xf32>
    %355 = vector.multi_reduction <maximumf>, %354, %cst_93 [1] : vector<1x64xf32> to vector<1xf32>
    %356 = vector.shape_cast %355 : vector<1xf32> to vector<1x1xf32>
    %357 = vector.broadcast %356 : vector<1x1xf32> to vector<1x64xf32>
    %358 = arith.subf %354, %357 : vector<1x64xf32>
    %359 = math.exp %358 : vector<1x64xf32>
    %cst_94 = arith.constant dense<0.000000e+00> : vector<1xf32>
    %360 = vector.multi_reduction <add>, %359, %cst_94 [1] : vector<1x64xf32> to vector<1xf32>
    %361 = vector.shape_cast %360 : vector<1xf32> to vector<1x1xf32>
    %362 = math.log %361 : vector<1x1xf32>
    %363 = vector.broadcast %356 : vector<1x1xf32> to vector<1x64xf32>
    %364 = arith.subf %354, %363 : vector<1x64xf32>
    %365 = vector.broadcast %362 : vector<1x1xf32> to vector<1x64xf32>
    %366 = arith.subf %364, %365 : vector<1x64xf32>
    %367 = tpu.concatenate %366, %352, %324, %13 in 1 : vector<1x64xf32>, vector<1x32xf32>, vector<1x8xf32>, vector<1x24xf32> -> vector<1x128xf32>
    %368 = arith.index_cast %c4_i32 : i32 to index
    %c0_95 = arith.constant 0 : index
    %369 = vector.load %arg13[%368, %c0_95] : memref<8x128xf32, #tpu.memory_space<vmem>>, vector<1x128xf32>
    tpu.vector_store %arg13[%368, %c0_95], %367 {strides = array<i32>} : memref<8x128xf32, #tpu.memory_space<vmem>>, vector<1x128xf32>,
    %c5_i32 = arith.constant 5 : i32
    %370 = arith.addi %0, %c5_i32 : i32
    %371 = arith.index_cast %370 : i32 to index
    %372 = memref.load %arg1[%371] : memref<16xi32, #tpu.memory_space<smem>>
    %373 = arith.index_cast %372 : i32 to index
    %c0_96 = arith.constant 0 : index
    %374 = vector.load %arg2[%373, %c0_96] : memref<64x32xf32, #tpu.memory_space<vmem>>, vector<1x32xf32>
    %cst_97 = arith.constant dense<0.000000e+00> : vector<1x40xf32>
    %375 = tpu.matmul %374, %4, %cst_97 {dimension_numbers = #tpu.dot_dimension_numbers<[1], [0], [0], [1], [0, 0, 1, 1], [], []>} : vector<1x32xf32>, vector<32x40xf32>, vector<1x40xf32> -> vector<1x40xf32>
    %376 = arith.addf %375, %5 : vector<1x40xf32>
    %cst_98 = arith.constant dense<0.000000e+00> : vector<1x104xf32>
    %377 = tpu.matmul %352, %6, %cst_98 {dimension_numbers = #tpu.dot_dimension_numbers<[1], [0], [0], [1], [0, 0, 1, 1], [], []>} : vector<1x32xf32>, vector<32x104xf32>, vector<1x104xf32> -> vector<1x104xf32>
    %378 = arith.addf %377, %7 : vector<1x104xf32>
    %379 = vector.extract_strided_slice %376 {offsets = [0, 32], sizes = [1, 8], strides = [1, 1]} : vector<1x40xf32> to vector<1x8xf32>
    %380 = vector.extract_strided_slice %378 {offsets = [0, 96], sizes = [1, 8], strides = [1, 1]} : vector<1x104xf32> to vector<1x8xf32>
    %381 = arith.addf %379, %380 : vector<1x8xf32>
    %cst_99 = arith.constant dense<0xFF800000> : vector<1xf32>
    %382 = vector.multi_reduction <maximumf>, %381, %cst_99 [1] : vector<1x8xf32> to vector<1xf32>
    %383 = vector.shape_cast %382 : vector<1xf32> to vector<1x1xf32>
    %384 = vector.broadcast %383 : vector<1x1xf32> to vector<1x8xf32>
    %385 = arith.subf %381, %384 : vector<1x8xf32>
    %386 = math.exp %385 : vector<1x8xf32>
    %cst_100 = arith.constant dense<0.000000e+00> : vector<1xf32>
    %387 = vector.multi_reduction <add>, %386, %cst_100 [1] : vector<1x8xf32> to vector<1xf32>
    %388 = vector.shape_cast %387 : vector<1xf32> to vector<1x1xf32>
    %389 = tpu.reciprocal %388 {approx = true} : vector<1x1xf32> -> vector<1x1xf32>
    %390 = arith.mulf %388, %389 : vector<1x1xf32>
    %cst_101 = arith.constant 2.000000e+00 : f32
    %391 = vector.broadcast %cst_101 : f32 to vector<1x1xf32>
    %392 = arith.subf %391, %390 : vector<1x1xf32>
    %393 = arith.mulf %389, %392 : vector<1x1xf32>
    %394 = vector.broadcast %393 : vector<1x1xf32> to vector<1x8xf32>
    %395 = arith.mulf %386, %394 : vector<1x8xf32>
    %396 = vector.extract_strided_slice %376 {offsets = [0, 0], sizes = [1, 32], strides = [1, 1]} : vector<1x40xf32> to vector<1x32xf32>
    %cst_102 = arith.constant dense<0.000000e+00> : vector<1x32xf32>
    %397 = tpu.matmul %395, %8, %cst_102 {dimension_numbers = #tpu.dot_dimension_numbers<[1], [0], [0], [1], [0, 0, 1, 1], [], []>} : vector<1x8xf32>, vector<8x32xf32>, vector<1x32xf32> -> vector<1x32xf32>
    %398 = arith.addf %396, %397 : vector<1x32xf32>
    %cst_103 = arith.constant 0.000000e+00 : f32
    %399 = vector.broadcast %cst_103 : f32 to vector<1x32xf32>
    %400 = arith.maximumf %398, %399 : vector<1x32xf32>
    %cst_104 = arith.constant dense<0.000000e+00> : vector<1x96xf32>
    %401 = tpu.matmul %400, %9, %cst_104 {dimension_numbers = #tpu.dot_dimension_numbers<[1], [0], [0], [1], [0, 0, 1, 1], [], []>} : vector<1x32xf32>, vector<32x96xf32>, vector<1x96xf32> -> vector<1x96xf32>
    %402 = arith.addf %401, %10 : vector<1x96xf32>
    %403 = vector.extract_strided_slice %378 {offsets = [0, 0], sizes = [1, 96], strides = [1, 1]} : vector<1x104xf32> to vector<1x96xf32>
    %404 = vector.extract_strided_slice %402 {offsets = [0, 0], sizes = [1, 64], strides = [1, 1]} : vector<1x96xf32> to vector<1x64xf32>
    %405 = vector.extract_strided_slice %403 {offsets = [0, 0], sizes = [1, 64], strides = [1, 1]} : vector<1x96xf32> to vector<1x64xf32>
    %406 = arith.addf %404, %405 : vector<1x64xf32>
    %407 = arith.negf %406 : vector<1x64xf32>
    %408 = math.exp %407 : vector<1x64xf32>
    %cst_105 = arith.constant 1.000000e+00 : f32
    %409 = vector.broadcast %cst_105 : f32 to vector<1x64xf32>
    %410 = arith.addf %409, %408 : vector<1x64xf32>
    %411 = arith.divf %409, %410 : vector<1x64xf32>
    %412 = vector.extract_strided_slice %411 {offsets = [0, 0], sizes = [1, 32], strides = [1, 1]} : vector<1x64xf32> to vector<1x32xf32>
    %413 = vector.extract_strided_slice %411 {offsets = [0, 32], sizes = [1, 32], strides = [1, 1]} : vector<1x64xf32> to vector<1x32xf32>
    %414 = vector.extract_strided_slice %402 {offsets = [0, 64], sizes = [1, 32], strides = [1, 1]} : vector<1x96xf32> to vector<1x32xf32>
    %415 = vector.extract_strided_slice %403 {offsets = [0, 64], sizes = [1, 32], strides = [1, 1]} : vector<1x96xf32> to vector<1x32xf32>
    %416 = arith.mulf %412, %415 : vector<1x32xf32>
    %417 = arith.addf %414, %416 : vector<1x32xf32>
    %418 = math.tanh %417 : vector<1x32xf32>
    %cst_106 = arith.constant 1.000000e+00 : f32
    %419 = vector.broadcast %cst_106 : f32 to vector<1x32xf32>
    %420 = arith.subf %419, %413 : vector<1x32xf32>
    %421 = arith.mulf %420, %418 : vector<1x32xf32>
    %422 = arith.mulf %413, %352 : vector<1x32xf32>
    %423 = arith.addf %421, %422 : vector<1x32xf32>
    %cst_107 = arith.constant dense<0.000000e+00> : vector<1x64xf32>
    %424 = tpu.matmul %423, %11, %cst_107 {dimension_numbers = #tpu.dot_dimension_numbers<[1], [0], [0], [1], [0, 0, 1, 1], [], []>} : vector<1x32xf32>, vector<32x64xf32>, vector<1x64xf32> -> vector<1x64xf32>
    %425 = arith.addf %424, %12 : vector<1x64xf32>
    %cst_108 = arith.constant dense<0xFF800000> : vector<1xf32>
    %426 = vector.multi_reduction <maximumf>, %425, %cst_108 [1] : vector<1x64xf32> to vector<1xf32>
    %427 = vector.shape_cast %426 : vector<1xf32> to vector<1x1xf32>
    %428 = vector.broadcast %427 : vector<1x1xf32> to vector<1x64xf32>
    %429 = arith.subf %425, %428 : vector<1x64xf32>
    %430 = math.exp %429 : vector<1x64xf32>
    %cst_109 = arith.constant dense<0.000000e+00> : vector<1xf32>
    %431 = vector.multi_reduction <add>, %430, %cst_109 [1] : vector<1x64xf32> to vector<1xf32>
    %432 = vector.shape_cast %431 : vector<1xf32> to vector<1x1xf32>
    %433 = math.log %432 : vector<1x1xf32>
    %434 = vector.broadcast %427 : vector<1x1xf32> to vector<1x64xf32>
    %435 = arith.subf %425, %434 : vector<1x64xf32>
    %436 = vector.broadcast %433 : vector<1x1xf32> to vector<1x64xf32>
    %437 = arith.subf %435, %436 : vector<1x64xf32>
    %438 = tpu.concatenate %437, %423, %395, %13 in 1 : vector<1x64xf32>, vector<1x32xf32>, vector<1x8xf32>, vector<1x24xf32> -> vector<1x128xf32>
    %439 = arith.index_cast %c5_i32 : i32 to index
    %c0_110 = arith.constant 0 : index
    %440 = vector.load %arg13[%439, %c0_110] : memref<8x128xf32, #tpu.memory_space<vmem>>, vector<1x128xf32>
    tpu.vector_store %arg13[%439, %c0_110], %438 {strides = array<i32>} : memref<8x128xf32, #tpu.memory_space<vmem>>, vector<1x128xf32>,
    %c6_i32 = arith.constant 6 : i32
    %441 = arith.addi %0, %c6_i32 : i32
    %442 = arith.index_cast %441 : i32 to index
    %443 = memref.load %arg1[%442] : memref<16xi32, #tpu.memory_space<smem>>
    %444 = arith.index_cast %443 : i32 to index
    %c0_111 = arith.constant 0 : index
    %445 = vector.load %arg2[%444, %c0_111] : memref<64x32xf32, #tpu.memory_space<vmem>>, vector<1x32xf32>
    %cst_112 = arith.constant dense<0.000000e+00> : vector<1x40xf32>
    %446 = tpu.matmul %445, %4, %cst_112 {dimension_numbers = #tpu.dot_dimension_numbers<[1], [0], [0], [1], [0, 0, 1, 1], [], []>} : vector<1x32xf32>, vector<32x40xf32>, vector<1x40xf32> -> vector<1x40xf32>
    %447 = arith.addf %446, %5 : vector<1x40xf32>
    %cst_113 = arith.constant dense<0.000000e+00> : vector<1x104xf32>
    %448 = tpu.matmul %423, %6, %cst_113 {dimension_numbers = #tpu.dot_dimension_numbers<[1], [0], [0], [1], [0, 0, 1, 1], [], []>} : vector<1x32xf32>, vector<32x104xf32>, vector<1x104xf32> -> vector<1x104xf32>
    %449 = arith.addf %448, %7 : vector<1x104xf32>
    %450 = vector.extract_strided_slice %447 {offsets = [0, 32], sizes = [1, 8], strides = [1, 1]} : vector<1x40xf32> to vector<1x8xf32>
    %451 = vector.extract_strided_slice %449 {offsets = [0, 96], sizes = [1, 8], strides = [1, 1]} : vector<1x104xf32> to vector<1x8xf32>
    %452 = arith.addf %450, %451 : vector<1x8xf32>
    %cst_114 = arith.constant dense<0xFF800000> : vector<1xf32>
    %453 = vector.multi_reduction <maximumf>, %452, %cst_114 [1] : vector<1x8xf32> to vector<1xf32>
    %454 = vector.shape_cast %453 : vector<1xf32> to vector<1x1xf32>
    %455 = vector.broadcast %454 : vector<1x1xf32> to vector<1x8xf32>
    %456 = arith.subf %452, %455 : vector<1x8xf32>
    %457 = math.exp %456 : vector<1x8xf32>
    %cst_115 = arith.constant dense<0.000000e+00> : vector<1xf32>
    %458 = vector.multi_reduction <add>, %457, %cst_115 [1] : vector<1x8xf32> to vector<1xf32>
    %459 = vector.shape_cast %458 : vector<1xf32> to vector<1x1xf32>
    %460 = tpu.reciprocal %459 {approx = true} : vector<1x1xf32> -> vector<1x1xf32>
    %461 = arith.mulf %459, %460 : vector<1x1xf32>
    %cst_116 = arith.constant 2.000000e+00 : f32
    %462 = vector.broadcast %cst_116 : f32 to vector<1x1xf32>
    %463 = arith.subf %462, %461 : vector<1x1xf32>
    %464 = arith.mulf %460, %463 : vector<1x1xf32>
    %465 = vector.broadcast %464 : vector<1x1xf32> to vector<1x8xf32>
    %466 = arith.mulf %457, %465 : vector<1x8xf32>
    %467 = vector.extract_strided_slice %447 {offsets = [0, 0], sizes = [1, 32], strides = [1, 1]} : vector<1x40xf32> to vector<1x32xf32>
    %cst_117 = arith.constant dense<0.000000e+00> : vector<1x32xf32>
    %468 = tpu.matmul %466, %8, %cst_117 {dimension_numbers = #tpu.dot_dimension_numbers<[1], [0], [0], [1], [0, 0, 1, 1], [], []>} : vector<1x8xf32>, vector<8x32xf32>, vector<1x32xf32> -> vector<1x32xf32>
    %469 = arith.addf %467, %468 : vector<1x32xf32>
    %cst_118 = arith.constant 0.000000e+00 : f32
    %470 = vector.broadcast %cst_118 : f32 to vector<1x32xf32>
    %471 = arith.maximumf %469, %470 : vector<1x32xf32>
    %cst_119 = arith.constant dense<0.000000e+00> : vector<1x96xf32>
    %472 = tpu.matmul %471, %9, %cst_119 {dimension_numbers = #tpu.dot_dimension_numbers<[1], [0], [0], [1], [0, 0, 1, 1], [], []>} : vector<1x32xf32>, vector<32x96xf32>, vector<1x96xf32> -> vector<1x96xf32>
    %473 = arith.addf %472, %10 : vector<1x96xf32>
    %474 = vector.extract_strided_slice %449 {offsets = [0, 0], sizes = [1, 96], strides = [1, 1]} : vector<1x104xf32> to vector<1x96xf32>
    %475 = vector.extract_strided_slice %473 {offsets = [0, 0], sizes = [1, 64], strides = [1, 1]} : vector<1x96xf32> to vector<1x64xf32>
    %476 = vector.extract_strided_slice %474 {offsets = [0, 0], sizes = [1, 64], strides = [1, 1]} : vector<1x96xf32> to vector<1x64xf32>
    %477 = arith.addf %475, %476 : vector<1x64xf32>
    %478 = arith.negf %477 : vector<1x64xf32>
    %479 = math.exp %478 : vector<1x64xf32>
    %cst_120 = arith.constant 1.000000e+00 : f32
    %480 = vector.broadcast %cst_120 : f32 to vector<1x64xf32>
    %481 = arith.addf %480, %479 : vector<1x64xf32>
    %482 = arith.divf %480, %481 : vector<1x64xf32>
    %483 = vector.extract_strided_slice %482 {offsets = [0, 0], sizes = [1, 32], strides = [1, 1]} : vector<1x64xf32> to vector<1x32xf32>
    %484 = vector.extract_strided_slice %482 {offsets = [0, 32], sizes = [1, 32], strides = [1, 1]} : vector<1x64xf32> to vector<1x32xf32>
    %485 = vector.extract_strided_slice %473 {offsets = [0, 64], sizes = [1, 32], strides = [1, 1]} : vector<1x96xf32> to vector<1x32xf32>
    %486 = vector.extract_strided_slice %474 {offsets = [0, 64], sizes = [1, 32], strides = [1, 1]} : vector<1x96xf32> to vector<1x32xf32>
    %487 = arith.mulf %483, %486 : vector<1x32xf32>
    %488 = arith.addf %485, %487 : vector<1x32xf32>
    %489 = math.tanh %488 : vector<1x32xf32>
    %cst_121 = arith.constant 1.000000e+00 : f32
    %490 = vector.broadcast %cst_121 : f32 to vector<1x32xf32>
    %491 = arith.subf %490, %484 : vector<1x32xf32>
    %492 = arith.mulf %491, %489 : vector<1x32xf32>
    %493 = arith.mulf %484, %423 : vector<1x32xf32>
    %494 = arith.addf %492, %493 : vector<1x32xf32>
    %cst_122 = arith.constant dense<0.000000e+00> : vector<1x64xf32>
    %495 = tpu.matmul %494, %11, %cst_122 {dimension_numbers = #tpu.dot_dimension_numbers<[1], [0], [0], [1], [0, 0, 1, 1], [], []>} : vector<1x32xf32>, vector<32x64xf32>, vector<1x64xf32> -> vector<1x64xf32>
    %496 = arith.addf %495, %12 : vector<1x64xf32>
    %cst_123 = arith.constant dense<0xFF800000> : vector<1xf32>
    %497 = vector.multi_reduction <maximumf>, %496, %cst_123 [1] : vector<1x64xf32> to vector<1xf32>
    %498 = vector.shape_cast %497 : vector<1xf32> to vector<1x1xf32>
    %499 = vector.broadcast %498 : vector<1x1xf32> to vector<1x64xf32>
    %500 = arith.subf %496, %499 : vector<1x64xf32>
    %501 = math.exp %500 : vector<1x64xf32>
    %cst_124 = arith.constant dense<0.000000e+00> : vector<1xf32>
    %502 = vector.multi_reduction <add>, %501, %cst_124 [1] : vector<1x64xf32> to vector<1xf32>
    %503 = vector.shape_cast %502 : vector<1xf32> to vector<1x1xf32>
    %504 = math.log %503 : vector<1x1xf32>
    %505 = vector.broadcast %498 : vector<1x1xf32> to vector<1x64xf32>
    %506 = arith.subf %496, %505 : vector<1x64xf32>
    %507 = vector.broadcast %504 : vector<1x1xf32> to vector<1x64xf32>
    %508 = arith.subf %506, %507 : vector<1x64xf32>
    %509 = tpu.concatenate %508, %494, %466, %13 in 1 : vector<1x64xf32>, vector<1x32xf32>, vector<1x8xf32>, vector<1x24xf32> -> vector<1x128xf32>
    %510 = arith.index_cast %c6_i32 : i32 to index
    %c0_125 = arith.constant 0 : index
    %511 = vector.load %arg13[%510, %c0_125] : memref<8x128xf32, #tpu.memory_space<vmem>>, vector<1x128xf32>
    tpu.vector_store %arg13[%510, %c0_125], %509 {strides = array<i32>} : memref<8x128xf32, #tpu.memory_space<vmem>>, vector<1x128xf32>,
    %c7_i32 = arith.constant 7 : i32
    %512 = arith.addi %0, %c7_i32 : i32
    %513 = arith.index_cast %512 : i32 to index
    %514 = memref.load %arg1[%513] : memref<16xi32, #tpu.memory_space<smem>>
    %515 = arith.index_cast %514 : i32 to index
    %c0_126 = arith.constant 0 : index
    %516 = vector.load %arg2[%515, %c0_126] : memref<64x32xf32, #tpu.memory_space<vmem>>, vector<1x32xf32>
    %cst_127 = arith.constant dense<0.000000e+00> : vector<1x40xf32>
    %517 = tpu.matmul %516, %4, %cst_127 {dimension_numbers = #tpu.dot_dimension_numbers<[1], [0], [0], [1], [0, 0, 1, 1], [], []>} : vector<1x32xf32>, vector<32x40xf32>, vector<1x40xf32> -> vector<1x40xf32>
    %518 = arith.addf %517, %5 : vector<1x40xf32>
    %cst_128 = arith.constant dense<0.000000e+00> : vector<1x104xf32>
    %519 = tpu.matmul %494, %6, %cst_128 {dimension_numbers = #tpu.dot_dimension_numbers<[1], [0], [0], [1], [0, 0, 1, 1], [], []>} : vector<1x32xf32>, vector<32x104xf32>, vector<1x104xf32> -> vector<1x104xf32>
    %520 = arith.addf %519, %7 : vector<1x104xf32>
    %521 = vector.extract_strided_slice %518 {offsets = [0, 32], sizes = [1, 8], strides = [1, 1]} : vector<1x40xf32> to vector<1x8xf32>
    %522 = vector.extract_strided_slice %520 {offsets = [0, 96], sizes = [1, 8], strides = [1, 1]} : vector<1x104xf32> to vector<1x8xf32>
    %523 = arith.addf %521, %522 : vector<1x8xf32>
    %cst_129 = arith.constant dense<0xFF800000> : vector<1xf32>
    %524 = vector.multi_reduction <maximumf>, %523, %cst_129 [1] : vector<1x8xf32> to vector<1xf32>
    %525 = vector.shape_cast %524 : vector<1xf32> to vector<1x1xf32>
    %526 = vector.broadcast %525 : vector<1x1xf32> to vector<1x8xf32>
    %527 = arith.subf %523, %526 : vector<1x8xf32>
    %528 = math.exp %527 : vector<1x8xf32>
    %cst_130 = arith.constant dense<0.000000e+00> : vector<1xf32>
    %529 = vector.multi_reduction <add>, %528, %cst_130 [1] : vector<1x8xf32> to vector<1xf32>
    %530 = vector.shape_cast %529 : vector<1xf32> to vector<1x1xf32>
    %531 = tpu.reciprocal %530 {approx = true} : vector<1x1xf32> -> vector<1x1xf32>
    %532 = arith.mulf %530, %531 : vector<1x1xf32>
    %cst_131 = arith.constant 2.000000e+00 : f32
    %533 = vector.broadcast %cst_131 : f32 to vector<1x1xf32>
    %534 = arith.subf %533, %532 : vector<1x1xf32>
    %535 = arith.mulf %531, %534 : vector<1x1xf32>
    %536 = vector.broadcast %535 : vector<1x1xf32> to vector<1x8xf32>
    %537 = arith.mulf %528, %536 : vector<1x8xf32>
    %538 = vector.extract_strided_slice %518 {offsets = [0, 0], sizes = [1, 32], strides = [1, 1]} : vector<1x40xf32> to vector<1x32xf32>
    %cst_132 = arith.constant dense<0.000000e+00> : vector<1x32xf32>
    %539 = tpu.matmul %537, %8, %cst_132 {dimension_numbers = #tpu.dot_dimension_numbers<[1], [0], [0], [1], [0, 0, 1, 1], [], []>} : vector<1x8xf32>, vector<8x32xf32>, vector<1x32xf32> -> vector<1x32xf32>
    %540 = arith.addf %538, %539 : vector<1x32xf32>
    %cst_133 = arith.constant 0.000000e+00 : f32
    %541 = vector.broadcast %cst_133 : f32 to vector<1x32xf32>
    %542 = arith.maximumf %540, %541 : vector<1x32xf32>
    %cst_134 = arith.constant dense<0.000000e+00> : vector<1x96xf32>
    %543 = tpu.matmul %542, %9, %cst_134 {dimension_numbers = #tpu.dot_dimension_numbers<[1], [0], [0], [1], [0, 0, 1, 1], [], []>} : vector<1x32xf32>, vector<32x96xf32>, vector<1x96xf32> -> vector<1x96xf32>
    %544 = arith.addf %543, %10 : vector<1x96xf32>
    %545 = vector.extract_strided_slice %520 {offsets = [0, 0], sizes = [1, 96], strides = [1, 1]} : vector<1x104xf32> to vector<1x96xf32>
    %546 = vector.extract_strided_slice %544 {offsets = [0, 0], sizes = [1, 64], strides = [1, 1]} : vector<1x96xf32> to vector<1x64xf32>
    %547 = vector.extract_strided_slice %545 {offsets = [0, 0], sizes = [1, 64], strides = [1, 1]} : vector<1x96xf32> to vector<1x64xf32>
    %548 = arith.addf %546, %547 : vector<1x64xf32>
    %549 = arith.negf %548 : vector<1x64xf32>
    %550 = math.exp %549 : vector<1x64xf32>
    %cst_135 = arith.constant 1.000000e+00 : f32
    %551 = vector.broadcast %cst_135 : f32 to vector<1x64xf32>
    %552 = arith.addf %551, %550 : vector<1x64xf32>
    %553 = arith.divf %551, %552 : vector<1x64xf32>
    %554 = vector.extract_strided_slice %553 {offsets = [0, 0], sizes = [1, 32], strides = [1, 1]} : vector<1x64xf32> to vector<1x32xf32>
    %555 = vector.extract_strided_slice %553 {offsets = [0, 32], sizes = [1, 32], strides = [1, 1]} : vector<1x64xf32> to vector<1x32xf32>
    %556 = vector.extract_strided_slice %544 {offsets = [0, 64], sizes = [1, 32], strides = [1, 1]} : vector<1x96xf32> to vector<1x32xf32>
    %557 = vector.extract_strided_slice %545 {offsets = [0, 64], sizes = [1, 32], strides = [1, 1]} : vector<1x96xf32> to vector<1x32xf32>
    %558 = arith.mulf %554, %557 : vector<1x32xf32>
    %559 = arith.addf %556, %558 : vector<1x32xf32>
    %560 = math.tanh %559 : vector<1x32xf32>
    %cst_136 = arith.constant 1.000000e+00 : f32
    %561 = vector.broadcast %cst_136 : f32 to vector<1x32xf32>
    %562 = arith.subf %561, %555 : vector<1x32xf32>
    %563 = arith.mulf %562, %560 : vector<1x32xf32>
    %564 = arith.mulf %555, %494 : vector<1x32xf32>
    %565 = arith.addf %563, %564 : vector<1x32xf32>
    %cst_137 = arith.constant dense<0.000000e+00> : vector<1x64xf32>
    %566 = tpu.matmul %565, %11, %cst_137 {dimension_numbers = #tpu.dot_dimension_numbers<[1], [0], [0], [1], [0, 0, 1, 1], [], []>} : vector<1x32xf32>, vector<32x64xf32>, vector<1x64xf32> -> vector<1x64xf32>
    %567 = arith.addf %566, %12 : vector<1x64xf32>
    %cst_138 = arith.constant dense<0xFF800000> : vector<1xf32>
    %568 = vector.multi_reduction <maximumf>, %567, %cst_138 [1] : vector<1x64xf32> to vector<1xf32>
    %569 = vector.shape_cast %568 : vector<1xf32> to vector<1x1xf32>
    %570 = vector.broadcast %569 : vector<1x1xf32> to vector<1x64xf32>
    %571 = arith.subf %567, %570 : vector<1x64xf32>
    %572 = math.exp %571 : vector<1x64xf32>
    %cst_139 = arith.constant dense<0.000000e+00> : vector<1xf32>
    %573 = vector.multi_reduction <add>, %572, %cst_139 [1] : vector<1x64xf32> to vector<1xf32>
    %574 = vector.shape_cast %573 : vector<1xf32> to vector<1x1xf32>
    %575 = math.log %574 : vector<1x1xf32>
    %576 = vector.broadcast %569 : vector<1x1xf32> to vector<1x64xf32>
    %577 = arith.subf %567, %576 : vector<1x64xf32>
    %578 = vector.broadcast %575 : vector<1x1xf32> to vector<1x64xf32>
    %579 = arith.subf %577, %578 : vector<1x64xf32>
    %580 = tpu.concatenate %579, %565, %537, %13 in 1 : vector<1x64xf32>, vector<1x32xf32>, vector<1x8xf32>, vector<1x24xf32> -> vector<1x128xf32>
    %581 = arith.index_cast %c7_i32 : i32 to index
    %c0_140 = arith.constant 0 : index
    %582 = vector.load %arg13[%581, %c0_140] : memref<8x128xf32, #tpu.memory_space<vmem>>, vector<1x128xf32>
    tpu.vector_store %arg13[%581, %c0_140], %580 {strides = array<i32>} : memref<8x128xf32, #tpu.memory_space<vmem>>, vector<1x128xf32>,
    %c8_i32_141 = arith.constant 8 : i32
    %c0_142 = arith.constant 0 : index
    %c0_143 = arith.constant 0 : index
    %583 = vector.load %arg14[%c0_142, %c0_143] : memref<1x32xf32, #tpu.memory_space<vmem>>, vector<1x32xf32>
    tpu.vector_store %arg14[%c0_142, %c0_143], %565 {strides = array<i32>} : memref<1x32xf32, #tpu.memory_space<vmem>>, vector<1x32xf32>,
    return
  }
  func.func @transform_0(%arg0: i32, %arg1: memref<16xi32, #tpu.memory_space<smem>>) -> (i32, i32) {
    %c0_i32 = arith.constant 0 : i32
    %c0_i32_0 = arith.constant 0 : i32
    %c0_i32_1 = arith.constant 0 : i32
    return %c0_i32, %c0_i32_0 : i32, i32
  }
  func.func @transform_1(%arg0: i32, %arg1: memref<16xi32, #tpu.memory_space<smem>>) -> (i32, i32) {
    %c0_i32 = arith.constant 0 : i32
    %c0_i32_0 = arith.constant 0 : i32
    %c0_i32_1 = arith.constant 0 : i32
    return %c0_i32, %c0_i32_0 : i32, i32
  }
  func.func @transform_2(%arg0: i32, %arg1: memref<16xi32, #tpu.memory_space<smem>>) -> (i32, i32) {
    %c0_i32 = arith.constant 0 : i32
    %c0_i32_0 = arith.constant 0 : i32
    %c0_i32_1 = arith.constant 0 : i32
    return %c0_i32, %c0_i32_0 : i32, i32
  }
  func.func @transform_3(%arg0: i32, %arg1: memref<16xi32, #tpu.memory_space<smem>>) -> (i32, i32) {
    %c0_i32 = arith.constant 0 : i32
    %c0_i32_0 = arith.constant 0 : i32
    %c0_i32_1 = arith.constant 0 : i32
    return %c0_i32, %c0_i32_0 : i32, i32
  }
  func.func @transform_4(%arg0: i32, %arg1: memref<16xi32, #tpu.memory_space<smem>>) -> (i32, i32) {
    %c0_i32 = arith.constant 0 : i32
    %c0_i32_0 = arith.constant 0 : i32
    %c0_i32_1 = arith.constant 0 : i32
    return %c0_i32, %c0_i32_0 : i32, i32
  }
  func.func @transform_5(%arg0: i32, %arg1: memref<16xi32, #tpu.memory_space<smem>>) -> (i32, i32) {
    %c0_i32 = arith.constant 0 : i32
    %c0_i32_0 = arith.constant 0 : i32
    %c0_i32_1 = arith.constant 0 : i32
    return %c0_i32, %c0_i32_0 : i32, i32
  }
  func.func @transform_6(%arg0: i32, %arg1: memref<16xi32, #tpu.memory_space<smem>>) -> (i32, i32) {
    %c0_i32 = arith.constant 0 : i32
    %c0_i32_0 = arith.constant 0 : i32
    %c0_i32_1 = arith.constant 0 : i32
    return %c0_i32, %c0_i32_0 : i32, i32
  }
  func.func @transform_7(%arg0: i32, %arg1: memref<16xi32, #tpu.memory_space<smem>>) -> (i32, i32) {
    %c0_i32 = arith.constant 0 : i32
    %c0_i32_0 = arith.constant 0 : i32
    %c0_i32_1 = arith.constant 0 : i32
    return %c0_i32, %c0_i32_0 : i32, i32
  }
  func.func @transform_8(%arg0: i32, %arg1: memref<16xi32, #tpu.memory_space<smem>>) -> (i32, i32) {
    %c0_i32 = arith.constant 0 : i32
    %c0_i32_0 = arith.constant 0 : i32
    %c0_i32_1 = arith.constant 0 : i32
    return %c0_i32, %c0_i32_0 : i32, i32
  }
  func.func @transform_9(%arg0: i32, %arg1: memref<16xi32, #tpu.memory_space<smem>>) -> (i32, i32) {
    %c0_i32 = arith.constant 0 : i32
    %c0_i32_0 = arith.constant 0 : i32
    %c0_i32_1 = arith.constant 0 : i32
    return %c0_i32, %c0_i32_0 : i32, i32
  }
  func.func @transform_10(%arg0: i32, %arg1: memref<16xi32, #tpu.memory_space<smem>>) -> (i32, i32) {
    %c0_i32 = arith.constant 0 : i32
    %c0_i32_0 = arith.constant 0 : i32
    %c0_i32_1 = arith.constant 0 : i32
    return %c0_i32, %c0_i32_0 : i32, i32
  }
  func.func @transform_11(%arg0: i32, %arg1: memref<16xi32, #tpu.memory_space<smem>>) -> (i32, i32) {
    %c0_i32 = arith.constant 0 : i32
    %c0_i32_0 = arith.constant 0 : i32
    return %arg0, %c0_i32 : i32, i32
  }
}

</mosaic_0001>

<llo_original>
// kernel: attn_decoder_decode.1
$region0: #{attn_decoder_decode.1}
  #allocation0 [shape = 'u32[]', space=smem, size = 0x4, offset = 0x4, fixed_abs, tag = 'smem constant byte address 0x4 - core index']
  #allocation1 [shape = 'u32[144,128]{1,0:T(1,128)}', space=vmem, size = 0x12000, scoped, tag = 'internal scratch']
  #allocation2 [shape = 'f32[1,32]{1,0:T(1,128)}', space=vmem, size = 0x200, scoped, tag = 'scratch operand']
  #allocation3 [shape = 's32[1]{0}', space=sflag, size = 0x4, scoped, tag = 'scoped memory for attn_decoder_decode.1']
  #allocation4 [shape = 'u8[512]{0}', space=smem, size = 0x200, scoped, tag = 'prefetched SMEM operand 0']
  %s0 = inlined_call_operand.vmem [shape: s32[16], index: 0, kind: input, shape index: {}]
  %s1 = inlined_call_operand.vmem [shape: f32[64,32], index: 1, kind: input, shape index: {}]
  %s2 = inlined_call_operand.vmem [shape: f32[1,32], index: 2, kind: input, shape index: {}]
  %s3 = inlined_call_operand.vmem [shape: f32[8,32], index: 3, kind: input, shape index: {}]
  %s4 = inlined_call_operand.vmem [shape: f32[32,40], index: 4, kind: input, shape index: {}]
  %s5 = inlined_call_operand.vmem [shape: f32[1,40], index: 5, kind: input, shape index: {}]
  %s6 = inlined_call_operand.vmem [shape: f32[32,104], index: 6, kind: input, shape index: {}]
  %s7 = inlined_call_operand.vmem [shape: f32[1,104], index: 7, kind: input, shape index: {}]
  %s8 = inlined_call_operand.vmem [shape: f32[32,96], index: 8, kind: input, shape index: {}]
  %s9 = inlined_call_operand.vmem [shape: f32[1,96], index: 9, kind: input, shape index: {}]
  %s10 = inlined_call_operand.vmem [shape: f32[32,64], index: 10, kind: input, shape index: {}]
  %s11 = inlined_call_operand.vmem [shape: f32[1,64], index: 11, kind: input, shape index: {}]
  %s12 = inlined_call_operand.vmem [shape: f32[16,128], index: 12, kind: output, shape index: {}]
  %s13 = sld [smem:[#allocation0]]
  $region81: #{attn_decoder_decode.1} parent=0
    _
  %s15 = ssub.s32 1, %s13
  %s16 = scalar_select 0, %s15, %s13
  %s17 = sshll.u32 %s0, 4
  %s18 = int_to_ptr.vmem [resolvable:$true] %s17
  %20 = dma.vmem_to_smem %s18, 16, [#allocation4], [#allocation3]
  %21 = dma.done [#allocation3], 16
  %22 = sfence
  loop: start=0, step=1, limit=4
  $region2: #{attn_decoder_decode.1} parent=0 // loop_pre_header
    _
  $region3: #{attn_decoder_decode.1} parent=0 // loop_header
    %s24 = sphi 0, %s28
    %p25 = scmp.ge.s32.totalorder %s24, 4
    %s32 = sphi 0, %s32
    %s34 = sphi 0, %s32
    %s35 = sphi 0, %s34
    %s49 = sphi 0, %s35
    %s53 = sphi 0, %s53
    %s55 = sphi 0, %s53
    %s56 = sphi 0, %s55
    %s70 = sphi 0, %s56
    %s74 = sphi 0, %s74
    %s76 = sphi 0, %s74
    %s77 = sphi 0, %s76
    %s91 = sphi 0, %s77
    %s95 = sphi 0, %s95
    %s97 = sphi 0, %s95
    %s98 = sphi 0, %s97
    %s112 = sphi 0, %s98
    %s116 = sphi 0, %s116
    %s118 = sphi 0, %s116
    %s119 = sphi 0, %s118
    %s133 = sphi 0, %s119
    %s137 = sphi 0, %s137
    %s139 = sphi 0, %s137
    %s140 = sphi 0, %s139
    %s154 = sphi 0, %s140
    %s158 = sphi 0, %s158
    %s160 = sphi 0, %s158
    %s161 = sphi 0, %s160
    %s175 = sphi 0, %s161
    %s179 = sphi 0, %s179
    %s181 = sphi 0, %s179
    %s182 = sphi 0, %s181
    %s196 = sphi 0, %s182
    %s200 = sphi 0, %s200
    %s202 = sphi 0, %s200
    %s203 = sphi 0, %s202
    %s217 = sphi 0, %s203
    %s221 = sphi 0, %s221
    %s223 = sphi 0, %s221
    %s224 = sphi 0, %s223
    %s238 = sphi 0, %s224
    %s242 = sphi 0, %s242
    %s244 = sphi 0, %s242
    %s245 = sphi 0, %s244
    %s259 = sphi 0, %s245
    %s265 = sphi 0, %s267
    %s268 = sphi 0, %s265
    %s269 = sphi 0, %s268
    %s285 = sphi 0, %s269
  $region4: #{attn_decoder_decode.1} parent=0 // loop_header_branch
    %27 = sbr.rel (%p25) target = $region8
  $region5: #{attn_decoder_decode.1} parent=0 // loop_body
    %s29 = ssub.s32 %s24, 1
    %s30 = ssub.s32 %s24, 2
    %s31 = sadd.s32 %s24, 1
    %s33 = sadd.s32 %s32, 1
    %p36 = scmp.eq.s32.totalorder %s24, 1
    %p37 = scmp.ne.s32.totalorder %s32, %s34
    %p38 = scmp.eq.s32.totalorder %s24, 0
    %p39 = por %p37, %p38
    %p40 = scmp.ne.s32.totalorder %s32, %s34
    %p41 = scmp.eq.s32.totalorder %s29, 1
    %p42 = por %p40, %p41
    %p43 = scmp.ne.s32.totalorder %s34, %s35
    %p44 = scmp.eq.s32.totalorder %s29, 0
    %p45 = por %p43, %p44
    %p46 = scmp.ne.s32.totalorder %s34, %s35
    %p47 = scmp.eq.s32.totalorder %s30, 1
    %p48 = por %p46, %p47
    %p50 = scmp.ne.s32.totalorder %s35, %s49
    %p51 = scmp.eq.s32.totalorder %s30, 0
    %p52 = por %p50, %p51
    %s54 = sadd.s32 %s53, 1
    %p57 = scmp.eq.s32.totalorder %s24, 1
    %p58 = scmp.ne.s32.totalorder %s53, %s55
    %p59 = scmp.eq.s32.totalorder %s24, 0
    %p60 = por %p58, %p59
    %p61 = scmp.ne.s32.totalorder %s53, %s55
    %p62 = scmp.eq.s32.totalorder %s29, 1
    %p63 = por %p61, %p62
    %p64 = scmp.ne.s32.totalorder %s55, %s56
    %p65 = scmp.eq.s32.totalorder %s29, 0
    %p66 = por %p64, %p65
    %p67 = scmp.ne.s32.totalorder %s55, %s56
    %p68 = scmp.eq.s32.totalorder %s30, 1
    %p69 = por %p67, %p68
    %p71 = scmp.ne.s32.totalorder %s56, %s70
    %p72 = scmp.eq.s32.totalorder %s30, 0
    %p73 = por %p71, %p72
    %s75 = sadd.s32 %s74, 1
    %p78 = scmp.eq.s32.totalorder %s24, 1
    %p79 = scmp.ne.s32.totalorder %s74, %s76
    %p80 = scmp.eq.s32.totalorder %s24, 0
    %p81 = por %p79, %p80
    %p82 = scmp.ne.s32.totalorder %s74, %s76
    %p83 = scmp.eq.s32.totalorder %s29, 1
    %p84 = por %p82, %p83
    %p85 = scmp.ne.s32.totalorder %s76, %s77
    %p86 = scmp.eq.s32.totalorder %s29, 0
    %p87 = por %p85, %p86
    %p88 = scmp.ne.s32.totalorder %s76, %s77
    %p89 = scmp.eq.s32.totalorder %s30, 1
    %p90 = por %p88, %p89
    %p92 = scmp.ne.s32.totalorder %s77, %s91
    %p93 = scmp.eq.s32.totalorder %s30, 0
    %p94 = por %p92, %p93
    %s96 = sadd.s32 %s95, 1
    %p99 = scmp.eq.s32.totalorder %s24, 1
    %p100 = scmp.ne.s32.totalorder %s95, %s97
    %p101 = scmp.eq.s32.totalorder %s24, 0
    %p102 = por %p100, %p101
    %p103 = scmp.ne.s32.totalorder %s95, %s97
    %p104 = scmp.eq.s32.totalorder %s29, 1
    %p105 = por %p103, %p104
    %p106 = scmp.ne.s32.totalorder %s97, %s98
    %p107 = scmp.eq.s32.totalorder %s29, 0
    %p108 = por %p106, %p107
    %p109 = scmp.ne.s32.totalorder %s97, %s98
    %p110 = scmp.eq.s32.totalorder %s30, 1
    %p111 = por %p109, %p110
    %p113 = scmp.ne.s32.totalorder %s98, %s112
    %p114 = scmp.eq.s32.totalorder %s30, 0
    %p115 = por %p113, %p114
    %s117 = sadd.s32 %s116, 1
    %p120 = scmp.eq.s32.totalorder %s24, 1
    %p121 = scmp.ne.s32.totalorder %s116, %s118
    %p122 = scmp.eq.s32.totalorder %s24, 0
    %p123 = por %p121, %p122
    %p124 = scmp.ne.s32.totalorder %s116, %s118
    %p125 = scmp.eq.s32.totalorder %s29, 1
    %p126 = por %p124, %p125
    %p127 = scmp.ne.s32.totalorder %s118, %s119
    %p128 = scmp.eq.s32.totalorder %s29, 0
    %p129 = por %p127, %p128
    %p130 = scmp.ne.s32.totalorder %s118, %s119
    %p131 = scmp.eq.s32.totalorder %s30, 1
    %p132 = por %p130, %p131
    %p134 = scmp.ne.s32.totalorder %s119, %s133
    %p135 = scmp.eq.s32.totalorder %s30, 0
    %p136 = por %p134, %p135
    %s138 = sadd.s32 %s137, 1
    %p141 = scmp.eq.s32.totalorder %s24, 1
    %p142 = scmp.ne.s32.totalorder %s137, %s139
    %p143 = scmp.eq.s32.totalorder %s24, 0
    %p144 = por %p142, %p143
    %p145 = scmp.ne.s32.totalorder %s137, %s139
    %p146 = scmp.eq.s32.totalorder %s29, 1
    %p147 = por %p145, %p146
    %p148 = scmp.ne.s32.totalorder %s139, %s140
    %p149 = scmp.eq.s32.totalorder %s29, 0
    %p150 = por %p148, %p149
    %p151 = scmp.ne.s32.totalorder %s139, %s140
    %p152 = scmp.eq.s32.totalorder %s30, 1
    %p153 = por %p151, %p152
    %p155 = scmp.ne.s32.totalorder %s140, %s154
    %p156 = scmp.eq.s32.totalorder %s30, 0
    %p157 = por %p155, %p156
    %s159 = sadd.s32 %s158, 1
    %p162 = scmp.eq.s32.totalorder %s24, 1
    %p163 = scmp.ne.s32.totalorder %s158, %s160
    %p164 = scmp.eq.s32.totalorder %s24, 0
    %p165 = por %p163, %p164
    %p166 = scmp.ne.s32.totalorder %s158, %s160
    %p167 = scmp.eq.s32.totalorder %s29, 1
    %p168 = por %p166, %p167
    %p169 = scmp.ne.s32.totalorder %s160, %s161
    %p170 = scmp.eq.s32.totalorder %s29, 0
    %p171 = por %p169, %p170
    %p172 = scmp.ne.s32.totalorder %s160, %s161
    %p173 = scmp.eq.s32.totalorder %s30, 1
    %p174 = por %p172, %p173
    %p176 = scmp.ne.s32.totalorder %s161, %s175
    %p177 = scmp.eq.s32.totalorder %s30, 0
    %p178 = por %p176, %p177
    %s180 = sadd.s32 %s179, 1
    %p183 = scmp.eq.s32.totalorder %s24, 1
    %p184 = scmp.ne.s32.totalorder %s179, %s181
    %p185 = scmp.eq.s32.totalorder %s24, 0
    %p186 = por %p184, %p185
    %p187 = scmp.ne.s32.totalorder %s179, %s181
    %p188 = scmp.eq.s32.totalorder %s29, 1
    %p189 = por %p187, %p188
    %p190 = scmp.ne.s32.totalorder %s181, %s182
    %p191 = scmp.eq.s32.totalorder %s29, 0
    %p192 = por %p190, %p191
    %p193 = scmp.ne.s32.totalorder %s181, %s182
    %p194 = scmp.eq.s32.totalorder %s30, 1
    %p195 = por %p193, %p194
    %p197 = scmp.ne.s32.totalorder %s182, %s196
    %p198 = scmp.eq.s32.totalorder %s30, 0
    %p199 = por %p197, %p198
    %s201 = sadd.s32 %s200, 1
    %p204 = scmp.eq.s32.totalorder %s24, 1
    %p205 = scmp.ne.s32.totalorder %s200, %s202
    %p206 = scmp.eq.s32.totalorder %s24, 0
    %p207 = por %p205, %p206
    %p208 = scmp.ne.s32.totalorder %s200, %s202
    %p209 = scmp.eq.s32.totalorder %s29, 1
    %p210 = por %p208, %p209
    %p211 = scmp.ne.s32.totalorder %s202, %s203
    %p212 = scmp.eq.s32.totalorder %s29, 0
    %p213 = por %p211, %p212
    %p214 = scmp.ne.s32.totalorder %s202, %s203
    %p215 = scmp.eq.s32.totalorder %s30, 1
    %p216 = por %p214, %p215
    %p218 = scmp.ne.s32.totalorder %s203, %s217
    %p219 = scmp.eq.s32.totalorder %s30, 0
    %p220 = por %p218, %p219
    %s222 = sadd.s32 %s221, 1
    %p225 = scmp.eq.s32.totalorder %s24, 1
    %p226 = scmp.ne.s32.totalorder %s221, %s223
    %p227 = scmp.eq.s32.totalorder %s24, 0
    %p228 = por %p226, %p227
    %p229 = scmp.ne.s32.totalorder %s221, %s223
    %p230 = scmp.eq.s32.totalorder %s29, 1
    %p231 = por %p229, %p230
    %p232 = scmp.ne.s32.totalorder %s223, %s224
    %p233 = scmp.eq.s32.totalorder %s29, 0
    %p234 = por %p232, %p233
    %p235 = scmp.ne.s32.totalorder %s223, %s224
    %p236 = scmp.eq.s32.totalorder %s30, 1
    %p237 = por %p235, %p236
    %p239 = scmp.ne.s32.totalorder %s224, %s238
    %p240 = scmp.eq.s32.totalorder %s30, 0
    %p241 = por %p239, %p240
    %s243 = sadd.s32 %s242, 1
    %p246 = scmp.eq.s32.totalorder %s24, 1
    %p247 = scmp.ne.s32.totalorder %s242, %s244
    %p248 = scmp.eq.s32.totalorder %s24, 0
    %p249 = por %p247, %p248
    %p250 = scmp.ne.s32.totalorder %s242, %s244
    %p251 = scmp.eq.s32.totalorder %s29, 1
    %p252 = por %p250, %p251
    %p253 = scmp.ne.s32.totalorder %s244, %s245
    %p254 = scmp.eq.s32.totalorder %s29, 0
    %p255 = por %p253, %p254
    %p256 = scmp.ne.s32.totalorder %s244, %s245
    %p257 = scmp.eq.s32.totalorder %s30, 1
    %p258 = por %p256, %p257
    %p260 = scmp.ne.s32.totalorder %s245, %s259
    %p261 = scmp.eq.s32.totalorder %s30, 0
    %p262 = por %p260, %p261
    %s263 = ssub.s32 %s24, %s31
    %p264 = scmp.eq.s32.totalorder %s263, 0
    %s266 = sadd.s32 %s265, 1
    %s267 = scalar_select %p264, %s265, %s266
    %p270 = pneg %p264
    %p271 = scmp.eq.s32.totalorder %s24, 1
    %p272 = por %p270, %p271
    %p273 = scmp.ne.s32.totalorder %s265, %s268
    %p274 = scmp.eq.s32.totalorder %s24, 0
    %p275 = por %p273, %p274
    %p276 = scmp.ne.s32.totalorder %s265, %s268
    %p277 = scmp.eq.s32.totalorder %s29, 1
    %p278 = por %p276, %p277
    %p279 = scmp.ne.s32.totalorder %s268, %s269
    %p280 = scmp.eq.s32.totalorder %s29, 0
    %p281 = por %p279, %p280
    %p282 = scmp.ne.s32.totalorder %s268, %s269
    %p283 = scmp.eq.s32.totalorder %s30, 1
    %p284 = por %p282, %p283
    %p286 = scmp.ne.s32.totalorder %s269, %s285
    %p287 = scmp.eq.s32.totalorder %s30, 0
    %p288 = por %p286, %p287
    %p289 = scmp.le.s32.totalorder 1, %s24
    %p290 = scmp.lt.s32.totalorder %s24, 3
    %p291 = pnand %p289, %p290
    %p292 = pneg %p291
    // Predicated region
    $region9: #{attn_decoder_decode.1} parent=5 // pred_check
      _
    $region10: #{attn_decoder_decode.1} parent=5 // pred_check_branch
      %294 = sbr.rel (%p291) target = $region12
    $region11: #{attn_decoder_decode.1} parent=5 // pred_region
      %s295 = ssub.s32 %s24, 1
      // Predicated region
      $region13: #{attn_decoder_decode.1} parent=11 // pred_check
        %p296 = pneg %p45
      $region14: #{attn_decoder_decode.1} parent=11 // pred_check_branch
        %298 = sbr.rel (%p296) target = $region16
      $region15: #{attn_decoder_decode.1} parent=11 // pred_region
        _
      $region16: #{attn_decoder_decode.1} parent=11 // pred_fallthru
        _
      // Predicated region
      $region17: #{attn_decoder_decode.1} parent=11 // pred_check
        %p299 = pneg %p66
      $region18: #{attn_decoder_decode.1} parent=11 // pred_check_branch
        %301 = sbr.rel (%p299) target = $region20
      $region19: #{attn_decoder_decode.1} parent=11 // pred_region
        _
      $region20: #{attn_decoder_decode.1} parent=11 // pred_fallthru
        _
      // Predicated region
      $region21: #{attn_decoder_decode.1} parent=11 // pred_check
        %p302 = pneg %p87
      $region22: #{attn_decoder_decode.1} parent=11 // pred_check_branch
        %304 = sbr.rel (%p302) target = $region24
      $region23: #{attn_decoder_decode.1} parent=11 // pred_region
        _
      $region24: #{attn_decoder_decode.1} parent=11 // pred_fallthru
        _
      // Predicated region
      $region25: #{attn_decoder_decode.1} parent=11 // pred_check
        %p305 = pneg %p108
      $region26: #{attn_decoder_decode.1} parent=11 // pred_check_branch
        %307 = sbr.rel (%p305) target = $region28
      $region27: #{attn_decoder_decode.1} parent=11 // pred_region
        _
      $region28: #{attn_decoder_decode.1} parent=11 // pred_fallthru
        _
      // Predicated region
      $region29: #{attn_decoder_decode.1} parent=11 // pred_check
        %p308 = pneg %p129
      $region30: #{attn_decoder_decode.1} parent=11 // pred_check_branch
        %310 = sbr.rel (%p308) target = $region32
      $region31: #{attn_decoder_decode.1} parent=11 // pred_region
        _
      $region32: #{attn_decoder_decode.1} parent=11 // pred_fallthru
        _
      // Predicated region
      $region33: #{attn_decoder_decode.1} parent=11 // pred_check
        %p311 = pneg %p150
      $region34: #{attn_decoder_decode.1} parent=11 // pred_check_branch
        %313 = sbr.rel (%p311) target = $region36
      $region35: #{attn_decoder_decode.1} parent=11 // pred_region
        _
      $region36: #{attn_decoder_decode.1} parent=11 // pred_fallthru
        _
      // Predicated region
      $region37: #{attn_decoder_decode.1} parent=11 // pred_check
        %p314 = pneg %p171
      $region38: #{attn_decoder_decode.1} parent=11 // pred_check_branch
        %316 = sbr.rel (%p314) target = $region40
      $region39: #{attn_decoder_decode.1} parent=11 // pred_region
        _
      $region40: #{attn_decoder_decode.1} parent=11 // pred_fallthru
        _
      // Predicated region
      $region41: #{attn_decoder_decode.1} parent=11 // pred_check
        %p317 = pneg %p192
      $region42: #{attn_decoder_decode.1} parent=11 // pred_check_branch
        %319 = sbr.rel (%p317) target = $region44
      $region43: #{attn_decoder_decode.1} parent=11 // pred_region
        _
      $region44: #{attn_decoder_decode.1} parent=11 // pred_fallthru
        _
      // Predicated region
      $region45: #{attn_decoder_decode.1} parent=11 // pred_check
        %p320 = pneg %p213
      $region46: #{attn_decoder_decode.1} parent=11 // pred_check_branch
        %322 = sbr.rel (%p320) target = $region48
      $region47: #{attn_decoder_decode.1} parent=11 // pred_region
        _
      $region48: #{attn_decoder_decode.1} parent=11 // pred_fallthru
        _
      // Predicated region
      $region49: #{attn_decoder_decode.1} parent=11 // pred_check
        %p323 = pneg %p234
      $region50: #{attn_decoder_decode.1} parent=11 // pred_check_branch
        %325 = sbr.rel (%p323) target = $region52
      $region51: #{attn_decoder_decode.1} parent=11 // pred_region
        _
      $region52: #{attn_decoder_decode.1} parent=11 // pred_fallthru
        _
      // Predicated region
      $region53: #{attn_decoder_decode.1} parent=11 // pred_check
        %p326 = pneg %p255
      $region54: #{attn_decoder_decode.1} parent=11 // pred_check_branch
        %328 = sbr.rel (%p326) target = $region56
      $region55: #{attn_decoder_decode.1} parent=11 // pred_region
        _
      $region56: #{attn_decoder_decode.1} parent=11 // pred_fallthru
        _
    $region12: #{attn_decoder_decode.1} parent=5 // pred_fallthru
      _
    %p329 = scmp.lt.s32.totalorder %s24, 2
    // Predicated region
    $region57: #{attn_decoder_decode.1} parent=5 // pred_check
      %p330 = pneg %p329
    $region58: #{attn_decoder_decode.1} parent=5 // pred_check_branch
      %332 = sbr.rel (%p330) target = $region60
    $region59: #{attn_decoder_decode.1} parent=5 // pred_region
      _
    $region60: #{attn_decoder_decode.1} parent=5 // pred_fallthru
      _
    %p333 = scmp.le.s32.totalorder 1, %s24
    %p334 = scmp.lt.s32.totalorder %s24, 3
    %p335 = pnand %p333, %p334
    %p336 = pneg %p335
    // Predicated region
    $region61: #{attn_decoder_decode.1} parent=5 // pred_check
      _
    $region62: #{attn_decoder_decode.1} parent=5 // pred_check_branch
      %338 = sbr.rel (%p335) target = $region64
    $region63: #{attn_decoder_decode.1} parent=5 // pred_region
      %s339 = ssub.s32 %s24, 1
      %p340 = pneg %p45
      %p341 = pneg %p42
      %p342 = pneg %p66
      %p343 = pneg %p63
      %p344 = pneg %p87
      %p345 = pneg %p84
      %p346 = pneg %p108
      %p347 = pneg %p105
      %p348 = pneg %p129
      %p349 = pneg %p126
      %p350 = pneg %p150
      %p351 = pneg %p147
      %p352 = pneg %p171
      %p353 = pneg %p168
      %p354 = pneg %p192
      %p355 = pneg %p189
      %p356 = pneg %p213
      %p357 = pneg %p210
      %p358 = pneg %p234
      %p359 = pneg %p231
      %p360 = pneg %p255
      %p361 = pneg %p252
      %p362 = pneg %p281
      %p363 = pneg %p278
      %p364 = scmp.lt.s32.totalorder %s29, 1
      %s365 = scalar_select %p364, %s29, 1
      %s366 = smul.addr %s365, 8
      %s367 = scalar_lea.vmem %s12, %s366
      %p368 = scmp.lt.s32.totalorder %s29, 1
      %s369 = scalar_select %p368, %s29, 1
      %s370 = smul.addr %s369, 8
      %s371 = scalar_lea.vmem %s12, %s370
      %s372 = smul.u32 %s29, 8
      %p373 = scmp.eq.s32.totalorder %s29, 0
      // Predicated region
      $region65: #{attn_decoder_decode.1} parent=63 // pred_check
        %p374 = pneg %p373
      $region66: #{attn_decoder_decode.1} parent=63 // pred_check_branch
        %376 = sbr.rel (%p374) target = $region68
      $region67: #{attn_decoder_decode.1} parent=63 // pred_region
        %v377 = vld [vmem:[%s2] sm:$0x1]
        %vm378 = vcmask 253952
        %379 = vst.msk [vmem:[#allocation2] sm:$0x1] %vm378, %v377
      $region68: #{attn_decoder_decode.1} parent=63 // pred_fallthru
        _
      %v380 = vld [vmem:[%s4] sm:$0xff]
      %v381 = vld [vmem:[%s4 + $0x8] sm:$0xff]
      %v382 = vld [vmem:[%s4 + $0x10] sm:$0xff]
      %v383 = vld [vmem:[%s4 + $0x18] sm:$0xff]
      %v384 = vld [vmem:[%s5] sm:$0x1]
      %v385 = vld [vmem:[%s6] sm:$0xff]
      %v386 = vld [vmem:[%s6 + $0x8] sm:$0xff]
      %v387 = vld [vmem:[%s6 + $0x10] sm:$0xff]
      %v388 = vld [vmem:[%s6 + $0x18] sm:$0xff]
      %v389 = vld [vmem:[%s7] sm:$0x1]
      %v390 = vld [vmem:[%s3] sm:$0xff]
      %v391 = vld [vmem:[%s8] sm:$0xff]
      %v392 = vld [vmem:[%s8 + $0x8] sm:$0xff]
      %v393 = vld [vmem:[%s8 + $0x10] sm:$0xff]
      %v394 = vld [vmem:[%s8 + $0x18] sm:$0xff]
      %v395 = vld [vmem:[%s9] sm:$0x1]
      %v396 = vld [vmem:[%s10] sm:$0xff]
      %v397 = vld [vmem:[%s10 + $0x8] sm:$0xff]
      %v398 = vld [vmem:[%s10 + $0x10] sm:$0xff]
      %v399 = vld [vmem:[%s10 + $0x18] sm:$0xff]
      %v400 = vld [vmem:[%s11] sm:$0x1]
      %v401 = vld [vmem:[#allocation2] sm:$0x1]
      %s402 = sld [smem:[#allocation4 + %s372]]
      %s403 = scalar_lea.vmem %s1, %s402
      %v404 = vld [vmem:[%s403] sm:$0x1]
      %vm405 = vcmask 261120
      %v407 = vsel %vm405, %v404, 0
      %409 = vmatprep.subr.mxu0 0.0
      %410 = vmatpush1.msra.mxu0 %v380
      %411 = vmatprep.subr.mxu0 0.0
      %412 = vmatpush1.msra.mxu0 %v381
      %413 = vmatprep.subr.mxu0 0.0
      %414 = vmatpush1.msra.mxu0 %v382
      %415 = vmatprep.subr.mxu0 0.0
      %416 = vmatpush1.msra.mxu0 %v383
      %417 = vmatprep.subr.mxu0 0.0
      %418 = vmatpush1.msra.mxu0 0.0
      %419 = vmatprep.subr.mxu0 0.0
      %420 = vmatpush1.msra.mxu0 0.0
      %421 = vmatprep.subr.mxu0 0.0
      %422 = vmatpush1.msra.mxu0 0.0
      %423 = vmatprep.subr.mxu0 0.0
      %424 = vmatpush1.msra.mxu0 0.0
      %425 = vmatprep.subr.mxu0 0.0
      %426 = vmatpush1.msra.mxu0 0.0
      %427 = vmatprep.subr.mxu0 0.0
      %428 = vmatpush1.msra.mxu0 0.0
      %429 = vmatprep.subr.mxu0 0.0
      %430 = vmatpush1.msra.mxu0 0.0
      %431 = vmatprep.subr.mxu0 0.0
      %432 = vmatpush1.msra.mxu0 0.0
      %433 = vmatprep.subr.mxu0 0.0
      %434 = vmatpush1.msra.mxu0 0.0
      %435 = vmatprep.subr.mxu0 0.0
      %436 = vmatpush1.msra.mxu0 0.0
      %437 = vmatprep.subr.mxu0 0.0
      %438 = vmatpush1.msra.mxu0 0.0
      %439 = vmatprep.subr.mxu0 0.0
      %440 = vmatpush1.msra.mxu0 0.0
      %441 = vmatprep.subr.mxu0 0.0
      %442 = vmatpush1.msra.mxu0 0.0
      %443 = vmatprep.subr.mxu0 0.0
      %444 = vmatpush1.msra.mxu0 0.0
      %445 = vmatprep.subr.mxu0 0.0
      %446 = vmatpush1.msra.mxu0 0.0
      %447 = vmatprep.subr.mxu0 0.0
      %448 = vmatpush1.msra.mxu0 0.0
      %449 = vmatprep.subr.mxu0 0.0
      %450 = vmatpush1.msra.mxu0 0.0
      %451 = vmatprep.subr.mxu0 0.0
      %452 = vmatpush1.msra.mxu0 0.0
      %453 = vmatprep.subr.mxu0 0.0
      %454 = vmatpush1.msra.mxu0 0.0
      %455 = vmatprep.subr.mxu0 0.0
      %456 = vmatpush1.msra.mxu0 0.0
      %457 = vmatprep.subr.mxu0 0.0
      %458 = vmatpush1.msra.mxu0 0.0
      %459 = vmatprep.subr.mxu0 0.0
      %460 = vmatpush1.msra.mxu0 0.0
      %461 = vmatprep.subr.mxu0 0.0
      %462 = vmatpush1.msra.mxu0 0.0
      %463 = vmatprep.subr.mxu0 0.0
      %464 = vmatpush1.msra.mxu0 0.0
      %465 = vmatprep.subr.mxu0 0.0
      %466 = vmatpush1.msra.mxu0 0.0
      %467 = vmatprep.subr.mxu0 0.0
      %468 = vmatpush1.msra.mxu0 0.0
      %469 = vmatprep.subr.mxu0 0.0
      %470 = vmatpush1.msra.mxu0 0.0
      %471 = vmatprep.subr.mxu0 0.0
      %472 = vmatpush1.msra.mxu0 0.0
      %473 = vmatprep.mubr.f32.mxu0 0.0
      %474 = vmatmul.mubr.f32.gmra.mrb[0].mxu0 %v407
      %v475 = vpop.f32.mrb[0].mxu0
      %v476 = vadd.f32 %v384, %v475
      %v477 = vpop.f32.mrb[0].mxu0
      %478 = vdwg.mxu0
      %v480 = vsel %vm405, %v401, 0
      %482 = vmatprep.subr.mxu0 0.0
      %483 = vmatpush1.msra.mxu0 %v385
      %484 = vmatprep.subr.mxu0 0.0
      %485 = vmatpush1.msra.mxu0 %v386
      %486 = vmatprep.subr.mxu0 0.0
      %487 = vmatpush1.msra.mxu0 %v387
      %488 = vmatprep.subr.mxu0 0.0
      %489 = vmatpush1.msra.mxu0 %v388
      %490 = vmatprep.subr.mxu0 0.0
      %491 = vmatpush1.msra.mxu0 0.0
      %492 = vmatprep.subr.mxu0 0.0
      %493 = vmatpush1.msra.mxu0 0.0
      %494 = vmatprep.subr.mxu0 0.0
      %495 = vmatpush1.msra.mxu0 0.0
      %496 = vmatprep.subr.mxu0 0.0
      %497 = vmatpush1.msra.mxu0 0.0
      %498 = vmatprep.subr.mxu0 0.0
      %499 = vmatpush1.msra.mxu0 0.0
      %500 = vmatprep.subr.mxu0 0.0
      %501 = vmatpush1.msra.mxu0 0.0
      %502 = vmatprep.subr.mxu0 0.0
      %503 = vmatpush1.msra.mxu0 0.0
      %504 = vmatprep.subr.mxu0 0.0
      %505 = vmatpush1.msra.mxu0 0.0
      %506 = vmatprep.subr.mxu0 0.0
      %507 = vmatpush1.msra.mxu0 0.0
      %508 = vmatprep.subr.mxu0 0.0
      %509 = vmatpush1.msra.mxu0 0.0
      %510 = vmatprep.subr.mxu0 0.0
      %511 = vmatpush1.msra.mxu0 0.0
      %512 = vmatprep.subr.mxu0 0.0
      %513 = vmatpush1.msra.mxu0 0.0
      %514 = vmatprep.subr.mxu0 0.0
      %515 = vmatpush1.msra.mxu0 0.0
      %516 = vmatprep.subr.mxu0 0.0
      %517 = vmatpush1.msra.mxu0 0.0
      %518 = vmatprep.subr.mxu0 0.0
      %519 = vmatpush1.msra.mxu0 0.0
      %520 = vmatprep.subr.mxu0 0.0
      %521 = vmatpush1.msra.mxu0 0.0
      %522 = vmatprep.subr.mxu0 0.0
      %523 = vmatpush1.msra.mxu0 0.0
      %524 = vmatprep.subr.mxu0 0.0
      %525 = vmatpush1.msra.mxu0 0.0
      %526 = vmatprep.subr.mxu0 0.0
      %527 = vmatpush1.msra.mxu0 0.0
      %528 = vmatprep.subr.mxu0 0.0
      %529 = vmatpush1.msra.mxu0 0.0
      %530 = vmatprep.subr.mxu0 0.0
      %531 = vmatpush1.msra.mxu0 0.0
      %532 = vmatprep.subr.mxu0 0.0
      %533 = vmatpush1.msra.mxu0 0.0
      %534 = vmatprep.subr.mxu0 0.0
      %535 = vmatpush1.msra.mxu0 0.0
      %536 = vmatprep.subr.mxu0 0.0
      %537 = vmatpush1.msra.mxu0 0.0
      %538 = vmatprep.subr.mxu0 0.0
      %539 = vmatpush1.msra.mxu0 0.0
      %540 = vmatprep.subr.mxu0 0.0
      %541 = vmatpush1.msra.mxu0 0.0
      %542 = vmatprep.subr.mxu0 0.0
      %543 = vmatpush1.msra.mxu0 0.0
      %544 = vmatprep.subr.mxu0 0.0
      %545 = vmatpush1.msra.mxu0 0.0
      %546 = vmatprep.mubr.f32.mxu0 0.0
      %547 = vmatmul.mubr.f32.gmra.mrb[0].mxu0 %v480
      %v548 = vpop.f32.mrb[0].mxu0
      %v549 = vadd.f32 %v389, %v548
      %v550 = vpop.f32.mrb[0].mxu0
      %551 = vdwg.mxu0
      %553 = vrot.lane.b32.xlu0 %v549, 64
      %v554 = vpop.permute.xlu0 %553
      %v556 = vadd.f32 %v476, %v554
      %vm557 = vcmask 319744
      %v558 = vsel %vm557, %v556, -inf
      %559 = vmax.xlane.f32.xlu0 %v558
      %v560 = vpop.xlane.xlu0 %559
      %v561 = vsub.f32 %v556, %v560
      %v562 = vmul.f32 %v561, 1.442695
      %v563 = vpow.pop %v562
      %565 = vrot.lane.b32.xlu0 %v563, 96
      %v566 = vpop.permute.xlu0 %565
      %vm568 = vcmask 57344
      %v569 = vsel %vm568, %v566, 0.0
      %570 = vadd.xlane.f32.xlu0 %v569
      %v571 = vpop.xlane.xlu0 %570
      %v572 = vrcp.pop %v571
      %v573 = vmul.f32 %v571, %v572
      %v574 = vsub.f32 2.0, %v573
      %v575 = vmul.f32 %v572, %v574
      %v576 = vmul.f32 %v563, %v575
      %578 = vrot.lane.b32.xlu0 %v576, 96
      %v579 = vpop.permute.xlu0 %578
      %vm580 = vcmask 64512
      %v581 = vsel %vm580, %v579, 0
      %583 = vmatprep.subr.mxu0 0.0
      %584 = vmatpush1.msra.mxu0 %v390
      %585 = vmatprep.subr.mxu0 0.0
      %586 = vmatpush1.msra.mxu0 0.0
      %587 = vmatprep.subr.mxu0 0.0
      %588 = vmatpush1.msra.mxu0 0.0
      %589 = vmatprep.subr.mxu0 0.0
      %590 = vmatpush1.msra.mxu0 0.0
      %591 = vmatprep.subr.mxu0 0.0
      %592 = vmatpush1.msra.mxu0 0.0
      %593 = vmatprep.subr.mxu0 0.0
      %594 = vmatpush1.msra.mxu0 0.0
      %595 = vmatprep.subr.mxu0 0.0
      %596 = vmatpush1.msra.mxu0 0.0
      %597 = vmatprep.subr.mxu0 0.0
      %598 = vmatpush1.msra.mxu0 0.0
      %599 = vmatprep.subr.mxu0 0.0
      %600 = vmatpush1.msra.mxu0 0.0
      %601 = vmatprep.subr.mxu0 0.0
      %602 = vmatpush1.msra.mxu0 0.0
      %603 = vmatprep.subr.mxu0 0.0
      %604 = vmatpush1.msra.mxu0 0.0
      %605 = vmatprep.subr.mxu0 0.0
      %606 = vmatpush1.msra.mxu0 0.0
      %607 = vmatprep.subr.mxu0 0.0
      %608 = vmatpush1.msra.mxu0 0.0
      %609 = vmatprep.subr.mxu0 0.0
      %610 = vmatpush1.msra.mxu0 0.0
      %611 = vmatprep.subr.mxu0 0.0
      %612 = vmatpush1.msra.mxu0 0.0
      %613 = vmatprep.subr.mxu0 0.0
      %614 = vmatpush1.msra.mxu0 0.0
      %615 = vmatprep.subr.mxu0 0.0
      %616 = vmatpush1.msra.mxu0 0.0
      %617 = vmatprep.subr.mxu0 0.0
      %618 = vmatpush1.msra.mxu0 0.0
      %619 = vmatprep.subr.mxu0 0.0
      %620 = vmatpush1.msra.mxu0 0.0
      %621 = vmatprep.subr.mxu0 0.0
      %622 = vmatpush1.msra.mxu0 0.0
      %623 = vmatprep.subr.mxu0 0.0
      %624 = vmatpush1.msra.mxu0 0.0
      %625 = vmatprep.subr.mxu0 0.0
      %626 = vmatpush1.msra.mxu0 0.0
      %627 = vmatprep.subr.mxu0 0.0
      %628 = vmatpush1.msra.mxu0 0.0
      %629 = vmatprep.subr.mxu0 0.0
      %630 = vmatpush1.msra.mxu0 0.0
      %631 = vmatprep.subr.mxu0 0.0
      %632 = vmatpush1.msra.mxu0 0.0
      %633 = vmatprep.subr.mxu0 0.0
      %634 = vmatpush1.msra.mxu0 0.0
      %635 = vmatprep.subr.mxu0 0.0
      %636 = vmatpush1.msra.mxu0 0.0
      %637 = vmatprep.subr.mxu0 0.0
      %638 = vmatpush1.msra.mxu0 0.0
      %639 = vmatprep.subr.mxu0 0.0
      %640 = vmatpush1.msra.mxu0 0.0
      %641 = vmatprep.subr.mxu0 0.0
      %642 = vmatpush1.msra.mxu0 0.0
      %643 = vmatprep.subr.mxu0 0.0
      %644 = vmatpush1.msra.mxu0 0.0
      %645 = vmatprep.subr.mxu0 0.0
      %646 = vmatpush1.msra.mxu0 0.0
      %647 = vmatprep.mubr.f32.mxu0 0.0
      %648 = vmatmul.mubr.f32.gmra.mrb[0].mxu0 %v581
      %v649 = vpop.f32.mrb[0].mxu0
      %v650 = vadd.f32 0.0, %v649
      %v651 = vpop.f32.mrb[0].mxu0
      %652 = vdwg.mxu0
      %v653 = vadd.f32 %v476, %v650
      %v654 = vmax.f32 %v653, 0.0
      %v656 = vsel %vm405, %v654, 0
      %658 = vmatprep.subr.mxu0 0.0
      %659 = vmatpush1.msra.mxu0 %v391
      %660 = vmatprep.subr.mxu0 0.0
      %661 = vmatpush1.msra.mxu0 %v392
      %662 = vmatprep.subr.mxu0 0.0
      %663 = vmatpush1.msra.mxu0 %v393
      %664 = vmatprep.subr.mxu0 0.0
      %665 = vmatpush1.msra.mxu0 %v394
      %666 = vmatprep.subr.mxu0 0.0
      %667 = vmatpush1.msra.mxu0 0.0
      %668 = vmatprep.subr.mxu0 0.0
      %669 = vmatpush1.msra.mxu0 0.0
      %670 = vmatprep.subr.mxu0 0.0
      %671 = vmatpush1.msra.mxu0 0.0
      %672 = vmatprep.subr.mxu0 0.0
      %673 = vmatpush1.msra.mxu0 0.0
      %674 = vmatprep.subr.mxu0 0.0
      %675 = vmatpush1.msra.mxu0 0.0
      %676 = vmatprep.subr.mxu0 0.0
      %677 = vmatpush1.msra.mxu0 0.0
      %678 = vmatprep.subr.mxu0 0.0
      %679 = vmatpush1.msra.mxu0 0.0
      %680 = vmatprep.subr.mxu0 0.0
      %681 = vmatpush1.msra.mxu0 0.0
      %682 = vmatprep.subr.mxu0 0.0
      %683 = vmatpush1.msra.mxu0 0.0
      %684 = vmatprep.subr.mxu0 0.0
      %685 = vmatpush1.msra.mxu0 0.0
      %686 = vmatprep.subr.mxu0 0.0
      %687 = vmatpush1.msra.mxu0 0.0
      %688 = vmatprep.subr.mxu0 0.0
      %689 = vmatpush1.msra.mxu0 0.0
      %690 = vmatprep.subr.mxu0 0.0
      %691 = vmatpush1.msra.mxu0 0.0
      %692 = vmatprep.subr.mxu0 0.0
      %693 = vmatpush1.msra.mxu0 0.0
      %694 = vmatprep.subr.mxu0 0.0
      %695 = vmatpush1.msra.mxu0 0.0
      %696 = vmatprep.subr.mxu0 0.0
      %697 = vmatpush1.msra.mxu0 0.0
      %698 = vmatprep.subr.mxu0 0.0
      %699 = vmatpush1.msra.mxu0 0.0
      %700 = vmatprep.subr.mxu0 0.0
      %701 = vmatpush1.msra.mxu0 0.0
      %702 = vmatprep.subr.mxu0 0.0
      %703 = vmatpush1.msra.mxu0 0.0
      %704 = vmatprep.subr.mxu0 0.0
      %705 = vmatpush1.msra.mxu0 0.0
      %706 = vmatprep.subr.mxu0 0.0
      %707 = vmatpush1.msra.mxu0 0.0
      %708 = vmatprep.subr.mxu0 0.0
      %709 = vmatpush1.msra.mxu0 0.0
      %710 = vmatprep.subr.mxu0 0.0
      %711 = vmatpush1.msra.mxu0 0.0
      %712 = vmatprep.subr.mxu0 0.0
      %713 = vmatpush1.msra.mxu0 0.0
      %714 = vmatprep.subr.mxu0 0.0
      %715 = vmatpush1.msra.mxu0 0.0
      %716 = vmatprep.subr.mxu0 0.0
      %717 = vmatpush1.msra.mxu0 0.0
      %718 = vmatprep.subr.mxu0 0.0
      %719 = vmatpush1.msra.mxu0 0.0
      %720 = vmatprep.subr.mxu0 0.0
      %721 = vmatpush1.msra.mxu0 0.0
      %722 = vmatprep.mubr.f32.mxu0 0.0
      %723 = vmatmul.mubr.f32.gmra.mrb[0].mxu0 %v656
      %v724 = vpop.f32.mrb[0].mxu0
      %v725 = vadd.f32 %v395, %v724
      %v726 = vpop.f32.mrb[0].mxu0
      %727 = vdwg.mxu0
      %v728 = vadd.f32 %v725, %v549
      %v729 = vxor.u32 %v728, 2147483648
      %v730 = vmul.f32 %v729, 1.442695
      %v731 = vpow.pop %v730
      %v732 = vadd.f32 %v731, 1.0
      %v733 = vrcp.pop %v732
      %v734 = vmul.f32 1.0, %v733
      %v735 = vmul.f32 %v734, %v554
      %737 = vrot.lane.b32.xlu0 %v735, 64
      %v738 = vpop.permute.xlu0 %737
      %v740 = vadd.f32 %v725, %v738
      %v741 = vtanh.pop %v740
      %v742 = vsub.f32 1.0, %v734
      %744 = vrot.lane.b32.xlu0 %v741, 96
      %v745 = vpop.permute.xlu0 %744
      %v747 = vmul.f32 %v742, %v745
      %v748 = vlaneseq
      %v749 = vshrl.u32 %v748, 7
      %v750 = vsub.s32 0, %v749
      %v751 = vrot.slane %v401, %v750
      %752 = vrot.lane.b32.xlu0 %v751, 32
      %v753 = vpop.permute.xlu0 %752
      %v755 = vmul.f32 %v734, %v753
      %v756 = vadd.f32 %v747, %v755
      %758 = vrot.lane.b32.xlu0 %v756, 96
      %v759 = vpop.permute.xlu0 %758
      %v760 = vsel %vm405, %v759, 0
      %762 = vmatprep.subr.mxu0 0.0
      %763 = vmatpush1.msra.mxu0 %v396
      %764 = vmatprep.subr.mxu0 0.0
      %765 = vmatpush1.msra.mxu0 %v397
      %766 = vmatprep.subr.mxu0 0.0
      %767 = vmatpush1.msra.mxu0 %v398
      %768 = vmatprep.subr.mxu0 0.0
      %769 = vmatpush1.msra.mxu0 %v399
      %770 = vmatprep.subr.mxu0 0.0
      %771 = vmatpush1.msra.mxu0 0.0
      %772 = vmatprep.subr.mxu0 0.0
      %773 = vmatpush1.msra.mxu0 0.0
      %774 = vmatprep.subr.mxu0 0.0
      %775 = vmatpush1.msra.mxu0 0.0
      %776 = vmatprep.subr.mxu0 0.0
      %777 = vmatpush1.msra.mxu0 0.0
      %778 = vmatprep.subr.mxu0 0.0
      %779 = vmatpush1.msra.mxu0 0.0
      %780 = vmatprep.subr.mxu0 0.0
      %781 = vmatpush1.msra.mxu0 0.0
      %782 = vmatprep.subr.mxu0 0.0
      %783 = vmatpush1.msra.mxu0 0.0
      %784 = vmatprep.subr.mxu0 0.0
      %785 = vmatpush1.msra.mxu0 0.0
      %786 = vmatprep.subr.mxu0 0.0
      %787 = vmatpush1.msra.mxu0 0.0
      %788 = vmatprep.subr.mxu0 0.0
      %789 = vmatpush1.msra.mxu0 0.0
      %790 = vmatprep.subr.mxu0 0.0
      %791 = vmatpush1.msra.mxu0 0.0
      %792 = vmatprep.subr.mxu0 0.0
      %793 = vmatpush1.msra.mxu0 0.0
      %794 = vmatprep.subr.mxu0 0.0
      %795 = vmatpush1.msra.mxu0 0.0
      %796 = vmatprep.subr.mxu0 0.0
      %797 = vmatpush1.msra.mxu0 0.0
      %798 = vmatprep.subr.mxu0 0.0
      %799 = vmatpush1.msra.mxu0 0.0
      %800 = vmatprep.subr.mxu0 0.0
      %801 = vmatpush1.msra.mxu0 0.0
      %802 = vmatprep.subr.mxu0 0.0
      %803 = vmatpush1.msra.mxu0 0.0
      %804 = vmatprep.subr.mxu0 0.0
      %805 = vmatpush1.msra.mxu0 0.0
      %806 = vmatprep.subr.mxu0 0.0
      %807 = vmatpush1.msra.mxu0 0.0
      %808 = vmatprep.subr.mxu0 0.0
      %809 = vmatpush1.msra.mxu0 0.0
      %810 = vmatprep.subr.mxu0 0.0
      %811 = vmatpush1.msra.mxu0 0.0
      %812 = vmatprep.subr.mxu0 0.0
      %813 = vmatpush1.msra.mxu0 0.0
      %814 = vmatprep.subr.mxu0 0.0
      %815 = vmatpush1.msra.mxu0 0.0
      %816 = vmatprep.subr.mxu0 0.0
      %817 = vmatpush1.msra.mxu0 0.0
      %818 = vmatprep.subr.mxu0 0.0
      %819 = vmatpush1.msra.mxu0 0.0
      %820 = vmatprep.subr.mxu0 0.0
      %821 = vmatpush1.msra.mxu0 0.0
      %822 = vmatprep.subr.mxu0 0.0
      %823 = vmatpush1.msra.mxu0 0.0
      %824 = vmatprep.subr.mxu0 0.0
      %825 = vmatpush1.msra.mxu0 0.0
      %826 = vmatprep.mubr.f32.mxu0 0.0
      %827 = vmatmul.mubr.f32.gmra.mrb[0].mxu0 %v760
      %v828 = vpop.f32.mrb[0].mxu0
      %v829 = vadd.f32 %v400, %v828
      %v830 = vpop.f32.mrb[0].mxu0
      %831 = vdwg.mxu0
      %vm832 = vcmask 516096
      %v833 = vsel %vm832, %v829, -inf
      %834 = vmax.xlane.f32.xlu0 %v833
      %v835 = vpop.xlane.xlu0 %834
      %v836 = vsub.f32 %v829, %v835
      %v837 = vmul.f32 %v836, 1.442695
      %v838 = vpow.pop %v837
      %v839 = vsel %vm832, %v838, 0.0
      %840 = vadd.xlane.f32.xlu0 %v839
      %v841 = vpop.xlane.xlu0 %840
      %v842 = vlog2.pop %v841
      %v843 = vmul.f32 %v842, 0.6931472
      %v844 = vsub.f32 %v836, %v843
      %845 = vrot.lane.b32.xlu0 %v756, 32
      %v846 = vpop.permute.xlu0 %845
      %848 = vrot.lane.b32.xlu0 %v576, 64
      %v849 = vpop.permute.xlu0 %848
      %vm851 = vcmask 523264
      %v852 = vsel %vm851, %v844, %v846
      %vm853 = vcmask 785408
      %v854 = vsel %vm853, %v852, %v849
      %vm855 = vcmask 850944
      %v856 = vsel %vm855, %v854, 0.0
      %857 = vst [vmem:[%s371] sm:$0x1] %v856
      %s858 = sadd.s32 %s372, 1
      %s859 = sld [smem:[#allocation4 + %s858]]
      %s860 = scalar_lea.vmem %s1, %s859
      %v861 = vld [vmem:[%s860] sm:$0x1]
      %v863 = vsel %vm405, %v861, 0
      %865 = vmatprep.subr.mxu0 0.0
      %866 = vmatpush1.msra.mxu0 %v380
      %867 = vmatprep.subr.mxu0 0.0
      %868 = vmatpush1.msra.mxu0 %v381
      %869 = vmatprep.subr.mxu0 0.0
      %870 = vmatpush1.msra.mxu0 %v382
      %871 = vmatprep.subr.mxu0 0.0
      %872 = vmatpush1.msra.mxu0 %v383
      %873 = vmatprep.subr.mxu0 0.0
      %874 = vmatpush1.msra.mxu0 0.0
      %875 = vmatprep.subr.mxu0 0.0
      %876 = vmatpush1.msra.mxu0 0.0
      %877 = vmatprep.subr.mxu0 0.0
      %878 = vmatpush1.msra.mxu0 0.0
      %879 = vmatprep.subr.mxu0 0.0
      %880 = vmatpush1.msra.mxu0 0.0
      %881 = vmatprep.subr.mxu0 0.0
      %882 = vmatpush1.msra.mxu0 0.0
      %883 = vmatprep.subr.mxu0 0.0
      %884 = vmatpush1.msra.mxu0 0.0
      %885 = vmatprep.subr.mxu0 0.0
      %886 = vmatpush1.msra.mxu0 0.0
      %887 = vmatprep.subr.mxu0 0.0
      %888 = vmatpush1.msra.mxu0 0.0
      %889 = vmatprep.subr.mxu0 0.0
      %890 = vmatpush1.msra.mxu0 0.0
      %891 = vmatprep.subr.mxu0 0.0
      %892 = vmatpush1.msra.mxu0 0.0
      %893 = vmatprep.subr.mxu0 0.0
      %894 = vmatpush1.msra.mxu0 0.0
      %895 = vmatprep.subr.mxu0 0.0
      %896 = vmatpush1.msra.mxu0 0.0
      %897 = vmatprep.subr.mxu0 0.0
      %898 = vmatpush1.msra.mxu0 0.0
      %899 = vmatprep.subr.mxu0 0.0
      %900 = vmatpush1.msra.mxu0 0.0
      %901 = vmatprep.subr.mxu0 0.0
      %902 = vmatpush1.msra.mxu0 0.0
      %903 = vmatprep.subr.mxu0 0.0
      %904 = vmatpush1.msra.mxu0 0.0
      %905 = vmatprep.subr.mxu0 0.0
      %906 = vmatpush1.msra.mxu0 0.0
      %907 = vmatprep.subr.mxu0 0.0
      %908 = vmatpush1.msra.mxu0 0.0
      %909 = vmatprep.subr.mxu0 0.0
      %910 = vmatpush1.msra.mxu0 0.0
      %911 = vmatprep.subr.mxu0 0.0
      %912 = vmatpush1.msra.mxu0 0.0
      %913 = vmatprep.subr.mxu0 0.0
      %914 = vmatpush1.msra.mxu0 0.0
      %915 = vmatprep.subr.mxu0 0.0
      %916 = vmatpush1.msra.mxu0 0.0
      %917 = vmatprep.subr.mxu0 0.0
      %918 = vmatpush1.msra.mxu0 0.0
      %919 = vmatprep.subr.mxu0 0.0
      %920 = vmatpush1.msra.mxu0 0.0
      %921 = vmatprep.subr.mxu0 0.0
      %922 = vmatpush1.msra.mxu0 0.0
      %923 = vmatprep.subr.mxu0 0.0
      %924 = vmatpush1.msra.mxu0 0.0
      %925 = vmatprep.subr.mxu0 0.0
      %926 = vmatpush1.msra.mxu0 0.0
      %927 = vmatprep.subr.mxu0 0.0
      %928 = vmatpush1.msra.mxu0 0.0
      %929 = vmatprep.mubr.f32.mxu0 0.0
      %930 = vmatmul.mubr.f32.gmra.mrb[0].mxu0 %v863
      %v931 = vpop.f32.mrb[0].mxu0
      %v932 = vadd.f32 %v384, %v931
      %v933 = vpop.f32.mrb[0].mxu0
      %934 = vdwg.mxu0
      %935 = vmatprep.subr.mxu0 0.0
      %936 = vmatpush1.msra.mxu0 %v385
      %937 = vmatprep.subr.mxu0 0.0
      %938 = vmatpush1.msra.mxu0 %v386
      %939 = vmatprep.subr.mxu0 0.0
      %940 = vmatpush1.msra.mxu0 %v387
      %941 = vmatprep.subr.mxu0 0.0
      %942 = vmatpush1.msra.mxu0 %v388
      %943 = vmatprep.subr.mxu0 0.0
      %944 = vmatpush1.msra.mxu0 0.0
      %945 = vmatprep.subr.mxu0 0.0
      %946 = vmatpush1.msra.mxu0 0.0
      %947 = vmatprep.subr.mxu0 0.0
      %948 = vmatpush1.msra.mxu0 0.0
      %949 = vmatprep.subr.mxu0 0.0
      %950 = vmatpush1.msra.mxu0 0.0
      %951 = vmatprep.subr.mxu0 0.0
      %952 = vmatpush1.msra.mxu0 0.0
      %953 = vmatprep.subr.mxu0 0.0
      %954 = vmatpush1.msra.mxu0 0.0
      %955 = vmatprep.subr.mxu0 0.0
      %956 = vmatpush1.msra.mxu0 0.0
      %957 = vmatprep.subr.mxu0 0.0
      %958 = vmatpush1.msra.mxu0 0.0
      %959 = vmatprep.subr.mxu0 0.0
      %960 = vmatpush1.msra.mxu0 0.0
      %961 = vmatprep.subr.mxu0 0.0
      %962 = vmatpush1.msra.mxu0 0.0
      %963 = vmatprep.subr.mxu0 0.0
      %964 = vmatpush1.msra.mxu0 0.0
      %965 = vmatprep.subr.mxu0 0.0
      %966 = vmatpush1.msra.mxu0 0.0
      %967 = vmatprep.subr.mxu0 0.0
      %968 = vmatpush1.msra.mxu0 0.0
      %969 = vmatprep.subr.mxu0 0.0
      %970 = vmatpush1.msra.mxu0 0.0
      %971 = vmatprep.subr.mxu0 0.0
      %972 = vmatpush1.msra.mxu0 0.0
      %973 = vmatprep.subr.mxu0 0.0
      %974 = vmatpush1.msra.mxu0 0.0
      %975 = vmatprep.subr.mxu0 0.0
      %976 = vmatpush1.msra.mxu0 0.0
      %977 = vmatprep.subr.mxu0 0.0
      %978 = vmatpush1.msra.mxu0 0.0
      %979 = vmatprep.subr.mxu0 0.0
      %980 = vmatpush1.msra.mxu0 0.0
      %981 = vmatprep.subr.mxu0 0.0
      %982 = vmatpush1.msra.mxu0 0.0
      %983 = vmatprep.subr.mxu0 0.0
      %984 = vmatpush1.msra.mxu0 0.0
      %985 = vmatprep.subr.mxu0 0.0
      %986 = vmatpush1.msra.mxu0 0.0
      %987 = vmatprep.subr.mxu0 0.0
      %988 = vmatpush1.msra.mxu0 0.0
      %989 = vmatprep.subr.mxu0 0.0
      %990 = vmatpush1.msra.mxu0 0.0
      %991 = vmatprep.subr.mxu0 0.0
      %992 = vmatpush1.msra.mxu0 0.0
      %993 = vmatprep.subr.mxu0 0.0
      %994 = vmatpush1.msra.mxu0 0.0
      %995 = vmatprep.subr.mxu0 0.0
      %996 = vmatpush1.msra.mxu0 0.0
      %997 = vmatprep.subr.mxu0 0.0
      %998 = vmatpush1.msra.mxu0 0.0
      %999 = vmatprep.mubr.f32.mxu0 0.0
      %1000 = vmatmul.mubr.f32.gmra.mrb[0].mxu0 %v760
      %v1001 = vpop.f32.mrb[0].mxu0
      %v1002 = vadd.f32 %v389, %v1001
      %v1003 = vpop.f32.mrb[0].mxu0
      %1004 = vdwg.mxu0
      %1006 = vrot.lane.b32.xlu0 %v1002, 64
      %v1007 = vpop.permute.xlu0 %1006
      %v1009 = vadd.f32 %v932, %v1007
      %v1010 = vsel %vm557, %v1009, -inf
      %1011 = vmax.xlane.f32.xlu0 %v1010
      %v1012 = vpop.xlane.xlu0 %1011
      %v1013 = vsub.f32 %v1009, %v1012
      %v1014 = vmul.f32 %v1013, 1.442695
      %v1015 = vpow.pop %v1014
      %1017 = vrot.lane.b32.xlu0 %v1015, 96
      %v1018 = vpop.permute.xlu0 %1017
      %v1020 = vsel %vm568, %v1018, 0.0
      %1021 = vadd.xlane.f32.xlu0 %v1020
      %v1022 = vpop.xlane.xlu0 %1021
      %v1023 = vrcp.pop %v1022
      %v1024 = vmul.f32 %v1022, %v1023
      %v1025 = vsub.f32 2.0, %v1024
      %v1026 = vmul.f32 %v1023, %v1025
      %v1027 = vmul.f32 %v1015, %v1026
      %1029 = vrot.lane.b32.xlu0 %v1027, 96
      %v1030 = vpop.permute.xlu0 %1029
      %v1031 = vsel %vm580, %v1030, 0
      %1033 = vmatprep.subr.mxu0 0.0
      %1034 = vmatpush1.msra.mxu0 %v390
      %1035 = vmatprep.subr.mxu0 0.0
      %1036 = vmatpush1.msra.mxu0 0.0
      %1037 = vmatprep.subr.mxu0 0.0
      %1038 = vmatpush1.msra.mxu0 0.0
      %1039 = vmatprep.subr.mxu0 0.0
      %1040 = vmatpush1.msra.mxu0 0.0
      %1041 = vmatprep.subr.mxu0 0.0
      %1042 = vmatpush1.msra.mxu0 0.0
      %1043 = vmatprep.subr.mxu0 0.0
      %1044 = vmatpush1.msra.mxu0 0.0
      %1045 = vmatprep.subr.mxu0 0.0
      %1046 = vmatpush1.msra.mxu0 0.0
      %1047 = vmatprep.subr.mxu0 0.0
      %1048 = vmatpush1.msra.mxu0 0.0
      %1049 = vmatprep.subr.mxu0 0.0
      %1050 = vmatpush1.msra.mxu0 0.0
      %1051 = vmatprep.subr.mxu0 0.0
      %1052 = vmatpush1.msra.mxu0 0.0
      %1053 = vmatprep.subr.mxu0 0.0
      %1054 = vmatpush1.msra.mxu0 0.0
      %1055 = vmatprep.subr.mxu0 0.0
      %1056 = vmatpush1.msra.mxu0 0.0
      %1057 = vmatprep.subr.mxu0 0.0
      %1058 = vmatpush1.msra.mxu0 0.0
      %1059 = vmatprep.subr.mxu0 0.0
      %1060 = vmatpush1.msra.mxu0 0.0
      %1061 = vmatprep.subr.mxu0 0.0
      %1062 = vmatpush1.msra.mxu0 0.0
      %1063 = vmatprep.subr.mxu0 0.0
      %1064 = vmatpush1.msra.mxu0 0.0
      %1065 = vmatprep.subr.mxu0 0.0
      %1066 = vmatpush1.msra.mxu0 0.0
      %1067 = vmatprep.subr.mxu0 0.0
      %1068 = vmatpush1.msra.mxu0 0.0
      %1069 = vmatprep.subr.mxu0 0.0
      %1070 = vmatpush1.msra.mxu0 0.0
      %1071 = vmatprep.subr.mxu0 0.0
      %1072 = vmatpush1.msra.mxu0 0.0
      %1073 = vmatprep.subr.mxu0 0.0
      %1074 = vmatpush1.msra.mxu0 0.0
      %1075 = vmatprep.subr.mxu0 0.0
      %1076 = vmatpush1.msra.mxu0 0.0
      %1077 = vmatprep.subr.mxu0 0.0
      %1078 = vmatpush1.msra.mxu0 0.0
      %1079 = vmatprep.subr.mxu0 0.0
      %1080 = vmatpush1.msra.mxu0 0.0
      %1081 = vmatprep.subr.mxu0 0.0
      %1082 = vmatpush1.msra.mxu0 0.0
      %1083 = vmatprep.subr.mxu0 0.0
      %1084 = vmatpush1.msra.mxu0 0.0
      %1085 = vmatprep.subr.mxu0 0.0
      %1086 = vmatpush1.msra.mxu0 0.0
      %1087 = vmatprep.subr.mxu0 0.0
      %1088 = vmatpush1.msra.mxu0 0.0
      %1089 = vmatprep.subr.mxu0 0.0
      %1090 = vmatpush1.msra.mxu0 0.0
      %1091 = vmatprep.subr.mxu0 0.0
      %1092 = vmatpush1.msra.mxu0 0.0
      %1093 = vmatprep.subr.mxu0 0.0
      %1094 = vmatpush1.msra.mxu0 0.0
      %1095 = vmatprep.subr.mxu0 0.0
      %1096 = vmatpush1.msra.mxu0 0.0
      %1097 = vmatprep.mubr.f32.mxu0 0.0
      %1098 = vmatmul.mubr.f32.gmra.mrb[0].mxu0 %v1031
      %v1099 = vpop.f32.mrb[0].mxu0
      %v1100 = vadd.f32 0.0, %v1099
      %v1101 = vpop.f32.mrb[0].mxu0
      %1102 = vdwg.mxu0
      %v1103 = vadd.f32 %v932, %v1100
      %v1104 = vmax.f32 %v1103, 0.0
      %v1106 = vsel %vm405, %v1104, 0
      %1108 = vmatprep.subr.mxu0 0.0
      %1109 = vmatpush1.msra.mxu0 %v391
      %1110 = vmatprep.subr.mxu0 0.0
      %1111 = vmatpush1.msra.mxu0 %v392
      %1112 = vmatprep.subr.mxu0 0.0
      %1113 = vmatpush1.msra.mxu0 %v393
      %1114 = vmatprep.subr.mxu0 0.0
      %1115 = vmatpush1.msra.mxu0 %v394
      %1116 = vmatprep.subr.mxu0 0.0
      %1117 = vmatpush1.msra.mxu0 0.0
      %1118 = vmatprep.subr.mxu0 0.0
      %1119 = vmatpush1.msra.mxu0 0.0
      %1120 = vmatprep.subr.mxu0 0.0
      %1121 = vmatpush1.msra.mxu0 0.0
      %1122 = vmatprep.subr.mxu0 0.0
      %1123 = vmatpush1.msra.mxu0 0.0
      %1124 = vmatprep.subr.mxu0 0.0
      %1125 = vmatpush1.msra.mxu0 0.0
      %1126 = vmatprep.subr.mxu0 0.0
      %1127 = vmatpush1.msra.mxu0 0.0
      %1128 = vmatprep.subr.mxu0 0.0
      %1129 = vmatpush1.msra.mxu0 0.0
      %1130 = vmatprep.subr.mxu0 0.0
      %1131 = vmatpush1.msra.mxu0 0.0
      %1132 = vmatprep.subr.mxu0 0.0
      %1133 = vmatpush1.msra.mxu0 0.0
      %1134 = vmatprep.subr.mxu0 0.0
      %1135 = vmatpush1.msra.mxu0 0.0
      %1136 = vmatprep.subr.mxu0 0.0
      %1137 = vmatpush1.msra.mxu0 0.0
      %1138 = vmatprep.subr.mxu0 0.0
      %1139 = vmatpush1.msra.mxu0 0.0
      %1140 = vmatprep.subr.mxu0 0.0
      %1141 = vmatpush1.msra.mxu0 0.0
      %1142 = vmatprep.subr.mxu0 0.0
      %1143 = vmatpush1.msra.mxu0 0.0
      %1144 = vmatprep.subr.mxu0 0.0
      %1145 = vmatpush1.msra.mxu0 0.0
      %1146 = vmatprep.subr.mxu0 0.0
      %1147 = vmatpush1.msra.mxu0 0.0
      %1148 = vmatprep.subr.mxu0 0.0
      %1149 = vmatpush1.msra.mxu0 0.0
      %1150 = vmatprep.subr.mxu0 0.0
      %1151 = vmatpush1.msra.mxu0 0.0
      %1152 = vmatprep.subr.mxu0 0.0
      %1153 = vmatpush1.msra.mxu0 0.0
      %1154 = vmatprep.subr.mxu0 0.0
      %1155 = vmatpush1.msra.mxu0 0.0
      %1156 = vmatprep.subr.mxu0 0.0
      %1157 = vmatpush1.msra.mxu0 0.0
      %1158 = vmatprep.subr.mxu0 0.0
      %1159 = vmatpush1.msra.mxu0 0.0
      %1160 = vmatprep.subr.mxu0 0.0
      %1161 = vmatpush1.msra.mxu0 0.0
      %1162 = vmatprep.subr.mxu0 0.0
      %1163 = vmatpush1.msra.mxu0 0.0
      %1164 = vmatprep.subr.mxu0 0.0
      %1165 = vmatpush1.msra.mxu0 0.0
      %1166 = vmatprep.subr.mxu0 0.0
      %1167 = vmatpush1.msra.mxu0 0.0
      %1168 = vmatprep.subr.mxu0 0.0
      %1169 = vmatpush1.msra.mxu0 0.0
      %1170 = vmatprep.subr.mxu0 0.0
      %1171 = vmatpush1.msra.mxu0 0.0
      %1172 = vmatprep.mubr.f32.mxu0 0.0
      %1173 = vmatmul.mubr.f32.gmra.mrb[0].mxu0 %v1106
      %v1174 = vpop.f32.mrb[0].mxu0
      %v1175 = vadd.f32 %v395, %v1174
      %v1176 = vpop.f32.mrb[0].mxu0
      %1177 = vdwg.mxu0
      %v1178 = vadd.f32 %v1175, %v1002
      %v1179 = vxor.u32 %v1178, 2147483648
      %v1180 = vmul.f32 %v1179, 1.442695
      %v1181 = vpow.pop %v1180
      %v1182 = vadd.f32 %v1181, 1.0
      %v1183 = vrcp.pop %v1182
      %v1184 = vmul.f32 1.0, %v1183
      %v1185 = vmul.f32 %v1184, %v1007
      %1187 = vrot.lane.b32.xlu0 %v1185, 64
      %v1188 = vpop.permute.xlu0 %1187
      %v1190 = vadd.f32 %v1175, %v1188
      %v1191 = vtanh.pop %v1190
      %v1192 = vsub.f32 1.0, %v1184
      %1194 = vrot.lane.b32.xlu0 %v1191, 96
      %v1195 = vpop.permute.xlu0 %1194
      %v1197 = vmul.f32 %v1192, %v1195
      %v1198 = vmul.f32 %v1184, %v756
      %v1199 = vadd.f32 %v1197, %v1198
      %1201 = vrot.lane.b32.xlu0 %v1199, 96
      %v1202 = vpop.permute.xlu0 %1201
      %v1203 = vsel %vm405, %v1202, 0
      %1205 = vmatprep.subr.mxu0 0.0
      %1206 = vmatpush1.msra.mxu0 %v396
      %1207 = vmatprep.subr.mxu0 0.0
      %1208 = vmatpush1.msra.mxu0 %v397
      %1209 = vmatprep.subr.mxu0 0.0
      %1210 = vmatpush1.msra.mxu0 %v398
      %1211 = vmatprep.subr.mxu0 0.0
      %1212 = vmatpush1.msra.mxu0 %v399
      %1213 = vmatprep.subr.mxu0 0.0
      %1214 = vmatpush1.msra.mxu0 0.0
      %1215 = vmatprep.subr.mxu0 0.0
      %1216 = vmatpush1.msra.mxu0 0.0
      %1217 = vmatprep.subr.mxu0 0.0
      %1218 = vmatpush1.msra.mxu0 0.0
      %1219 = vmatprep.subr.mxu0 0.0
      %1220 = vmatpush1.msra.mxu0 0.0
      %1221 = vmatprep.subr.mxu0 0.0
      %1222 = vmatpush1.msra.mxu0 0.0
      %1223 = vmatprep.subr.mxu0 0.0
      %1224 = vmatpush1.msra.mxu0 0.0
      %1225 = vmatprep.subr.mxu0 0.0
      %1226 = vmatpush1.msra.mxu0 0.0
      %1227 = vmatprep.subr.mxu0 0.0
      %1228 = vmatpush1.msra.mxu0 0.0
      %1229 = vmatprep.subr.mxu0 0.0
      %1230 = vmatpush1.msra.mxu0 0.0
      %1231 = vmatprep.subr.mxu0 0.0
      %1232 = vmatpush1.msra.mxu0 0.0
      %1233 = vmatprep.subr.mxu0 0.0
      %1234 = vmatpush1.msra.mxu0 0.0
      %1235 = vmatprep.subr.mxu0 0.0
      %1236 = vmatpush1.msra.mxu0 0.0
      %1237 = vmatprep.subr.mxu0 0.0
      %1238 = vmatpush1.msra.mxu0 0.0
      %1239 = vmatprep.subr.mxu0 0.0
      %1240 = vmatpush1.msra.mxu0 0.0
      %1241 = vmatprep.subr.mxu0 0.0
      %1242 = vmatpush1.msra.mxu0 0.0
      %1243 = vmatprep.subr.mxu0 0.0
      %1244 = vmatpush1.msra.mxu0 0.0
      %1245 = vmatprep.subr.mxu0 0.0
      %1246 = vmatpush1.msra.mxu0 0.0
      %1247 = vmatprep.subr.mxu0 0.0
      %1248 = vmatpush1.msra.mxu0 0.0
      %1249 = vmatprep.subr.mxu0 0.0
      %1250 = vmatpush1.msra.mxu0 0.0
      %1251 = vmatprep.subr.mxu0 0.0
      %1252 = vmatpush1.msra.mxu0 0.0
      %1253 = vmatprep.subr.mxu0 0.0
      %1254 = vmatpush1.msra.mxu0 0.0
      %1255 = vmatprep.subr.mxu0 0.0
      %1256 = vmatpush1.msra.mxu0 0.0
      %1257 = vmatprep.subr.mxu0 0.0
      %1258 = vmatpush1.msra.mxu0 0.0
      %1259 = vmatprep.subr.mxu0 0.0
      %1260 = vmatpush1.msra.mxu0 0.0
      %1261 = vmatprep.subr.mxu0 0.0
      %1262 = vmatpush1.msra.mxu0 0.0
      %1263 = vmatprep.subr.mxu0 0.0
      %1264 = vmatpush1.msra.mxu0 0.0
      %1265 = vmatprep.subr.mxu0 0.0
      %1266 = vmatpush1.msra.mxu0 0.0
      %1267 = vmatprep.subr.mxu0 0.0
      %1268 = vmatpush1.msra.mxu0 0.0
      %1269 = vmatprep.mubr.f32.mxu0 0.0
      %1270 = vmatmul.mubr.f32.gmra.mrb[0].mxu0 %v1203
      %v1271 = vpop.f32.mrb[0].mxu0
      %v1272 = vadd.f32 %v400, %v1271
      %v1273 = vpop.f32.mrb[0].mxu0
      %1274 = vdwg.mxu0
      %v1275 = vsel %vm832, %v1272, -inf
      %1276 = vmax.xlane.f32.xlu0 %v1275
      %v1277 = vpop.xlane.xlu0 %1276
      %v1278 = vsub.f32 %v1272, %v1277
      %v1279 = vmul.f32 %v1278, 1.442695
      %v1280 = vpow.pop %v1279
      %v1281 = vsel %vm832, %v1280, 0.0
      %1282 = vadd.xlane.f32.xlu0 %v1281
      %v1283 = vpop.xlane.xlu0 %1282
      %v1284 = vlog2.pop %v1283
      %v1285 = vmul.f32 %v1284, 0.6931472
      %v1286 = vsub.f32 %v1278, %v1285
      %1287 = vrot.lane.b32.xlu0 %v1199, 32
      %v1288 = vpop.permute.xlu0 %1287
      %1290 = vrot.lane.b32.xlu0 %v1027, 64
      %v1291 = vpop.permute.xlu0 %1290
      %v1293 = vsel %vm851, %v1286, %v1288
      %v1294 = vsel %vm853, %v1293, %v1291
      %v1295 = vsel %vm855, %v1294, 0.0
      %1296 = vst [vmem:[%s371 + $0x1] sm:$0x1] %v1295
      %s1297 = sadd.s32 %s372, 2
      %s1298 = sld [smem:[#allocation4 + %s1297]]
      %s1299 = scalar_lea.vmem %s1, %s1298
      %v1300 = vld [vmem:[%s1299] sm:$0x1]
      %v1302 = vsel %vm405, %v1300, 0
      %1304 = vmatprep.subr.mxu0 0.0
      %1305 = vmatpush1.msra.mxu0 %v380
      %1306 = vmatprep.subr.mxu0 0.0
      %1307 = vmatpush1.msra.mxu0 %v381
      %1308 = vmatprep.subr.mxu0 0.0
      %1309 = vmatpush1.msra.mxu0 %v382
      %1310 = vmatprep.subr.mxu0 0.0
      %1311 = vmatpush1.msra.mxu0 %v383
      %1312 = vmatprep.subr.mxu0 0.0
      %1313 = vmatpush1.msra.mxu0 0.0
      %1314 = vmatprep.subr.mxu0 0.0
      %1315 = vmatpush1.msra.mxu0 0.0
      %1316 = vmatprep.subr.mxu0 0.0
      %1317 = vmatpush1.msra.mxu0 0.0
      %1318 = vmatprep.subr.mxu0 0.0
      %1319 = vmatpush1.msra.mxu0 0.0
      %1320 = vmatprep.subr.mxu0 0.0
      %1321 = vmatpush1.msra.mxu0 0.0
      %1322 = vmatprep.subr.mxu0 0.0
      %1323 = vmatpush1.msra.mxu0 0.0
      %1324 = vmatprep.subr.mxu0 0.0
      %1325 = vmatpush1.msra.mxu0 0.0
      %1326 = vmatprep.subr.mxu0 0.0
      %1327 = vmatpush1.msra.mxu0 0.0
      %1328 = vmatprep.subr.mxu0 0.0
      %1329 = vmatpush1.msra.mxu0 0.0
      %1330 = vmatprep.subr.mxu0 0.0
      %1331 = vmatpush1.msra.mxu0 0.0
      %1332 = vmatprep.subr.mxu0 0.0
      %1333 = vmatpush1.msra.mxu0 0.0
      %1334 = vmatprep.subr.mxu0 0.0
      %1335 = vmatpush1.msra.mxu0 0.0
      %1336 = vmatprep.subr.mxu0 0.0
      %1337 = vmatpush1.msra.mxu0 0.0
      %1338 = vmatprep.subr.mxu0 0.0
      %1339 = vmatpush1.msra.mxu0 0.0
      %1340 = vmatprep.subr.mxu0 0.0
      %1341 = vmatpush1.msra.mxu0 0.0
      %1342 = vmatprep.subr.mxu0 0.0
      %1343 = vmatpush1.msra.mxu0 0.0
      %1344 = vmatprep.subr.mxu0 0.0
      %1345 = vmatpush1.msra.mxu0 0.0
      %1346 = vmatprep.subr.mxu0 0.0
      %1347 = vmatpush1.msra.mxu0 0.0
      %1348 = vmatprep.subr.mxu0 0.0
      %1349 = vmatpush1.msra.mxu0 0.0
      %1350 = vmatprep.subr.mxu0 0.0
      %1351 = vmatpush1.msra.mxu0 0.0
      %1352 = vmatprep.subr.mxu0 0.0
      %1353 = vmatpush1.msra.mxu0 0.0
      %1354 = vmatprep.subr.mxu0 0.0
      %1355 = vmatpush1.msra.mxu0 0.0
      %1356 = vmatprep.subr.mxu0 0.0
      %1357 = vmatpush1.msra.mxu0 0.0
      %1358 = vmatprep.subr.mxu0 0.0
      %1359 = vmatpush1.msra.mxu0 0.0
      %1360 = vmatprep.subr.mxu0 0.0
      %1361 = vmatpush1.msra.mxu0 0.0
      %1362 = vmatprep.subr.mxu0 0.0
      %1363 = vmatpush1.msra.mxu0 0.0
      %1364 = vmatprep.subr.mxu0 0.0
      %1365 = vmatpush1.msra.mxu0 0.0
      %1366 = vmatprep.subr.mxu0 0.0
      %1367 = vmatpush1.msra.mxu0 0.0
      %1368 = vmatprep.mubr.f32.mxu0 0.0
      %1369 = vmatmul.mubr.f32.gmra.mrb[0].mxu0 %v1302
      %v1370 = vpop.f32.mrb[0].mxu0
      %v1371 = vadd.f32 %v384, %v1370
      %v1372 = vpop.f32.mrb[0].mxu0
      %1373 = vdwg.mxu0
      %1374 = vmatprep.subr.mxu0 0.0
      %1375 = vmatpush1.msra.mxu0 %v385
      %1376 = vmatprep.subr.mxu0 0.0
      %1377 = vmatpush1.msra.mxu0 %v386
      %1378 = vmatprep.subr.mxu0 0.0
      %1379 = vmatpush1.msra.mxu0 %v387
      %1380 = vmatprep.subr.mxu0 0.0
      %1381 = vmatpush1.msra.mxu0 %v388
      %1382 = vmatprep.subr.mxu0 0.0
      %1383 = vmatpush1.msra.mxu0 0.0
      %1384 = vmatprep.subr.mxu0 0.0
      %1385 = vmatpush1.msra.mxu0 0.0
      %1386 = vmatprep.subr.mxu0 0.0
      %1387 = vmatpush1.msra.mxu0 0.0
      %1388 = vmatprep.subr.mxu0 0.0
      %1389 = vmatpush1.msra.mxu0 0.0
      %1390 = vmatprep.subr.mxu0 0.0
      %1391 = vmatpush1.msra.mxu0 0.0
      %1392 = vmatprep.subr.mxu0 0.0
      %1393 = vmatpush1.msra.mxu0 0.0
      %1394 = vmatprep.subr.mxu0 0.0
      %1395 = vmatpush1.msra.mxu0 0.0
      %1396 = vmatprep.subr.mxu0 0.0
      %1397 = vmatpush1.msra.mxu0 0.0
      %1398 = vmatprep.subr.mxu0 0.0
      %1399 = vmatpush1.msra.mxu0 0.0
      %1400 = vmatprep.subr.mxu0 0.0
      %1401 = vmatpush1.msra.mxu0 0.0
      %1402 = vmatprep.subr.mxu0 0.0
      %1403 = vmatpush1.msra.mxu0 0.0
      %1404 = vmatprep.subr.mxu0 0.0
      %1405 = vmatpush1.msra.mxu0 0.0
      %1406 = vmatprep.subr.mxu0 0.0
      %1407 = vmatpush1.msra.mxu0 0.0
      %1408 = vmatprep.subr.mxu0 0.0
      %1409 = vmatpush1.msra.mxu0 0.0
      %1410 = vmatprep.subr.mxu0 0.0
      %1411 = vmatpush1.msra.mxu0 0.0
      %1412 = vmatprep.subr.mxu0 0.0
      %1413 = vmatpush1.msra.mxu0 0.0
      %1414 = vmatprep.subr.mxu0 0.0
      %1415 = vmatpush1.msra.mxu0 0.0
      %1416 = vmatprep.subr.mxu0 0.0
      %1417 = vmatpush1.msra.mxu0 0.0
      %1418 = vmatprep.subr.mxu0 0.0
      %1419 = vmatpush1.msra.mxu0 0.0
      %1420 = vmatprep.subr.mxu0 0.0
      %1421 = vmatpush1.msra.mxu0 0.0
      %1422 = vmatprep.subr.mxu0 0.0
      %1423 = vmatpush1.msra.mxu0 0.0
      %1424 = vmatprep.subr.mxu0 0.0
      %1425 = vmatpush1.msra.mxu0 0.0
      %1426 = vmatprep.subr.mxu0 0.0
      %1427 = vmatpush1.msra.mxu0 0.0
      %1428 = vmatprep.subr.mxu0 0.0
      %1429 = vmatpush1.msra.mxu0 0.0
      %1430 = vmatprep.subr.mxu0 0.0
      %1431 = vmatpush1.msra.mxu0 0.0
      %1432 = vmatprep.subr.mxu0 0.0
      %1433 = vmatpush1.msra.mxu0 0.0
      %1434 = vmatprep.subr.mxu0 0.0
      %1435 = vmatpush1.msra.mxu0 0.0
      %1436 = vmatprep.subr.mxu0 0.0
      %1437 = vmatpush1.msra.mxu0 0.0
      %1438 = vmatprep.mubr.f32.mxu0 0.0
      %1439 = vmatmul.mubr.f32.gmra.mrb[0].mxu0 %v1203
      %v1440 = vpop.f32.mrb[0].mxu0
      %v1441 = vadd.f32 %v389, %v1440
      %v1442 = vpop.f32.mrb[0].mxu0
      %1443 = vdwg.mxu0
      %1445 = vrot.lane.b32.xlu0 %v1441, 64
      %v1446 = vpop.permute.xlu0 %1445
      %v1448 = vadd.f32 %v1371, %v1446
      %v1449 = vsel %vm557, %v1448, -inf
      %1450 = vmax.xlane.f32.xlu0 %v1449
      %v1451 = vpop.xlane.xlu0 %1450
      %v1452 = vsub.f32 %v1448, %v1451
      %v1453 = vmul.f32 %v1452, 1.442695
      %v1454 = vpow.pop %v1453
      %1456 = vrot.lane.b32.xlu0 %v1454, 96
      %v1457 = vpop.permute.xlu0 %1456
      %v1459 = vsel %vm568, %v1457, 0.0
      %1460 = vadd.xlane.f32.xlu0 %v1459
      %v1461 = vpop.xlane.xlu0 %1460
      %v1462 = vrcp.pop %v1461
      %v1463 = vmul.f32 %v1461, %v1462
      %v1464 = vsub.f32 2.0, %v1463
      %v1465 = vmul.f32 %v1462, %v1464
      %v1466 = vmul.f32 %v1454, %v1465
      %1468 = vrot.lane.b32.xlu0 %v1466, 96
      %v1469 = vpop.permute.xlu0 %1468
      %v1470 = vsel %vm580, %v1469, 0
      %1472 = vmatprep.subr.mxu0 0.0
      %1473 = vmatpush1.msra.mxu0 %v390
      %1474 = vmatprep.subr.mxu0 0.0
      %1475 = vmatpush1.msra.mxu0 0.0
      %1476 = vmatprep.subr.mxu0 0.0
      %1477 = vmatpush1.msra.mxu0 0.0
      %1478 = vmatprep.subr.mxu0 0.0
      %1479 = vmatpush1.msra.mxu0 0.0
      %1480 = vmatprep.subr.mxu0 0.0
      %1481 = vmatpush1.msra.mxu0 0.0
      %1482 = vmatprep.subr.mxu0 0.0
      %1483 = vmatpush1.msra.mxu0 0.0
      %1484 = vmatprep.subr.mxu0 0.0
      %1485 = vmatpush1.msra.mxu0 0.0
      %1486 = vmatprep.subr.mxu0 0.0
      %1487 = vmatpush1.msra.mxu0 0.0
      %1488 = vmatprep.subr.mxu0 0.0
      %1489 = vmatpush1.msra.mxu0 0.0
      %1490 = vmatprep.subr.mxu0 0.0
      %1491 = vmatpush1.msra.mxu0 0.0
      %1492 = vmatprep.subr.mxu0 0.0
      %1493 = vmatpush1.msra.mxu0 0.0
      %1494 = vmatprep.subr.mxu0 0.0
      %1495 = vmatpush1.msra.mxu0 0.0
      %1496 = vmatprep.subr.mxu0 0.0
      %1497 = vmatpush1.msra.mxu0 0.0
      %1498 = vmatprep.subr.mxu0 0.0
      %1499 = vmatpush1.msra.mxu0 0.0
      %1500 = vmatprep.subr.mxu0 0.0
      %1501 = vmatpush1.msra.mxu0 0.0
      %1502 = vmatprep.subr.mxu0 0.0
      %1503 = vmatpush1.msra.mxu0 0.0
      %1504 = vmatprep.subr.mxu0 0.0
      %1505 = vmatpush1.msra.mxu0 0.0
      %1506 = vmatprep.subr.mxu0 0.0
      %1507 = vmatpush1.msra.mxu0 0.0
      %1508 = vmatprep.subr.mxu0 0.0
      %1509 = vmatpush1.msra.mxu0 0.0
      %1510 = vmatprep.subr.mxu0 0.0
      %1511 = vmatpush1.msra.mxu0 0.0
      %1512 = vmatprep.subr.mxu0 0.0
      %1513 = vmatpush1.msra.mxu0 0.0
      %1514 = vmatprep.subr.mxu0 0.0
      %1515 = vmatpush1.msra.mxu0 0.0
      %1516 = vmatprep.subr.mxu0 0.0
      %1517 = vmatpush1.msra.mxu0 0.0
      %1518 = vmatprep.subr.mxu0 0.0
      %1519 = vmatpush1.msra.mxu0 0.0
      %1520 = vmatprep.subr.mxu0 0.0
      %1521 = vmatpush1.msra.mxu0 0.0
      %1522 = vmatprep.subr.mxu0 0.0
      %1523 = vmatpush1.msra.mxu0 0.0
      %1524 = vmatprep.subr.mxu0 0.0
      %1525 = vmatpush1.msra.mxu0 0.0
      %1526 = vmatprep.subr.mxu0 0.0
      %1527 = vmatpush1.msra.mxu0 0.0
      %1528 = vmatprep.subr.mxu0 0.0
      %1529 = vmatpush1.msra.mxu0 0.0
      %1530 = vmatprep.subr.mxu0 0.0
      %1531 = vmatpush1.msra.mxu0 0.0
      %1532 = vmatprep.subr.mxu0 0.0
      %1533 = vmatpush1.msra.mxu0 0.0
      %1534 = vmatprep.subr.mxu0 0.0
      %1535 = vmatpush1.msra.mxu0 0.0
      %1536 = vmatprep.mubr.f32.mxu0 0.0
      %1537 = vmatmul.mubr.f32.gmra.mrb[0].mxu0 %v1470
      %v1538 = vpop.f32.mrb[0].mxu0
      %v1539 = vadd.f32 0.0, %v1538
      %v1540 = vpop.f32.mrb[0].mxu0
      %1541 = vdwg.mxu0
      %v1542 = vadd.f32 %v1371, %v1539
      %v1543 = vmax.f32 %v1542, 0.0
      %v1545 = vsel %vm405, %v1543, 0
      %1547 = vmatprep.subr.mxu0 0.0
      %1548 = vmatpush1.msra.mxu0 %v391
      %1549 = vmatprep.subr.mxu0 0.0
      %1550 = vmatpush1.msra.mxu0 %v392
      %1551 = vmatprep.subr.mxu0 0.0
      %1552 = vmatpush1.msra.mxu0 %v393
      %1553 = vmatprep.subr.mxu0 0.0
      %1554 = vmatpush1.msra.mxu0 %v394
      %1555 = vmatprep.subr.mxu0 0.0
      %1556 = vmatpush1.msra.mxu0 0.0
      %1557 = vmatprep.subr.mxu0 0.0
      %1558 = vmatpush1.msra.mxu0 0.0
      %1559 = vmatprep.subr.mxu0 0.0
      %1560 = vmatpush1.msra.mxu0 0.0
      %1561 = vmatprep.subr.mxu0 0.0
      %1562 = vmatpush1.msra.mxu0 0.0
      %1563 = vmatprep.subr.mxu0 0.0
      %1564 = vmatpush1.msra.mxu0 0.0
      %1565 = vmatprep.subr.mxu0 0.0
      %1566 = vmatpush1.msra.mxu0 0.0
      %1567 = vmatprep.subr.mxu0 0.0
      %1568 = vmatpush1.msra.mxu0 0.0
      %1569 = vmatprep.subr.mxu0 0.0
      %1570 = vmatpush1.msra.mxu0 0.0
      %1571 = vmatprep.subr.mxu0 0.0
      %1572 = vmatpush1.msra.mxu0 0.0
      %1573 = vmatprep.subr.mxu0 0.0
      %1574 = vmatpush1.msra.mxu0 0.0
      %1575 = vmatprep.subr.mxu0 0.0
      %1576 = vmatpush1.msra.mxu0 0.0
      %1577 = vmatprep.subr.mxu0 0.0
      %1578 = vmatpush1.msra.mxu0 0.0
      %1579 = vmatprep.subr.mxu0 0.0
      %1580 = vmatpush1.msra.mxu0 0.0
      %1581 = vmatprep.subr.mxu0 0.0
      %1582 = vmatpush1.msra.mxu0 0.0
      %1583 = vmatprep.subr.mxu0 0.0
      %1584 = vmatpush1.msra.mxu0 0.0
      %1585 = vmatprep.subr.mxu0 0.0
      %1586 = vmatpush1.msra.mxu0 0.0
      %1587 = vmatprep.subr.mxu0 0.0
      %1588 = vmatpush1.msra.mxu0 0.0
      %1589 = vmatprep.subr.mxu0 0.0
      %1590 = vmatpush1.msra.mxu0 0.0
      %1591 = vmatprep.subr.mxu0 0.0
      %1592 = vmatpush1.msra.mxu0 0.0
      %1593 = vmatprep.subr.mxu0 0.0
      %1594 = vmatpush1.msra.mxu0 0.0
      %1595 = vmatprep.subr.mxu0 0.0
      %1596 = vmatpush1.msra.mxu0 0.0
      %1597 = vmatprep.subr.mxu0 0.0
      %1598 = vmatpush1.msra.mxu0 0.0
      %1599 = vmatprep.subr.mxu0 0.0
      %1600 = vmatpush1.msra.mxu0 0.0
      %1601 = vmatprep.subr.mxu0 0.0
      %1602 = vmatpush1.msra.mxu0 0.0
      %1603 = vmatprep.subr.mxu0 0.0
      %1604 = vmatpush1.msra.mxu0 0.0
      %1605 = vmatprep.subr.mxu0 0.0
      %1606 = vmatpush1.msra.mxu0 0.0
      %1607 = vmatprep.subr.mxu0 0.0
      %1608 = vmatpush1.msra.mxu0 0.0
      %1609 = vmatprep.subr.mxu0 0.0
      %1610 = vmatpush1.msra.mxu0 0.0
      %1611 = vmatprep.mubr.f32.mxu0 0.0
      %1612 = vmatmul.mubr.f32.gmra.mrb[0].mxu0 %v1545
      %v1613 = vpop.f32.mrb[0].mxu0
      %v1614 = vadd.f32 %v395, %v1613
      %v1615 = vpop.f32.mrb[0].mxu0
      %1616 = vdwg.mxu0
      %v1617 = vadd.f32 %v1614, %v1441
      %v1618 = vxor.u32 %v1617, 2147483648
      %v1619 = vmul.f32 %v1618, 1.442695
      %v1620 = vpow.pop %v1619
      %v1621 = vadd.f32 %v1620, 1.0
      %v1622 = vrcp.pop %v1621
      %v1623 = vmul.f32 1.0, %v1622
      %v1624 = vmul.f32 %v1623, %v1446
      %1626 = vrot.lane.b32.xlu0 %v1624, 64
      %v1627 = vpop.permute.xlu0 %1626
      %v1629 = vadd.f32 %v1614, %v1627
      %v1630 = vtanh.pop %v1629
      %v1631 = vsub.f32 1.0, %v1623
      %1633 = vrot.lane.b32.xlu0 %v1630, 96
      %v1634 = vpop.permute.xlu0 %1633
      %v1636 = vmul.f32 %v1631, %v1634
      %v1637 = vmul.f32 %v1623, %v1199
      %v1638 = vadd.f32 %v1636, %v1637
      %1640 = vrot.lane.b32.xlu0 %v1638, 96
      %v1641 = vpop.permute.xlu0 %1640
      %v1642 = vsel %vm405, %v1641, 0
      %1644 = vmatprep.subr.mxu0 0.0
      %1645 = vmatpush1.msra.mxu0 %v396
      %1646 = vmatprep.subr.mxu0 0.0
      %1647 = vmatpush1.msra.mxu0 %v397
      %1648 = vmatprep.subr.mxu0 0.0
      %1649 = vmatpush1.msra.mxu0 %v398
      %1650 = vmatprep.subr.mxu0 0.0
      %1651 = vmatpush1.msra.mxu0 %v399
      %1652 = vmatprep.subr.mxu0 0.0
      %1653 = vmatpush1.msra.mxu0 0.0
      %1654 = vmatprep.subr.mxu0 0.0
      %1655 = vmatpush1.msra.mxu0 0.0
      %1656 = vmatprep.subr.mxu0 0.0
      %1657 = vmatpush1.msra.mxu0 0.0
      %1658 = vmatprep.subr.mxu0 0.0
      %1659 = vmatpush1.msra.mxu0 0.0
      %1660 = vmatprep.subr.mxu0 0.0
      %1661 = vmatpush1.msra.mxu0 0.0
      %1662 = vmatprep.subr.mxu0 0.0
      %1663 = vmatpush1.msra.mxu0 0.0
      %1664 = vmatprep.subr.mxu0 0.0
      %1665 = vmatpush1.msra.mxu0 0.0
      %1666 = vmatprep.subr.mxu0 0.0
      %1667 = vmatpush1.msra.mxu0 0.0
      %1668 = vmatprep.subr.mxu0 0.0
      %1669 = vmatpush1.msra.mxu0 0.0
      %1670 = vmatprep.subr.mxu0 0.0
      %1671 = vmatpush1.msra.mxu0 0.0
      %1672 = vmatprep.subr.mxu0 0.0
      %1673 = vmatpush1.msra.mxu0 0.0
      %1674 = vmatprep.subr.mxu0 0.0
      %1675 = vmatpush1.msra.mxu0 0.0
      %1676 = vmatprep.subr.mxu0 0.0
      %1677 = vmatpush1.msra.mxu0 0.0
      %1678 = vmatprep.subr.mxu0 0.0
      %1679 = vmatpush1.msra.mxu0 0.0
      %1680 = vmatprep.subr.mxu0 0.0
      %1681 = vmatpush1.msra.mxu0 0.0
      %1682 = vmatprep.subr.mxu0 0.0
      %1683 = vmatpush1.msra.mxu0 0.0
      %1684 = vmatprep.subr.mxu0 0.0
      %1685 = vmatpush1.msra.mxu0 0.0
      %1686 = vmatprep.subr.mxu0 0.0
      %1687 = vmatpush1.msra.mxu0 0.0
      %1688 = vmatprep.subr.mxu0 0.0
      %1689 = vmatpush1.msra.mxu0 0.0
      %1690 = vmatprep.subr.mxu0 0.0
      %1691 = vmatpush1.msra.mxu0 0.0
      %1692 = vmatprep.subr.mxu0 0.0
      %1693 = vmatpush1.msra.mxu0 0.0
      %1694 = vmatprep.subr.mxu0 0.0
      %1695 = vmatpush1.msra.mxu0 0.0
      %1696 = vmatprep.subr.mxu0 0.0
      %1697 = vmatpush1.msra.mxu0 0.0
      %1698 = vmatprep.subr.mxu0 0.0
      %1699 = vmatpush1.msra.mxu0 0.0
      %1700 = vmatprep.subr.mxu0 0.0
      %1701 = vmatpush1.msra.mxu0 0.0
      %1702 = vmatprep.subr.mxu0 0.0
      %1703 = vmatpush1.msra.mxu0 0.0
      %1704 = vmatprep.subr.mxu0 0.0
      %1705 = vmatpush1.msra.mxu0 0.0
      %1706 = vmatprep.subr.mxu0 0.0
      %1707 = vmatpush1.msra.mxu0 0.0
      %1708 = vmatprep.mubr.f32.mxu0 0.0
      %1709 = vmatmul.mubr.f32.gmra.mrb[0].mxu0 %v1642
      %v1710 = vpop.f32.mrb[0].mxu0
      %v1711 = vadd.f32 %v400, %v1710
      %v1712 = vpop.f32.mrb[0].mxu0
      %1713 = vdwg.mxu0
      %v1714 = vsel %vm832, %v1711, -inf
      %1715 = vmax.xlane.f32.xlu0 %v1714
      %v1716 = vpop.xlane.xlu0 %1715
      %v1717 = vsub.f32 %v1711, %v1716
      %v1718 = vmul.f32 %v1717, 1.442695
      %v1719 = vpow.pop %v1718
      %v1720 = vsel %vm832, %v1719, 0.0
      %1721 = vadd.xlane.f32.xlu0 %v1720
      %v1722 = vpop.xlane.xlu0 %1721
      %v1723 = vlog2.pop %v1722
      %v1724 = vmul.f32 %v1723, 0.6931472
      %v1725 = vsub.f32 %v1717, %v1724
      %1726 = vrot.lane.b32.xlu0 %v1638, 32
      %v1727 = vpop.permute.xlu0 %1726
      %1729 = vrot.lane.b32.xlu0 %v1466, 64
      %v1730 = vpop.permute.xlu0 %1729
      %v1732 = vsel %vm851, %v1725, %v1727
      %v1733 = vsel %vm853, %v1732, %v1730
      %v1734 = vsel %vm855, %v1733, 0.0
      %1735 = vst [vmem:[%s371 + $0x2] sm:$0x1] %v1734
      %s1736 = sadd.s32 %s372, 3
      %s1737 = sld [smem:[#allocation4 + %s1736]]
      %s1738 = scalar_lea.vmem %s1, %s1737
      %v1739 = vld [vmem:[%s1738] sm:$0x1]
      %v1741 = vsel %vm405, %v1739, 0
      %1743 = vmatprep.subr.mxu0 0.0
      %1744 = vmatpush1.msra.mxu0 %v380
      %1745 = vmatprep.subr.mxu0 0.0
      %1746 = vmatpush1.msra.mxu0 %v381
      %1747 = vmatprep.subr.mxu0 0.0
      %1748 = vmatpush1.msra.mxu0 %v382
      %1749 = vmatprep.subr.mxu0 0.0
      %1750 = vmatpush1.msra.mxu0 %v383
      %1751 = vmatprep.subr.mxu0 0.0
      %1752 = vmatpush1.msra.mxu0 0.0
      %1753 = vmatprep.subr.mxu0 0.0
      %1754 = vmatpush1.msra.mxu0 0.0
      %1755 = vmatprep.subr.mxu0 0.0
      %1756 = vmatpush1.msra.mxu0 0.0
      %1757 = vmatprep.subr.mxu0 0.0
      %1758 = vmatpush1.msra.mxu0 0.0
      %1759 = vmatprep.subr.mxu0 0.0
      %1760 = vmatpush1.msra.mxu0 0.0
      %1761 = vmatprep.subr.mxu0 0.0
      %1762 = vmatpush1.msra.mxu0 0.0
      %1763 = vmatprep.subr.mxu0 0.0
      %1764 = vmatpush1.msra.mxu0 0.0
      %1765 = vmatprep.subr.mxu0 0.0
      %1766 = vmatpush1.msra.mxu0 0.0
      %1767 = vmatprep.subr.mxu0 0.0
      %1768 = vmatpush1.msra.mxu0 0.0
      %1769 = vmatprep.subr.mxu0 0.0
      %1770 = vmatpush1.msra.mxu0 0.0
      %1771 = vmatprep.subr.mxu0 0.0
      %1772 = vmatpush1.msra.mxu0 0.0
      %1773 = vmatprep.subr.mxu0 0.0
      %1774 = vmatpush1.msra.mxu0 0.0
      %1775 = vmatprep.subr.mxu0 0.0
      %1776 = vmatpush1.msra.mxu0 0.0
      %1777 = vmatprep.subr.mxu0 0.0
      %1778 = vmatpush1.msra.mxu0 0.0
      %1779 = vmatprep.subr.mxu0 0.0
      %1780 = vmatpush1.msra.mxu0 0.0
      %1781 = vmatprep.subr.mxu0 0.0
      %1782 = vmatpush1.msra.mxu0 0.0
      %1783 = vmatprep.subr.mxu0 0.0
      %1784 = vmatpush1.msra.mxu0 0.0
      %1785 = vmatprep.subr.mxu0 0.0
      %1786 = vmatpush1.msra.mxu0 0.0
      %1787 = vmatprep.subr.mxu0 0.0
      %1788 = vmatpush1.msra.mxu0 0.0
      %1789 = vmatprep.subr.mxu0 0.0
      %1790 = vmatpush1.msra.mxu0 0.0
      %1791 = vmatprep.subr.mxu0 0.0
      %1792 = vmatpush1.msra.mxu0 0.0
      %1793 = vmatprep.subr.mxu0 0.0
      %1794 = vmatpush1.msra.mxu0 0.0
      %1795 = vmatprep.subr.mxu0 0.0
      %1796 = vmatpush1.msra.mxu0 0.0
      %1797 = vmatprep.subr.mxu0 0.0
      %1798 = vmatpush1.msra.mxu0 0.0
      %1799 = vmatprep.subr.mxu0 0.0
      %1800 = vmatpush1.msra.mxu0 0.0
      %1801 = vmatprep.subr.mxu0 0.0
      %1802 = vmatpush1.msra.mxu0 0.0
      %1803 = vmatprep.subr.mxu0 0.0
      %1804 = vmatpush1.msra.mxu0 0.0
      %1805 = vmatprep.subr.mxu0 0.0
      %1806 = vmatpush1.msra.mxu0 0.0
      %1807 = vmatprep.mubr.f32.mxu0 0.0
      %1808 = vmatmul.mubr.f32.gmra.mrb[0].mxu0 %v1741
      %v1809 = vpop.f32.mrb[0].mxu0
      %v1810 = vadd.f32 %v384, %v1809
      %v1811 = vpop.f32.mrb[0].mxu0
      %1812 = vdwg.mxu0
      %1813 = vmatprep.subr.mxu0 0.0
      %1814 = vmatpush1.msra.mxu0 %v385
      %1815 = vmatprep.subr.mxu0 0.0
      %1816 = vmatpush1.msra.mxu0 %v386
      %1817 = vmatprep.subr.mxu0 0.0
      %1818 = vmatpush1.msra.mxu0 %v387
      %1819 = vmatprep.subr.mxu0 0.0
      %1820 = vmatpush1.msra.mxu0 %v388
      %1821 = vmatprep.subr.mxu0 0.0
      %1822 = vmatpush1.msra.mxu0 0.0
      %1823 = vmatprep.subr.mxu0 0.0
      %1824 = vmatpush1.msra.mxu0 0.0
      %1825 = vmatprep.subr.mxu0 0.0
      %1826 = vmatpush1.msra.mxu0 0.0
      %1827 = vmatprep.subr.mxu0 0.0
      %1828 = vmatpush1.msra.mxu0 0.0
      %1829 = vmatprep.subr.mxu0 0.0
      %1830 = vmatpush1.msra.mxu0 0.0
      %1831 = vmatprep.subr.mxu0 0.0
      %1832 = vmatpush1.msra.mxu0 0.0
      %1833 = vmatprep.subr.mxu0 0.0
      %1834 = vmatpush1.msra.mxu0 0.0
      %1835 = vmatprep.subr.mxu0 0.0
      %1836 = vmatpush1.msra.mxu0 0.0
      %1837 = vmatprep.subr.mxu0 0.0
      %1838 = vmatpush1.msra.mxu0 0.0
      %1839 = vmatprep.subr.mxu0 0.0
      %1840 = vmatpush1.msra.mxu0 0.0
      %1841 = vmatprep.subr.mxu0 0.0
      %1842 = vmatpush1.msra.mxu0 0.0
      %1843 = vmatprep.subr.mxu0 0.0
      %1844 = vmatpush1.msra.mxu0 0.0
      %1845 = vmatprep.subr.mxu0 0.0
      %1846 = vmatpush1.msra.mxu0 0.0
      %1847 = vmatprep.subr.mxu0 0.0
      %1848 = vmatpush1.msra.mxu0 0.0
      %1849 = vmatprep.subr.mxu0 0.0
      %1850 = vmatpush1.msra.mxu0 0.0
      %1851 = vmatprep.subr.mxu0 0.0
      %1852 = vmatpush1.msra.mxu0 0.0
      %1853 = vmatprep.subr.mxu0 0.0
      %1854 = vmatpush1.msra.mxu0 0.0
      %1855 = vmatprep.subr.mxu0 0.0
      %1856 = vmatpush1.msra.mxu0 0.0
      %1857 = vmatprep.subr.mxu0 0.0
      %1858 = vmatpush1.msra.mxu0 0.0
      %1859 = vmatprep.subr.mxu0 0.0
      %1860 = vmatpush1.msra.mxu0 0.0
      %1861 = vmatprep.subr.mxu0 0.0
      %1862 = vmatpush1.msra.mxu0 0.0
      %1863 = vmatprep.subr.mxu0 0.0
      %1864 = vmatpush1.msra.mxu0 0.0
      %1865 = vmatprep.subr.mxu0 0.0
      %1866 = vmatpush1.msra.mxu0 0.0
      %1867 = vmatprep.subr.mxu0 0.0
      %1868 = vmatpush1.msra.mxu0 0.0
      %1869 = vmatprep.subr.mxu0 0.0
      %1870 = vmatpush1.msra.mxu0 0.0
      %1871 = vmatprep.subr.mxu0 0.0
      %1872 = vmatpush1.msra.mxu0 0.0
      %1873 = vmatprep.subr.mxu0 0.0
      %1874 = vmatpush1.msra.mxu0 0.0
      %1875 = vmatprep.subr.mxu0 0.0
      %1876 = vmatpush1.msra.mxu0 0.0
      %1877 = vmatprep.mubr.f32.mxu0 0.0
      %1878 = vmatmul.mubr.f32.gmra.mrb[0].mxu0 %v1642
      %v1879 = vpop.f32.mrb[0].mxu0
      %v1880 = vadd.f32 %v389, %v1879
      %v1881 = vpop.f32.mrb[0].mxu0
      %1882 = vdwg.mxu0
      %1884 = vrot.lane.b32.xlu0 %v1880, 64
      %v1885 = vpop.permute.xlu0 %1884
      %v1887 = vadd.f32 %v1810, %v1885
      %v1888 = vsel %vm557, %v1887, -inf
      %1889 = vmax.xlane.f32.xlu0 %v1888
      %v1890 = vpop.xlane.xlu0 %1889
      %v1891 = vsub.f32 %v1887, %v1890
      %v1892 = vmul.f32 %v1891, 1.442695
      %v1893 = vpow.pop %v1892
      %1895 = vrot.lane.b32.xlu0 %v1893, 96
      %v1896 = vpop.permute.xlu0 %1895
      %v1898 = vsel %vm568, %v1896, 0.0
      %1899 = vadd.xlane.f32.xlu0 %v1898
      %v1900 = vpop.xlane.xlu0 %1899
      %v1901 = vrcp.pop %v1900
      %v1902 = vmul.f32 %v1900, %v1901
      %v1903 = vsub.f32 2.0, %v1902
      %v1904 = vmul.f32 %v1901, %v1903
      %v1905 = vmul.f32 %v1893, %v1904
      %1907 = vrot.lane.b32.xlu0 %v1905, 96
      %v1908 = vpop.permute.xlu0 %1907
      %v1909 = vsel %vm580, %v1908, 0
      %1911 = vmatprep.subr.mxu0 0.0
      %1912 = vmatpush1.msra.mxu0 %v390
      %1913 = vmatprep.subr.mxu0 0.0
      %1914 = vmatpush1.msra.mxu0 0.0
      %1915 = vmatprep.subr.mxu0 0.0
      %1916 = vmatpush1.msra.mxu0 0.0
      %1917 = vmatprep.subr.mxu0 0.0
      %1918 = vmatpush1.msra.mxu0 0.0
      %1919 = vmatprep.subr.mxu0 0.0
      %1920 = vmatpush1.msra.mxu0 0.0
      %1921 = vmatprep.subr.mxu0 0.0
      %1922 = vmatpush1.msra.mxu0 0.0
      %1923 = vmatprep.subr.mxu0 0.0
      %1924 = vmatpush1.msra.mxu0 0.0
      %1925 = vmatprep.subr.mxu0 0.0
      %1926 = vmatpush1.msra.mxu0 0.0
      %1927 = vmatprep.subr.mxu0 0.0
      %1928 = vmatpush1.msra.mxu0 0.0
      %1929 = vmatprep.subr.mxu0 0.0
      %1930 = vmatpush1.msra.mxu0 0.0
      %1931 = vmatprep.subr.mxu0 0.0
      %1932 = vmatpush1.msra.mxu0 0.0
      %1933 = vmatprep.subr.mxu0 0.0
      %1934 = vmatpush1.msra.mxu0 0.0
      %1935 = vmatprep.subr.mxu0 0.0
      %1936 = vmatpush1.msra.mxu0 0.0
      %1937 = vmatprep.subr.mxu0 0.0
      %1938 = vmatpush1.msra.mxu0 0.0
      %1939 = vmatprep.subr.mxu0 0.0
      %1940 = vmatpush1.msra.mxu0 0.0
      %1941 = vmatprep.subr.mxu0 0.0
      %1942 = vmatpush1.msra.mxu0 0.0
      %1943 = vmatprep.subr.mxu0 0.0
      %1944 = vmatpush1.msra.mxu0 0.0
      %1945 = vmatprep.subr.mxu0 0.0
      %1946 = vmatpush1.msra.mxu0 0.0
      %1947 = vmatprep.subr.mxu0 0.0
      %1948 = vmatpush1.msra.mxu0 0.0
      %1949 = vmatprep.subr.mxu0 0.0
      %1950 = vmatpush1.msra.mxu0 0.0
      %1951 = vmatprep.subr.mxu0 0.0
      %1952 = vmatpush1.msra.mxu0 0.0
      %1953 = vmatprep.subr.mxu0 0.0
      %1954 = vmatpush1.msra.mxu0 0.0
      %1955 = vmatprep.subr.mxu0 0.0
      %1956 = vmatpush1.msra.mxu0 0.0
      %1957 = vmatprep.subr.mxu0 0.0
      %1958 = vmatpush1.msra.mxu0 0.0
      %1959 = vmatprep.subr.mxu0 0.0
      %1960 = vmatpush1.msra.mxu0 0.0
      %1961 = vmatprep.subr.mxu0 0.0
      %1962 = vmatpush1.msra.mxu0 0.0
      %1963 = vmatprep.subr.mxu0 0.0
      %1964 = vmatpush1.msra.mxu0 0.0
      %1965 = vmatprep.subr.mxu0 0.0
      %1966 = vmatpush1.msra.mxu0 0.0
      %1967 = vmatprep.subr.mxu0 0.0
      %1968 = vmatpush1.msra.mxu0 0.0
      %1969 = vmatprep.subr.mxu0 0.0
      %1970 = vmatpush1.msra.mxu0 0.0
      %1971 = vmatprep.subr.mxu0 0.0
      %1972 = vmatpush1.msra.mxu0 0.0
      %1973 = vmatprep.subr.mxu0 0.0
      %1974 = vmatpush1.msra.mxu0 0.0
      %1975 = vmatprep.mubr.f32.mxu0 0.0
      %1976 = vmatmul.mubr.f32.gmra.mrb[0].mxu0 %v1909
      %v1977 = vpop.f32.mrb[0].mxu0
      %v1978 = vadd.f32 0.0, %v1977
      %v1979 = vpop.f32.mrb[0].mxu0
      %1980 = vdwg.mxu0
      %v1981 = vadd.f32 %v1810, %v1978
      %v1982 = vmax.f32 %v1981, 0.0
      %v1984 = vsel %vm405, %v1982, 0
      %1986 = vmatprep.subr.mxu0 0.0
      %1987 = vmatpush1.msra.mxu0 %v391
      %1988 = vmatprep.subr.mxu0 0.0
      %1989 = vmatpush1.msra.mxu0 %v392
      %1990 = vmatprep.subr.mxu0 0.0
      %1991 = vmatpush1.msra.mxu0 %v393
      %1992 = vmatprep.subr.mxu0 0.0
      %1993 = vmatpush1.msra.mxu0 %v394
      %1994 = vmatprep.subr.mxu0 0.0
      %1995 = vmatpush1.msra.mxu0 0.0
      %1996 = vmatprep.subr.mxu0 0.0
      %1997 = vmatpush1.msra.mxu0 0.0
      %1998 = vmatprep.subr.mxu0 0.0
      %1999 = vmatpush1.msra.mxu0 0.0
      %2000 = vmatprep.subr.mxu0 0.0
      %2001 = vmatpush1.msra.mxu0 0.0
      %2002 = vmatprep.subr.mxu0 0.0
      %2003 = vmatpush1.msra.mxu0 0.0
      %2004 = vmatprep.subr.mxu0 0.0
      %2005 = vmatpush1.msra.mxu0 0.0
      %2006 = vmatprep.subr.mxu0 0.0
      %2007 = vmatpush1.msra.mxu0 0.0
      %2008 = vmatprep.subr.mxu0 0.0
      %2009 = vmatpush1.msra.mxu0 0.0
      %2010 = vmatprep.subr.mxu0 0.0
      %2011 = vmatpush1.msra.mxu0 0.0
      %2012 = vmatprep.subr.mxu0 0.0
      %2013 = vmatpush1.msra.mxu0 0.0
      %2014 = vmatprep.subr.mxu0 0.0
      %2015 = vmatpush1.msra.mxu0 0.0
      %2016 = vmatprep.subr.mxu0 0.0
      %2017 = vmatpush1.msra.mxu0 0.0
      %2018 = vmatprep.subr.mxu0 0.0
      %2019 = vmatpush1.msra.mxu0 0.0
      %2020 = vmatprep.subr.mxu0 0.0
      %2021 = vmatpush1.msra.mxu0 0.0
      %2022 = vmatprep.subr.mxu0 0.0
      %2023 = vmatpush1.msra.mxu0 0.0
      %2024 = vmatprep.subr.mxu0 0.0
      %2025 = vmatpush1.msra.mxu0 0.0
      %2026 = vmatprep.subr.mxu0 0.0
      %2027 = vmatpush1.msra.mxu0 0.0
      %2028 = vmatprep.subr.mxu0 0.0
      %2029 = vmatpush1.msra.mxu0 0.0
      %2030 = vmatprep.subr.mxu0 0.0
      %2031 = vmatpush1.msra.mxu0 0.0
      %2032 = vmatprep.subr.mxu0 0.0
      %2033 = vmatpush1.msra.mxu0 0.0
      %2034 = vmatprep.subr.mxu0 0.0
      %2035 = vmatpush1.msra.mxu0 0.0
      %2036 = vmatprep.subr.mxu0 0.0
      %2037 = vmatpush1.msra.mxu0 0.0
      %2038 = vmatprep.subr.mxu0 0.0
      %2039 = vmatpush1.msra.mxu0 0.0
      %2040 = vmatprep.subr.mxu0 0.0
      %2041 = vmatpush1.msra.mxu0 0.0
      %2042 = vmatprep.subr.mxu0 0.0
      %2043 = vmatpush1.msra.mxu0 0.0
      %2044 = vmatprep.subr.mxu0 0.0
      %2045 = vmatpush1.msra.mxu0 0.0
      %2046 = vmatprep.subr.mxu0 0.0
      %2047 = vmatpush1.msra.mxu0 0.0
      %2048 = vmatprep.subr.mxu0 0.0
      %2049 = vmatpush1.msra.mxu0 0.0
      %2050 = vmatprep.mubr.f32.mxu0 0.0
      %2051 = vmatmul.mubr.f32.gmra.mrb[0].mxu0 %v1984
      %v2052 = vpop.f32.mrb[0].mxu0
      %v2053 = vadd.f32 %v395, %v2052
      %v2054 = vpop.f32.mrb[0].mxu0
      %2055 = vdwg.mxu0
      %v2056 = vadd.f32 %v2053, %v1880
      %v2057 = vxor.u32 %v2056, 2147483648
      %v2058 = vmul.f32 %v2057, 1.442695
      %v2059 = vpow.pop %v2058
      %v2060 = vadd.f32 %v2059, 1.0
      %v2061 = vrcp.pop %v2060
      %v2062 = vmul.f32 1.0, %v2061
      %v2063 = vmul.f32 %v2062, %v1885
      %2065 = vrot.lane.b32.xlu0 %v2063, 64
      %v2066 = vpop.permute.xlu0 %2065
      %v2068 = vadd.f32 %v2053, %v2066
      %v2069 = vtanh.pop %v2068
      %v2070 = vsub.f32 1.0, %v2062
      %2072 = vrot.lane.b32.xlu0 %v2069, 96
      %v2073 = vpop.permute.xlu0 %2072
      %v2075 = vmul.f32 %v2070, %v2073
      %v2076 = vmul.f32 %v2062, %v1638
      %v2077 = vadd.f32 %v2075, %v2076
      %2079 = vrot.lane.b32.xlu0 %v2077, 96
      %v2080 = vpop.permute.xlu0 %2079
      %v2081 = vsel %vm405, %v2080, 0
      %2083 = vmatprep.subr.mxu0 0.0
      %2084 = vmatpush1.msra.mxu0 %v396
      %2085 = vmatprep.subr.mxu0 0.0
      %2086 = vmatpush1.msra.mxu0 %v397
      %2087 = vmatprep.subr.mxu0 0.0
      %2088 = vmatpush1.msra.mxu0 %v398
      %2089 = vmatprep.subr.mxu0 0.0
      %2090 = vmatpush1.msra.mxu0 %v399
      %2091 = vmatprep.subr.mxu0 0.0
      %2092 = vmatpush1.msra.mxu0 0.0
      %2093 = vmatprep.subr.mxu0 0.0
      %2094 = vmatpush1.msra.mxu0 0.0
      %2095 = vmatprep.subr.mxu0 0.0
      %2096 = vmatpush1.msra.mxu0 0.0
      %2097 = vmatprep.subr.mxu0 0.0
      %2098 = vmatpush1.msra.mxu0 0.0
      %2099 = vmatprep.subr.mxu0 0.0
      %2100 = vmatpush1.msra.mxu0 0.0
      %2101 = vmatprep.subr.mxu0 0.0
      %2102 = vmatpush1.msra.mxu0 0.0
      %2103 = vmatprep.subr.mxu0 0.0
      %2104 = vmatpush1.msra.mxu0 0.0
      %2105 = vmatprep.subr.mxu0 0.0
      %2106 = vmatpush1.msra.mxu0 0.0
      %2107 = vmatprep.subr.mxu0 0.0
      %2108 = vmatpush1.msra.mxu0 0.0
      %2109 = vmatprep.subr.mxu0 0.0
      %2110 = vmatpush1.msra.mxu0 0.0
      %2111 = vmatprep.subr.mxu0 0.0
      %2112 = vmatpush1.msra.mxu0 0.0
      %2113 = vmatprep.subr.mxu0 0.0
      %2114 = vmatpush1.msra.mxu0 0.0
      %2115 = vmatprep.subr.mxu0 0.0
      %2116 = vmatpush1.msra.mxu0 0.0
      %2117 = vmatprep.subr.mxu0 0.0
      %2118 = vmatpush1.msra.mxu0 0.0
      %2119 = vmatprep.subr.mxu0 0.0
      %2120 = vmatpush1.msra.mxu0 0.0
      %2121 = vmatprep.subr.mxu0 0.0
      %2122 = vmatpush1.msra.mxu0 0.0
      %2123 = vmatprep.subr.mxu0 0.0
      %2124 = vmatpush1.msra.mxu0 0.0
      %2125 = vmatprep.subr.mxu0 0.0
      %2126 = vmatpush1.msra.mxu0 0.0
      %2127 = vmatprep.subr.mxu0 0.0
      %2128 = vmatpush1.msra.mxu0 0.0
      %2129 = vmatprep.subr.mxu0 0.0
      %2130 = vmatpush1.msra.mxu0 0.0
      %2131 = vmatprep.subr.mxu0 0.0
      %2132 = vmatpush1.msra.mxu0 0.0
      %2133 = vmatprep.subr.mxu0 0.0
      %2134 = vmatpush1.msra.mxu0 0.0
      %2135 = vmatprep.subr.mxu0 0.0
      %2136 = vmatpush1.msra.mxu0 0.0
      %2137 = vmatprep.subr.mxu0 0.0
      %2138 = vmatpush1.msra.mxu0 0.0
      %2139 = vmatprep.subr.mxu0 0.0
      %2140 = vmatpush1.msra.mxu0 0.0
      %2141 = vmatprep.subr.mxu0 0.0
      %2142 = vmatpush1.msra.mxu0 0.0
      %2143 = vmatprep.subr.mxu0 0.0
      %2144 = vmatpush1.msra.mxu0 0.0
      %2145 = vmatprep.subr.mxu0 0.0
      %2146 = vmatpush1.msra.mxu0 0.0
      %2147 = vmatprep.mubr.f32.mxu0 0.0
      %2148 = vmatmul.mubr.f32.gmra.mrb[0].mxu0 %v2081
      %v2149 = vpop.f32.mrb[0].mxu0
      %v2150 = vadd.f32 %v400, %v2149
      %v2151 = vpop.f32.mrb[0].mxu0
      %2152 = vdwg.mxu0
      %v2153 = vsel %vm832, %v2150, -inf
      %2154 = vmax.xlane.f32.xlu0 %v2153
      %v2155 = vpop.xlane.xlu0 %2154
      %v2156 = vsub.f32 %v2150, %v2155
      %v2157 = vmul.f32 %v2156, 1.442695
      %v2158 = vpow.pop %v2157
      %v2159 = vsel %vm832, %v2158, 0.0
      %2160 = vadd.xlane.f32.xlu0 %v2159
      %v2161 = vpop.xlane.xlu0 %2160
      %v2162 = vlog2.pop %v2161
      %v2163 = vmul.f32 %v2162, 0.6931472
      %v2164 = vsub.f32 %v2156, %v2163
      %2165 = vrot.lane.b32.xlu0 %v2077, 32
      %v2166 = vpop.permute.xlu0 %2165
      %2168 = vrot.lane.b32.xlu0 %v1905, 64
      %v2169 = vpop.permute.xlu0 %2168
      %v2171 = vsel %vm851, %v2164, %v2166
      %v2172 = vsel %vm853, %v2171, %v2169
      %v2173 = vsel %vm855, %v2172, 0.0
      %2174 = vst [vmem:[%s371 + $0x3] sm:$0x1] %v2173
      %s2175 = sadd.s32 %s372, 4
      %s2176 = sld [smem:[#allocation4 + %s2175]]
      %s2177 = scalar_lea.vmem %s1, %s2176
      %v2178 = vld [vmem:[%s2177] sm:$0x1]
      %v2180 = vsel %vm405, %v2178, 0
      %2182 = vmatprep.subr.mxu0 0.0
      %2183 = vmatpush1.msra.mxu0 %v380
      %2184 = vmatprep.subr.mxu0 0.0
      %2185 = vmatpush1.msra.mxu0 %v381
      %2186 = vmatprep.subr.mxu0 0.0
      %2187 = vmatpush1.msra.mxu0 %v382
      %2188 = vmatprep.subr.mxu0 0.0
      %2189 = vmatpush1.msra.mxu0 %v383
      %2190 = vmatprep.subr.mxu0 0.0
      %2191 = vmatpush1.msra.mxu0 0.0
      %2192 = vmatprep.subr.mxu0 0.0
      %2193 = vmatpush1.msra.mxu0 0.0
      %2194 = vmatprep.subr.mxu0 0.0
      %2195 = vmatpush1.msra.mxu0 0.0
      %2196 = vmatprep.subr.mxu0 0.0
      %2197 = vmatpush1.msra.mxu0 0.0
      %2198 = vmatprep.subr.mxu0 0.0
      %2199 = vmatpush1.msra.mxu0 0.0
      %2200 = vmatprep.subr.mxu0 0.0
      %2201 = vmatpush1.msra.mxu0 0.0
      %2202 = vmatprep.subr.mxu0 0.0
      %2203 = vmatpush1.msra.mxu0 0.0
      %2204 = vmatprep.subr.mxu0 0.0
      %2205 = vmatpush1.msra.mxu0 0.0
      %2206 = vmatprep.subr.mxu0 0.0
      %2207 = vmatpush1.msra.mxu0 0.0
      %2208 = vmatprep.subr.mxu0 0.0
      %2209 = vmatpush1.msra.mxu0 0.0
      %2210 = vmatprep.subr.mxu0 0.0
      %2211 = vmatpush1.msra.mxu0 0.0
      %2212 = vmatprep.subr.mxu0 0.0
      %2213 = vmatpush1.msra.mxu0 0.0
      %2214 = vmatprep.subr.mxu0 0.0
      %2215 = vmatpush1.msra.mxu0 0.0
      %2216 = vmatprep.subr.mxu0 0.0
      %2217 = vmatpush1.msra.mxu0 0.0
      %2218 = vmatprep.subr.mxu0 0.0
      %2219 = vmatpush1.msra.mxu0 0.0
      %2220 = vmatprep.subr.mxu0 0.0
      %2221 = vmatpush1.msra.mxu0 0.0
      %2222 = vmatprep.subr.mxu0 0.0
      %2223 = vmatpush1.msra.mxu0 0.0
      %2224 = vmatprep.subr.mxu0 0.0
      %2225 = vmatpush1.msra.mxu0 0.0
      %2226 = vmatprep.subr.mxu0 0.0
      %2227 = vmatpush1.msra.mxu0 0.0
      %2228 = vmatprep.subr.mxu0 0.0
      %2229 = vmatpush1.msra.mxu0 0.0
      %2230 = vmatprep.subr.mxu0 0.0
      %2231 = vmatpush1.msra.mxu0 0.0
      %2232 = vmatprep.subr.mxu0 0.0
      %2233 = vmatpush1.msra.mxu0 0.0
      %2234 = vmatprep.subr.mxu0 0.0
      %2235 = vmatpush1.msra.mxu0 0.0
      %2236 = vmatprep.subr.mxu0 0.0
      %2237 = vmatpush1.msra.mxu0 0.0
      %2238 = vmatprep.subr.mxu0 0.0
      %2239 = vmatpush1.msra.mxu0 0.0
      %2240 = vmatprep.subr.mxu0 0.0
      %2241 = vmatpush1.msra.mxu0 0.0
      %2242 = vmatprep.subr.mxu0 0.0
      %2243 = vmatpush1.msra.mxu0 0.0
      %2244 = vmatprep.subr.mxu0 0.0
      %2245 = vmatpush1.msra.mxu0 0.0
      %2246 = vmatprep.mubr.f32.mxu0 0.0
      %2247 = vmatmul.mubr.f32.gmra.mrb[0].mxu0 %v2180
      %v2248 = vpop.f32.mrb[0].mxu0
      %v2249 = vadd.f32 %v384, %v2248
      %v2250 = vpop.f32.mrb[0].mxu0
      %2251 = vdwg.mxu0
      %2252 = vmatprep.subr.mxu0 0.0
      %2253 = vmatpush1.msra.mxu0 %v385
      %2254 = vmatprep.subr.mxu0 0.0
      %2255 = vmatpush1.msra.mxu0 %v386
      %2256 = vmatprep.subr.mxu0 0.0
      %2257 = vmatpush1.msra.mxu0 %v387
      %2258 = vmatprep.subr.mxu0 0.0
      %2259 = vmatpush1.msra.mxu0 %v388
      %2260 = vmatprep.subr.mxu0 0.0
      %2261 = vmatpush1.msra.mxu0 0.0
      %2262 = vmatprep.subr.mxu0 0.0
      %2263 = vmatpush1.msra.mxu0 0.0
      %2264 = vmatprep.subr.mxu0 0.0
      %2265 = vmatpush1.msra.mxu0 0.0
      %2266 = vmatprep.subr.mxu0 0.0
      %2267 = vmatpush1.msra.mxu0 0.0
      %2268 = vmatprep.subr.mxu0 0.0
      %2269 = vmatpush1.msra.mxu0 0.0
      %2270 = vmatprep.subr.mxu0 0.0
      %2271 = vmatpush1.msra.mxu0 0.0
      %2272 = vmatprep.subr.mxu0 0.0
      %2273 = vmatpush1.msra.mxu0 0.0
      %2274 = vmatprep.subr.mxu0 0.0
      %2275 = vmatpush1.msra.mxu0 0.0
      %2276 = vmatprep.subr.mxu0 0.0
      %2277 = vmatpush1.msra.mxu0 0.0
      %2278 = vmatprep.subr.mxu0 0.0
      %2279 = vmatpush1.msra.mxu0 0.0
      %2280 = vmatprep.subr.mxu0 0.0
      %2281 = vmatpush1.msra.mxu0 0.0
      %2282 = vmatprep.subr.mxu0 0.0
      %2283 = vmatpush1.msra.mxu0 0.0
      %2284 = vmatprep.subr.mxu0 0.0
      %2285 = vmatpush1.msra.mxu0 0.0
      %2286 = vmatprep.subr.mxu0 0.0
      %2287 = vmatpush1.msra.mxu0 0.0
      %2288 = vmatprep.subr.mxu0 0.0
      %2289 = vmatpush1.msra.mxu0 0.0
      %2290 = vmatprep.subr.mxu0 0.0
      %2291 = vmatpush1.msra.mxu0 0.0
      %2292 = vmatprep.subr.mxu0 0.0
      %2293 = vmatpush1.msra.mxu0 0.0
      %2294 = vmatprep.subr.mxu0 0.0
      %2295 = vmatpush1.msra.mxu0 0.0
      %2296 = vmatprep.subr.mxu0 0.0
      %2297 = vmatpush1.msra.mxu0 0.0
      %2298 = vmatprep.subr.mxu0 0.0
      %2299 = vmatpush1.msra.mxu0 0.0
      %2300 = vmatprep.subr.mxu0 0.0
      %2301 = vmatpush1.msra.mxu0 0.0
      %2302 = vmatprep.subr.mxu0 0.0
      %2303 = vmatpush1.msra.mxu0 0.0
      %2304 = vmatprep.subr.mxu0 0.0
      %2305 = vmatpush1.msra.mxu0 0.0
      %2306 = vmatprep.subr.mxu0 0.0
      %2307 = vmatpush1.msra.mxu0 0.0
      %2308 = vmatprep.subr.mxu0 0.0
      %2309 = vmatpush1.msra.mxu0 0.0
      %2310 = vmatprep.subr.mxu0 0.0
      %2311 = vmatpush1.msra.mxu0 0.0
      %2312 = vmatprep.subr.mxu0 0.0
      %2313 = vmatpush1.msra.mxu0 0.0
      %2314 = vmatprep.subr.mxu0 0.0
      %2315 = vmatpush1.msra.mxu0 0.0
      %2316 = vmatprep.mubr.f32.mxu0 0.0
      %2317 = vmatmul.mubr.f32.gmra.mrb[0].mxu0 %v2081
      %v2318 = vpop.f32.mrb[0].mxu0
      %v2319 = vadd.f32 %v389, %v2318
      %v2320 = vpop.f32.mrb[0].mxu0
      %2321 = vdwg.mxu0
      %2323 = vrot.lane.b32.xlu0 %v2319, 64
      %v2324 = vpop.permute.xlu0 %2323
      %v2326 = vadd.f32 %v2249, %v2324
      %v2327 = vsel %vm557, %v2326, -inf
      %2328 = vmax.xlane.f32.xlu0 %v2327
      %v2329 = vpop.xlane.xlu0 %2328
      %v2330 = vsub.f32 %v2326, %v2329
      %v2331 = vmul.f32 %v2330, 1.442695
      %v2332 = vpow.pop %v2331
      %2334 = vrot.lane.b32.xlu0 %v2332, 96
      %v2335 = vpop.permute.xlu0 %2334
      %v2337 = vsel %vm568, %v2335, 0.0
      %2338 = vadd.xlane.f32.xlu0 %v2337
      %v2339 = vpop.xlane.xlu0 %2338
      %v2340 = vrcp.pop %v2339
      %v2341 = vmul.f32 %v2339, %v2340
      %v2342 = vsub.f32 2.0, %v2341
      %v2343 = vmul.f32 %v2340, %v2342
      %v2344 = vmul.f32 %v2332, %v2343
      %2346 = vrot.lane.b32.xlu0 %v2344, 96
      %v2347 = vpop.permute.xlu0 %2346
      %v2348 = vsel %vm580, %v2347, 0
      %2350 = vmatprep.subr.mxu0 0.0
      %2351 = vmatpush1.msra.mxu0 %v390
      %2352 = vmatprep.subr.mxu0 0.0
      %2353 = vmatpush1.msra.mxu0 0.0
      %2354 = vmatprep.subr.mxu0 0.0
      %2355 = vmatpush1.msra.mxu0 0.0
      %2356 = vmatprep.subr.mxu0 0.0
      %2357 = vmatpush1.msra.mxu0 0.0
      %2358 = vmatprep.subr.mxu0 0.0
      %2359 = vmatpush1.msra.mxu0 0.0
      %2360 = vmatprep.subr.mxu0 0.0
      %2361 = vmatpush1.msra.mxu0 0.0
      %2362 = vmatprep.subr.mxu0 0.0
      %2363 = vmatpush1.msra.mxu0 0.0
      %2364 = vmatprep.subr.mxu0 0.0
      %2365 = vmatpush1.msra.mxu0 0.0
      %2366 = vmatprep.subr.mxu0 0.0
      %2367 = vmatpush1.msra.mxu0 0.0
      %2368 = vmatprep.subr.mxu0 0.0
      %2369 = vmatpush1.msra.mxu0 0.0
      %2370 = vmatprep.subr.mxu0 0.0
      %2371 = vmatpush1.msra.mxu0 0.0
      %2372 = vmatprep.subr.mxu0 0.0
      %2373 = vmatpush1.msra.mxu0 0.0
      %2374 = vmatprep.subr.mxu0 0.0
      %2375 = vmatpush1.msra.mxu0 0.0
      %2376 = vmatprep.subr.mxu0 0.0
      %2377 = vmatpush1.msra.mxu0 0.0
      %2378 = vmatprep.subr.mxu0 0.0
      %2379 = vmatpush1.msra.mxu0 0.0
      %2380 = vmatprep.subr.mxu0 0.0
      %2381 = vmatpush1.msra.mxu0 0.0
      %2382 = vmatprep.subr.mxu0 0.0
      %2383 = vmatpush1.msra.mxu0 0.0
      %2384 = vmatprep.subr.mxu0 0.0
      %2385 = vmatpush1.msra.mxu0 0.0
      %2386 = vmatprep.subr.mxu0 0.0
      %2387 = vmatpush1.msra.mxu0 0.0
      %2388 = vmatprep.subr.mxu0 0.0
      %2389 = vmatpush1.msra.mxu0 0.0
      %2390 = vmatprep.subr.mxu0 0.0
      %2391 = vmatpush1.msra.mxu0 0.0
      %2392 = vmatprep.subr.mxu0 0.0
      %2393 = vmatpush1.msra.mxu0 0.0
      %2394 = vmatprep.subr.mxu0 0.0
      %2395 = vmatpush1.msra.mxu0 0.0
      %2396 = vmatprep.subr.mxu0 0.0
      %2397 = vmatpush1.msra.mxu0 0.0
      %2398 = vmatprep.subr.mxu0 0.0
      %2399 = vmatpush1.msra.mxu0 0.0
      %2400 = vmatprep.subr.mxu0 0.0
      %2401 = vmatpush1.msra.mxu0 0.0
      %2402 = vmatprep.subr.mxu0 0.0
      %2403 = vmatpush1.msra.mxu0 0.0
      %2404 = vmatprep.subr.mxu0 0.0
      %2405 = vmatpush1.msra.mxu0 0.0
      %2406 = vmatprep.subr.mxu0 0.0
      %2407 = vmatpush1.msra.mxu0 0.0
      %2408 = vmatprep.subr.mxu0 0.0
      %2409 = vmatpush1.msra.mxu0 0.0
      %2410 = vmatprep.subr.mxu0 0.0
      %2411 = vmatpush1.msra.mxu0 0.0
      %2412 = vmatprep.subr.mxu0 0.0
      %2413 = vmatpush1.msra.mxu0 0.0
      %2414 = vmatprep.mubr.f32.mxu0 0.0
      %2415 = vmatmul.mubr.f32.gmra.mrb[0].mxu0 %v2348
      %v2416 = vpop.f32.mrb[0].mxu0
      %v2417 = vadd.f32 0.0, %v2416
      %v2418 = vpop.f32.mrb[0].mxu0
      %2419 = vdwg.mxu0
      %v2420 = vadd.f32 %v2249, %v2417
      %v2421 = vmax.f32 %v2420, 0.0
      %v2423 = vsel %vm405, %v2421, 0
      %2425 = vmatprep.subr.mxu0 0.0
      %2426 = vmatpush1.msra.mxu0 %v391
      %2427 = vmatprep.subr.mxu0 0.0
      %2428 = vmatpush1.msra.mxu0 %v392
      %2429 = vmatprep.subr.mxu0 0.0
      %2430 = vmatpush1.msra.mxu0 %v393
      %2431 = vmatprep.subr.mxu0 0.0
      %2432 = vmatpush1.msra.mxu0 %v394
      %2433 = vmatprep.subr.mxu0 0.0
      %2434 = vmatpush1.msra.mxu0 0.0
      %2435 = vmatprep.subr.mxu0 0.0
      %2436 = vmatpush1.msra.mxu0 0.0
      %2437 = vmatprep.subr.mxu0 0.0
      %2438 = vmatpush1.msra.mxu0 0.0
      %2439 = vmatprep.subr.mxu0 0.0
      %2440 = vmatpush1.msra.mxu0 0.0
      %2441 = vmatprep.subr.mxu0 0.0
      %2442 = vmatpush1.msra.mxu0 0.0
      %2443 = vmatprep.subr.mxu0 0.0
      %2444 = vmatpush1.msra.mxu0 0.0
      %2445 = vmatprep.subr.mxu0 0.0
      %2446 = vmatpush1.msra.mxu0 0.0
      %2447 = vmatprep.subr.mxu0 0.0
      %2448 = vmatpush1.msra.mxu0 0.0
      %2449 = vmatprep.subr.mxu0 0.0
      %2450 = vmatpush1.msra.mxu0 0.0
      %2451 = vmatprep.subr.mxu0 0.0
      %2452 = vmatpush1.msra.mxu0 0.0
      %2453 = vmatprep.subr.mxu0 0.0
      %2454 = vmatpush1.msra.mxu0 0.0
      %2455 = vmatprep.subr.mxu0 0.0
      %2456 = vmatpush1.msra.mxu0 0.0
      %2457 = vmatprep.subr.mxu0 0.0
      %2458 = vmatpush1.msra.mxu0 0.0
      %2459 = vmatprep.subr.mxu0 0.0
      %2460 = vmatpush1.msra.mxu0 0.0
      %2461 = vmatprep.subr.mxu0 0.0
      %2462 = vmatpush1.msra.mxu0 0.0
      %2463 = vmatprep.subr.mxu0 0.0
      %2464 = vmatpush1.msra.mxu0 0.0
      %2465 = vmatprep.subr.mxu0 0.0
      %2466 = vmatpush1.msra.mxu0 0.0
      %2467 = vmatprep.subr.mxu0 0.0
      %2468 = vmatpush1.msra.mxu0 0.0
      %2469 = vmatprep.subr.mxu0 0.0
      %2470 = vmatpush1.msra.mxu0 0.0
      %2471 = vmatprep.subr.mxu0 0.0
      %2472 = vmatpush1.msra.mxu0 0.0
      %2473 = vmatprep.subr.mxu0 0.0
      %2474 = vmatpush1.msra.mxu0 0.0
      %2475 = vmatprep.subr.mxu0 0.0
      %2476 = vmatpush1.msra.mxu0 0.0
      %2477 = vmatprep.subr.mxu0 0.0
      %2478 = vmatpush1.msra.mxu0 0.0
      %2479 = vmatprep.subr.mxu0 0.0
      %2480 = vmatpush1.msra.mxu0 0.0
      %2481 = vmatprep.subr.mxu0 0.0
      %2482 = vmatpush1.msra.mxu0 0.0
      %2483 = vmatprep.subr.mxu0 0.0
      %2484 = vmatpush1.msra.mxu0 0.0
      %2485 = vmatprep.subr.mxu0 0.0
      %2486 = vmatpush1.msra.mxu0 0.0
      %2487 = vmatprep.subr.mxu0 0.0
      %2488 = vmatpush1.msra.mxu0 0.0
      %2489 = vmatprep.mubr.f32.mxu0 0.0
      %2490 = vmatmul.mubr.f32.gmra.mrb[0].mxu0 %v2423
      %v2491 = vpop.f32.mrb[0].mxu0
      %v2492 = vadd.f32 %v395, %v2491
      %v2493 = vpop.f32.mrb[0].mxu0
      %2494 = vdwg.mxu0
      %v2495 = vadd.f32 %v2492, %v2319
      %v2496 = vxor.u32 %v2495, 2147483648
      %v2497 = vmul.f32 %v2496, 1.442695
      %v2498 = vpow.pop %v2497
      %v2499 = vadd.f32 %v2498, 1.0
      %v2500 = vrcp.pop %v2499
      %v2501 = vmul.f32 1.0, %v2500
      %v2502 = vmul.f32 %v2501, %v2324
      %2504 = vrot.lane.b32.xlu0 %v2502, 64
      %v2505 = vpop.permute.xlu0 %2504
      %v2507 = vadd.f32 %v2492, %v2505
      %v2508 = vtanh.pop %v2507
      %v2509 = vsub.f32 1.0, %v2501
      %2511 = vrot.lane.b32.xlu0 %v2508, 96
      %v2512 = vpop.permute.xlu0 %2511
      %v2514 = vmul.f32 %v2509, %v2512
      %v2515 = vmul.f32 %v2501, %v2077
      %v2516 = vadd.f32 %v2514, %v2515
      %2518 = vrot.lane.b32.xlu0 %v2516, 96
      %v2519 = vpop.permute.xlu0 %2518
      %v2520 = vsel %vm405, %v2519, 0
      %2522 = vmatprep.subr.mxu0 0.0
      %2523 = vmatpush1.msra.mxu0 %v396
      %2524 = vmatprep.subr.mxu0 0.0
      %2525 = vmatpush1.msra.mxu0 %v397
      %2526 = vmatprep.subr.mxu0 0.0
      %2527 = vmatpush1.msra.mxu0 %v398
      %2528 = vmatprep.subr.mxu0 0.0
      %2529 = vmatpush1.msra.mxu0 %v399
      %2530 = vmatprep.subr.mxu0 0.0
      %2531 = vmatpush1.msra.mxu0 0.0
      %2532 = vmatprep.subr.mxu0 0.0
      %2533 = vmatpush1.msra.mxu0 0.0
      %2534 = vmatprep.subr.mxu0 0.0
      %2535 = vmatpush1.msra.mxu0 0.0
      %2536 = vmatprep.subr.mxu0 0.0
      %2537 = vmatpush1.msra.mxu0 0.0
      %2538 = vmatprep.subr.mxu0 0.0
      %2539 = vmatpush1.msra.mxu0 0.0
      %2540 = vmatprep.subr.mxu0 0.0
      %2541 = vmatpush1.msra.mxu0 0.0
      %2542 = vmatprep.subr.mxu0 0.0
      %2543 = vmatpush1.msra.mxu0 0.0
      %2544 = vmatprep.subr.mxu0 0.0
      %2545 = vmatpush1.msra.mxu0 0.0
      %2546 = vmatprep.subr.mxu0 0.0
      %2547 = vmatpush1.msra.mxu0 0.0
      %2548 = vmatprep.subr.mxu0 0.0
      %2549 = vmatpush1.msra.mxu0 0.0
      %2550 = vmatprep.subr.mxu0 0.0
      %2551 = vmatpush1.msra.mxu0 0.0
      %2552 = vmatprep.subr.mxu0 0.0
      %2553 = vmatpush1.msra.mxu0 0.0
      %2554 = vmatprep.subr.mxu0 0.0
      %2555 = vmatpush1.msra.mxu0 0.0
      %2556 = vmatprep.subr.mxu0 0.0
      %2557 = vmatpush1.msra.mxu0 0.0
      %2558 = vmatprep.subr.mxu0 0.0
      %2559 = vmatpush1.msra.mxu0 0.0
      %2560 = vmatprep.subr.mxu0 0.0
      %2561 = vmatpush1.msra.mxu0 0.0
      %2562 = vmatprep.subr.mxu0 0.0
      %2563 = vmatpush1.msra.mxu0 0.0
      %2564 = vmatprep.subr.mxu0 0.0
      %2565 = vmatpush1.msra.mxu0 0.0
      %2566 = vmatprep.subr.mxu0 0.0
      %2567 = vmatpush1.msra.mxu0 0.0
      %2568 = vmatprep.subr.mxu0 0.0
      %2569 = vmatpush1.msra.mxu0 0.0
      %2570 = vmatprep.subr.mxu0 0.0
      %2571 = vmatpush1.msra.mxu0 0.0
      %2572 = vmatprep.subr.mxu0 0.0
      %2573 = vmatpush1.msra.mxu0 0.0
      %2574 = vmatprep.subr.mxu0 0.0
      %2575 = vmatpush1.msra.mxu0 0.0
      %2576 = vmatprep.subr.mxu0 0.0
      %2577 = vmatpush1.msra.mxu0 0.0
      %2578 = vmatprep.subr.mxu0 0.0
      %2579 = vmatpush1.msra.mxu0 0.0
      %2580 = vmatprep.subr.mxu0 0.0
      %2581 = vmatpush1.msra.mxu0 0.0
      %2582 = vmatprep.subr.mxu0 0.0
      %2583 = vmatpush1.msra.mxu0 0.0
      %2584 = vmatprep.subr.mxu0 0.0
      %2585 = vmatpush1.msra.mxu0 0.0
      %2586 = vmatprep.mubr.f32.mxu0 0.0
      %2587 = vmatmul.mubr.f32.gmra.mrb[0].mxu0 %v2520
      %v2588 = vpop.f32.mrb[0].mxu0
      %v2589 = vadd.f32 %v400, %v2588
      %v2590 = vpop.f32.mrb[0].mxu0
      %2591 = vdwg.mxu0
      %v2592 = vsel %vm832, %v2589, -inf
      %2593 = vmax.xlane.f32.xlu0 %v2592
      %v2594 = vpop.xlane.xlu0 %2593
      %v2595 = vsub.f32 %v2589, %v2594
      %v2596 = vmul.f32 %v2595, 1.442695
      %v2597 = vpow.pop %v2596
      %v2598 = vsel %vm832, %v2597, 0.0
      %2599 = vadd.xlane.f32.xlu0 %v2598
      %v2600 = vpop.xlane.xlu0 %2599
      %v2601 = vlog2.pop %v2600
      %v2602 = vmul.f32 %v2601, 0.6931472
      %v2603 = vsub.f32 %v2595, %v2602
      %2604 = vrot.lane.b32.xlu0 %v2516, 32
      %v2605 = vpop.permute.xlu0 %2604
      %2607 = vrot.lane.b32.xlu0 %v2344, 64
      %v2608 = vpop.permute.xlu0 %2607
      %v2610 = vsel %vm851, %v2603, %v2605
      %v2611 = vsel %vm853, %v2610, %v2608
      %v2612 = vsel %vm855, %v2611, 0.0
      %2613 = vst [vmem:[%s371 + $0x4] sm:$0x1] %v2612
      %s2614 = sadd.s32 %s372, 5
      %s2615 = sld [smem:[#allocation4 + %s2614]]
      %s2616 = scalar_lea.vmem %s1, %s2615
      %v2617 = vld [vmem:[%s2616] sm:$0x1]
      %v2619 = vsel %vm405, %v2617, 0
      %2621 = vmatprep.subr.mxu0 0.0
      %2622 = vmatpush1.msra.mxu0 %v380
      %2623 = vmatprep.subr.mxu0 0.0
      %2624 = vmatpush1.msra.mxu0 %v381
      %2625 = vmatprep.subr.mxu0 0.0
      %2626 = vmatpush1.msra.mxu0 %v382
      %2627 = vmatprep.subr.mxu0 0.0
      %2628 = vmatpush1.msra.mxu0 %v383
      %2629 = vmatprep.subr.mxu0 0.0
      %2630 = vmatpush1.msra.mxu0 0.0
      %2631 = vmatprep.subr.mxu0 0.0
      %2632 = vmatpush1.msra.mxu0 0.0
      %2633 = vmatprep.subr.mxu0 0.0
      %2634 = vmatpush1.msra.mxu0 0.0
      %2635 = vmatprep.subr.mxu0 0.0
      %2636 = vmatpush1.msra.mxu0 0.0
      %2637 = vmatprep.subr.mxu0 0.0
      %2638 = vmatpush1.msra.mxu0 0.0
      %2639 = vmatprep.subr.mxu0 0.0
      %2640 = vmatpush1.msra.mxu0 0.0
      %2641 = vmatprep.subr.mxu0 0.0
      %2642 = vmatpush1.msra.mxu0 0.0
      %2643 = vmatprep.subr.mxu0 0.0
      %2644 = vmatpush1.msra.mxu0 0.0
      %2645 = vmatprep.subr.mxu0 0.0
      %2646 = vmatpush1.msra.mxu0 0.0
      %2647 = vmatprep.subr.mxu0 0.0
      %2648 = vmatpush1.msra.mxu0 0.0
      %2649 = vmatprep.subr.mxu0 0.0
      %2650 = vmatpush1.msra.mxu0 0.0
      %2651 = vmatprep.subr.mxu0 0.0
      %2652 = vmatpush1.msra.mxu0 0.0
      %2653 = vmatprep.subr.mxu0 0.0
      %2654 = vmatpush1.msra.mxu0 0.0
      %2655 = vmatprep.subr.mxu0 0.0
      %2656 = vmatpush1.msra.mxu0 0.0
      %2657 = vmatprep.subr.mxu0 0.0
      %2658 = vmatpush1.msra.mxu0 0.0
      %2659 = vmatprep.subr.mxu0 0.0
      %2660 = vmatpush1.msra.mxu0 0.0
      %2661 = vmatprep.subr.mxu0 0.0
      %2662 = vmatpush1.msra.mxu0 0.0
      %2663 = vmatprep.subr.mxu0 0.0
      %2664 = vmatpush1.msra.mxu0 0.0
      %2665 = vmatprep.subr.mxu0 0.0
      %2666 = vmatpush1.msra.mxu0 0.0
      %2667 = vmatprep.subr.mxu0 0.0
      %2668 = vmatpush1.msra.mxu0 0.0
      %2669 = vmatprep.subr.mxu0 0.0
      %2670 = vmatpush1.msra.mxu0 0.0
      %2671 = vmatprep.subr.mxu0 0.0
      %2672 = vmatpush1.msra.mxu0 0.0
      %2673 = vmatprep.subr.mxu0 0.0
      %2674 = vmatpush1.msra.mxu0 0.0
      %2675 = vmatprep.subr.mxu0 0.0
      %2676 = vmatpush1.msra.mxu0 0.0
      %2677 = vmatprep.subr.mxu0 0.0
      %2678 = vmatpush1.msra.mxu0 0.0
      %2679 = vmatprep.subr.mxu0 0.0
      %2680 = vmatpush1.msra.mxu0 0.0
      %2681 = vmatprep.subr.mxu0 0.0
      %2682 = vmatpush1.msra.mxu0 0.0
      %2683 = vmatprep.subr.mxu0 0.0
      %2684 = vmatpush1.msra.mxu0 0.0
      %2685 = vmatprep.mubr.f32.mxu0 0.0
      %2686 = vmatmul.mubr.f32.gmra.mrb[0].mxu0 %v2619
      %v2687 = vpop.f32.mrb[0].mxu0
      %v2688 = vadd.f32 %v384, %v2687
      %v2689 = vpop.f32.mrb[0].mxu0
      %2690 = vdwg.mxu0
      %2691 = vmatprep.subr.mxu0 0.0
      %2692 = vmatpush1.msra.mxu0 %v385
      %2693 = vmatprep.subr.mxu0 0.0
      %2694 = vmatpush1.msra.mxu0 %v386
      %2695 = vmatprep.subr.mxu0 0.0
      %2696 = vmatpush1.msra.mxu0 %v387
      %2697 = vmatprep.subr.mxu0 0.0
      %2698 = vmatpush1.msra.mxu0 %v388
      %2699 = vmatprep.subr.mxu0 0.0
      %2700 = vmatpush1.msra.mxu0 0.0
      %2701 = vmatprep.subr.mxu0 0.0
      %2702 = vmatpush1.msra.mxu0 0.0
      %2703 = vmatprep.subr.mxu0 0.0
      %2704 = vmatpush1.msra.mxu0 0.0
      %2705 = vmatprep.subr.mxu0 0.0
      %2706 = vmatpush1.msra.mxu0 0.0
      %2707 = vmatprep.subr.mxu0 0.0
      %2708 = vmatpush1.msra.mxu0 0.0
      %2709 = vmatprep.subr.mxu0 0.0
      %2710 = vmatpush1.msra.mxu0 0.0
      %2711 = vmatprep.subr.mxu0 0.0
      %2712 = vmatpush1.msra.mxu0 0.0
      %2713 = vmatprep.subr.mxu0 0.0
      %2714 = vmatpush1.msra.mxu0 0.0
      %2715 = vmatprep.subr.mxu0 0.0
      %2716 = vmatpush1.msra.mxu0 0.0
      %2717 = vmatprep.subr.mxu0 0.0
      %2718 = vmatpush1.msra.mxu0 0.0
      %2719 = vmatprep.subr.mxu0 0.0
      %2720 = vmatpush1.msra.mxu0 0.0
      %2721 = vmatprep.subr.mxu0 0.0
      %2722 = vmatpush1.msra.mxu0 0.0
      %2723 = vmatprep.subr.mxu0 0.0
      %2724 = vmatpush1.msra.mxu0 0.0
      %2725 = vmatprep.subr.mxu0 0.0
      %2726 = vmatpush1.msra.mxu0 0.0
      %2727 = vmatprep.subr.mxu0 0.0
      %2728 = vmatpush1.msra.mxu0 0.0
      %2729 = vmatprep.subr.mxu0 0.0
      %2730 = vmatpush1.msra.mxu0 0.0
      %2731 = vmatprep.subr.mxu0 0.0
      %2732 = vmatpush1.msra.mxu0 0.0
      %2733 = vmatprep.subr.mxu0 0.0
      %2734 = vmatpush1.msra.mxu0 0.0
      %2735 = vmatprep.subr.mxu0 0.0
      %2736 = vmatpush1.msra.mxu0 0.0
      %2737 = vmatprep.subr.mxu0 0.0
      %2738 = vmatpush1.msra.mxu0 0.0
      %2739 = vmatprep.subr.mxu0 0.0
      %2740 = vmatpush1.msra.mxu0 0.0
      %2741 = vmatprep.subr.mxu0 0.0
      %2742 = vmatpush1.msra.mxu0 0.0
      %2743 = vmatprep.subr.mxu0 0.0
      %2744 = vmatpush1.msra.mxu0 0.0
      %2745 = vmatprep.subr.mxu0 0.0
      %2746 = vmatpush1.msra.mxu0 0.0
      %2747 = vmatprep.subr.mxu0 0.0
      %2748 = vmatpush1.msra.mxu0 0.0
      %2749 = vmatprep.subr.mxu0 0.0
      %2750 = vmatpush1.msra.mxu0 0.0
      %2751 = vmatprep.subr.mxu0 0.0
      %2752 = vmatpush1.msra.mxu0 0.0
      %2753 = vmatprep.subr.mxu0 0.0
      %2754 = vmatpush1.msra.mxu0 0.0
      %2755 = vmatprep.mubr.f32.mxu0 0.0
      %2756 = vmatmul.mubr.f32.gmra.mrb[0].mxu0 %v2520
      %v2757 = vpop.f32.mrb[0].mxu0
      %v2758 = vadd.f32 %v389, %v2757
      %v2759 = vpop.f32.mrb[0].mxu0
      %2760 = vdwg.mxu0
      %2762 = vrot.lane.b32.xlu0 %v2758, 64
      %v2763 = vpop.permute.xlu0 %2762
      %v2765 = vadd.f32 %v2688, %v2763
      %v2766 = vsel %vm557, %v2765, -inf
      %2767 = vmax.xlane.f32.xlu0 %v2766
      %v2768 = vpop.xlane.xlu0 %2767
      %v2769 = vsub.f32 %v2765, %v2768
      %v2770 = vmul.f32 %v2769, 1.442695
      %v2771 = vpow.pop %v2770
      %2773 = vrot.lane.b32.xlu0 %v2771, 96
      %v2774 = vpop.permute.xlu0 %2773
      %v2776 = vsel %vm568, %v2774, 0.0
      %2777 = vadd.xlane.f32.xlu0 %v2776
      %v2778 = vpop.xlane.xlu0 %2777
      %v2779 = vrcp.pop %v2778
      %v2780 = vmul.f32 %v2778, %v2779
      %v2781 = vsub.f32 2.0, %v2780
      %v2782 = vmul.f32 %v2779, %v2781
      %v2783 = vmul.f32 %v2771, %v2782
      %2785 = vrot.lane.b32.xlu0 %v2783, 96
      %v2786 = vpop.permute.xlu0 %2785
      %v2787 = vsel %vm580, %v2786, 0
      %2789 = vmatprep.subr.mxu0 0.0
      %2790 = vmatpush1.msra.mxu0 %v390
      %2791 = vmatprep.subr.mxu0 0.0
      %2792 = vmatpush1.msra.mxu0 0.0
      %2793 = vmatprep.subr.mxu0 0.0
      %2794 = vmatpush1.msra.mxu0 0.0
      %2795 = vmatprep.subr.mxu0 0.0
      %2796 = vmatpush1.msra.mxu0 0.0
      %2797 = vmatprep.subr.mxu0 0.0
      %2798 = vmatpush1.msra.mxu0 0.0
      %2799 = vmatprep.subr.mxu0 0.0
      %2800 = vmatpush1.msra.mxu0 0.0
      %2801 = vmatprep.subr.mxu0 0.0
      %2802 = vmatpush1.msra.mxu0 0.0
      %2803 = vmatprep.subr.mxu0 0.0
      %2804 = vmatpush1.msra.mxu0 0.0
      %2805 = vmatprep.subr.mxu0 0.0
      %2806 = vmatpush1.msra.mxu0 0.0
      %2807 = vmatprep.subr.mxu0 0.0
      %2808 = vmatpush1.msra.mxu0 0.0
      %2809 = vmatprep.subr.mxu0 0.0
      %2810 = vmatpush1.msra.mxu0 0.0
      %2811 = vmatprep.subr.mxu0 0.0
      %2812 = vmatpush1.msra.mxu0 0.0
      %2813 = vmatprep.subr.mxu0 0.0
      %2814 = vmatpush1.msra.mxu0 0.0
      %2815 = vmatprep.subr.mxu0 0.0
      %2816 = vmatpush1.msra.mxu0 0.0
      %2817 = vmatprep.subr.mxu0 0.0
      %2818 = vmatpush1.msra.mxu0 0.0
      %2819 = vmatprep.subr.mxu0 0.0
      %2820 = vmatpush1.msra.mxu0 0.0
      %2821 = vmatprep.subr.mxu0 0.0
      %2822 = vmatpush1.msra.mxu0 0.0
      %2823 = vmatprep.subr.mxu0 0.0
      %2824 = vmatpush1.msra.mxu0 0.0
      %2825 = vmatprep.subr.mxu0 0.0
      %2826 = vmatpush1.msra.mxu0 0.0
      %2827 = vmatprep.subr.mxu0 0.0
      %2828 = vmatpush1.msra.mxu0 0.0
      %2829 = vmatprep.subr.mxu0 0.0
      %2830 = vmatpush1.msra.mxu0 0.0
      %2831 = vmatprep.subr.mxu0 0.0
      %2832 = vmatpush1.msra.mxu0 0.0
      %2833 = vmatprep.subr.mxu0 0.0
      %2834 = vmatpush1.msra.mxu0 0.0
      %2835 = vmatprep.subr.mxu0 0.0
      %2836 = vmatpush1.msra.mxu0 0.0
      %2837 = vmatprep.subr.mxu0 0.0
      %2838 = vmatpush1.msra.mxu0 0.0
      %2839 = vmatprep.subr.mxu0 0.0
      %2840 = vmatpush1.msra.mxu0 0.0
      %2841 = vmatprep.subr.mxu0 0.0
      %2842 = vmatpush1.msra.mxu0 0.0
      %2843 = vmatprep.subr.mxu0 0.0
      %2844 = vmatpush1.msra.mxu0 0.0
      %2845 = vmatprep.subr.mxu0 0.0
      %2846 = vmatpush1.msra.mxu0 0.0
      %2847 = vmatprep.subr.mxu0 0.0
      %2848 = vmatpush1.msra.mxu0 0.0
      %2849 = vmatprep.subr.mxu0 0.0
      %2850 = vmatpush1.msra.mxu0 0.0
      %2851 = vmatprep.subr.mxu0 0.0
      %2852 = vmatpush1.msra.mxu0 0.0
      %2853 = vmatprep.mubr.f32.mxu0 0.0
      %2854 = vmatmul.mubr.f32.gmra.mrb[0].mxu0 %v2787
      %v2855 = vpop.f32.mrb[0].mxu0
      %v2856 = vadd.f32 0.0, %v2855
      %v2857 = vpop.f32.mrb[0].mxu0
      %2858 = vdwg.mxu0
      %v2859 = vadd.f32 %v2688, %v2856
      %v2860 = vmax.f32 %v2859, 0.0
      %v2862 = vsel %vm405, %v2860, 0
      %2864 = vmatprep.subr.mxu0 0.0
      %2865 = vmatpush1.msra.mxu0 %v391
      %2866 = vmatprep.subr.mxu0 0.0
      %2867 = vmatpush1.msra.mxu0 %v392
      %2868 = vmatprep.subr.mxu0 0.0
      %2869 = vmatpush1.msra.mxu0 %v393
      %2870 = vmatprep.subr.mxu0 0.0
      %2871 = vmatpush1.msra.mxu0 %v394
      %2872 = vmatprep.subr.mxu0 0.0
      %2873 = vmatpush1.msra.mxu0 0.0
      %2874 = vmatprep.subr.mxu0 0.0
      %2875 = vmatpush1.msra.mxu0 0.0
      %2876 = vmatprep.subr.mxu0 0.0
      %2877 = vmatpush1.msra.mxu0 0.0
      %2878 = vmatprep.subr.mxu0 0.0
      %2879 = vmatpush1.msra.mxu0 0.0
      %2880 = vmatprep.subr.mxu0 0.0
      %2881 = vmatpush1.msra.mxu0 0.0
      %2882 = vmatprep.subr.mxu0 0.0
      %2883 = vmatpush1.msra.mxu0 0.0
      %2884 = vmatprep.subr.mxu0 0.0
      %2885 = vmatpush1.msra.mxu0 0.0
      %2886 = vmatprep.subr.mxu0 0.0
      %2887 = vmatpush1.msra.mxu0 0.0
      %2888 = vmatprep.subr.mxu0 0.0
      %2889 = vmatpush1.msra.mxu0 0.0
      %2890 = vmatprep.subr.mxu0 0.0
      %2891 = vmatpush1.msra.mxu0 0.0
      %2892 = vmatprep.subr.mxu0 0.0
      %2893 = vmatpush1.msra.mxu0 0.0
      %2894 = vmatprep.subr.mxu0 0.0
      %2895 = vmatpush1.msra.mxu0 0.0
      %2896 = vmatprep.subr.mxu0 0.0
      %2897 = vmatpush1.msra.mxu0 0.0
      %2898 = vmatprep.subr.mxu0 0.0
      %2899 = vmatpush1.msra.mxu0 0.0
      %2900 = vmatprep.subr.mxu0 0.0
      %2901 = vmatpush1.msra.mxu0 0.0
      %2902 = vmatprep.subr.mxu0 0.0
      %2903 = vmatpush1.msra.mxu0 0.0
      %2904 = vmatprep.subr.mxu0 0.0
      %2905 = vmatpush1.msra.mxu0 0.0
      %2906 = vmatprep.subr.mxu0 0.0
      %2907 = vmatpush1.msra.mxu0 0.0
      %2908 = vmatprep.subr.mxu0 0.0
      %2909 = vmatpush1.msra.mxu0 0.0
      %2910 = vmatprep.subr.mxu0 0.0
      %2911 = vmatpush1.msra.mxu0 0.0
      %2912 = vmatprep.subr.mxu0 0.0
      %2913 = vmatpush1.msra.mxu0 0.0
      %2914 = vmatprep.subr.mxu0 0.0
      %2915 = vmatpush1.msra.mxu0 0.0
      %2916 = vmatprep.subr.mxu0 0.0
      %2917 = vmatpush1.msra.mxu0 0.0
      %2918 = vmatprep.subr.mxu0 0.0
      %2919 = vmatpush1.msra.mxu0 0.0
      %2920 = vmatprep.subr.mxu0 0.0
      %2921 = vmatpush1.msra.mxu0 0.0
      %2922 = vmatprep.subr.mxu0 0.0
      %2923 = vmatpush1.msra.mxu0 0.0
      %2924 = vmatprep.subr.mxu0 0.0
      %2925 = vmatpush1.msra.mxu0 0.0
      %2926 = vmatprep.subr.mxu0 0.0
      %2927 = vmatpush1.msra.mxu0 0.0
      %2928 = vmatprep.mubr.f32.mxu0 0.0
      %2929 = vmatmul.mubr.f32.gmra.mrb[0].mxu0 %v2862
      %v2930 = vpop.f32.mrb[0].mxu0
      %v2931 = vadd.f32 %v395, %v2930
      %v2932 = vpop.f32.mrb[0].mxu0
      %2933 = vdwg.mxu0
      %v2934 = vadd.f32 %v2931, %v2758
      %v2935 = vxor.u32 %v2934, 2147483648
      %v2936 = vmul.f32 %v2935, 1.442695
      %v2937 = vpow.pop %v2936
      %v2938 = vadd.f32 %v2937, 1.0
      %v2939 = vrcp.pop %v2938
      %v2940 = vmul.f32 1.0, %v2939
      %v2941 = vmul.f32 %v2940, %v2763
      %2943 = vrot.lane.b32.xlu0 %v2941, 64
      %v2944 = vpop.permute.xlu0 %2943
      %v2946 = vadd.f32 %v2931, %v2944
      %v2947 = vtanh.pop %v2946
      %v2948 = vsub.f32 1.0, %v2940
      %2950 = vrot.lane.b32.xlu0 %v2947, 96
      %v2951 = vpop.permute.xlu0 %2950
      %v2953 = vmul.f32 %v2948, %v2951
      %v2954 = vmul.f32 %v2940, %v2516
      %v2955 = vadd.f32 %v2953, %v2954
      %2957 = vrot.lane.b32.xlu0 %v2955, 96
      %v2958 = vpop.permute.xlu0 %2957
      %v2959 = vsel %vm405, %v2958, 0
      %2961 = vmatprep.subr.mxu0 0.0
      %2962 = vmatpush1.msra.mxu0 %v396
      %2963 = vmatprep.subr.mxu0 0.0
      %2964 = vmatpush1.msra.mxu0 %v397
      %2965 = vmatprep.subr.mxu0 0.0
      %2966 = vmatpush1.msra.mxu0 %v398
      %2967 = vmatprep.subr.mxu0 0.0
      %2968 = vmatpush1.msra.mxu0 %v399
      %2969 = vmatprep.subr.mxu0 0.0
      %2970 = vmatpush1.msra.mxu0 0.0
      %2971 = vmatprep.subr.mxu0 0.0
      %2972 = vmatpush1.msra.mxu0 0.0
      %2973 = vmatprep.subr.mxu0 0.0
      %2974 = vmatpush1.msra.mxu0 0.0
      %2975 = vmatprep.subr.mxu0 0.0
      %2976 = vmatpush1.msra.mxu0 0.0
      %2977 = vmatprep.subr.mxu0 0.0
      %2978 = vmatpush1.msra.mxu0 0.0
      %2979 = vmatprep.subr.mxu0 0.0
      %2980 = vmatpush1.msra.mxu0 0.0
      %2981 = vmatprep.subr.mxu0 0.0
      %2982 = vmatpush1.msra.mxu0 0.0
      %2983 = vmatprep.subr.mxu0 0.0
      %2984 = vmatpush1.msra.mxu0 0.0
      %2985 = vmatprep.subr.mxu0 0.0
      %2986 = vmatpush1.msra.mxu0 0.0
      %2987 = vmatprep.subr.mxu0 0.0
      %2988 = vmatpush1.msra.mxu0 0.0
      %2989 = vmatprep.subr.mxu0 0.0
      %2990 = vmatpush1.msra.mxu0 0.0
      %2991 = vmatprep.subr.mxu0 0.0
      %2992 = vmatpush1.msra.mxu0 0.0
      %2993 = vmatprep.subr.mxu0 0.0
      %2994 = vmatpush1.msra.mxu0 0.0
      %2995 = vmatprep.subr.mxu0 0.0
      %2996 = vmatpush1.msra.mxu0 0.0
      %2997 = vmatprep.subr.mxu0 0.0
      %2998 = vmatpush1.msra.mxu0 0.0
      %2999 = vmatprep.subr.mxu0 0.0
      %3000 = vmatpush1.msra.mxu0 0.0
      %3001 = vmatprep.subr.mxu0 0.0
      %3002 = vmatpush1.msra.mxu0 0.0
      %3003 = vmatprep.subr.mxu0 0.0
      %3004 = vmatpush1.msra.mxu0 0.0
      %3005 = vmatprep.subr.mxu0 0.0
      %3006 = vmatpush1.msra.mxu0 0.0
      %3007 = vmatprep.subr.mxu0 0.0
      %3008 = vmatpush1.msra.mxu0 0.0
      %3009 = vmatprep.subr.mxu0 0.0
      %3010 = vmatpush1.msra.mxu0 0.0
      %3011 = vmatprep.subr.mxu0 0.0
      %3012 = vmatpush1.msra.mxu0 0.0
      %3013 = vmatprep.subr.mxu0 0.0
      %3014 = vmatpush1.msra.mxu0 0.0
      %3015 = vmatprep.subr.mxu0 0.0
      %3016 = vmatpush1.msra.mxu0 0.0
      %3017 = vmatprep.subr.mxu0 0.0
      %3018 = vmatpush1.msra.mxu0 0.0
      %3019 = vmatprep.subr.mxu0 0.0
      %3020 = vmatpush1.msra.mxu0 0.0
      %3021 = vmatprep.subr.mxu0 0.0
      %3022 = vmatpush1.msra.mxu0 0.0
      %3023 = vmatprep.subr.mxu0 0.0
      %3024 = vmatpush1.msra.mxu0 0.0
      %3025 = vmatprep.mubr.f32.mxu0 0.0
      %3026 = vmatmul.mubr.f32.gmra.mrb[0].mxu0 %v2959
      %v3027 = vpop.f32.mrb[0].mxu0
      %v3028 = vadd.f32 %v400, %v3027
      %v3029 = vpop.f32.mrb[0].mxu0
      %3030 = vdwg.mxu0
      %v3031 = vsel %vm832, %v3028, -inf
      %3032 = vmax.xlane.f32.xlu0 %v3031
      %v3033 = vpop.xlane.xlu0 %3032
      %v3034 = vsub.f32 %v3028, %v3033
      %v3035 = vmul.f32 %v3034, 1.442695
      %v3036 = vpow.pop %v3035
      %v3037 = vsel %vm832, %v3036, 0.0
      %3038 = vadd.xlane.f32.xlu0 %v3037
      %v3039 = vpop.xlane.xlu0 %3038
      %v3040 = vlog2.pop %v3039
      %v3041 = vmul.f32 %v3040, 0.6931472
      %v3042 = vsub.f32 %v3034, %v3041
      %3043 = vrot.lane.b32.xlu0 %v2955, 32
      %v3044 = vpop.permute.xlu0 %3043
      %3046 = vrot.lane.b32.xlu0 %v2783, 64
      %v3047 = vpop.permute.xlu0 %3046
      %v3049 = vsel %vm851, %v3042, %v3044
      %v3050 = vsel %vm853, %v3049, %v3047
      %v3051 = vsel %vm855, %v3050, 0.0
      %3052 = vst [vmem:[%s371 + $0x5] sm:$0x1] %v3051
      %s3053 = sadd.s32 %s372, 6
      %s3054 = sld [smem:[#allocation4 + %s3053]]
      %s3055 = scalar_lea.vmem %s1, %s3054
      %v3056 = vld [vmem:[%s3055] sm:$0x1]
      %v3058 = vsel %vm405, %v3056, 0
      %3060 = vmatprep.subr.mxu0 0.0
      %3061 = vmatpush1.msra.mxu0 %v380
      %3062 = vmatprep.subr.mxu0 0.0
      %3063 = vmatpush1.msra.mxu0 %v381
      %3064 = vmatprep.subr.mxu0 0.0
      %3065 = vmatpush1.msra.mxu0 %v382
      %3066 = vmatprep.subr.mxu0 0.0
      %3067 = vmatpush1.msra.mxu0 %v383
      %3068 = vmatprep.subr.mxu0 0.0
      %3069 = vmatpush1.msra.mxu0 0.0
      %3070 = vmatprep.subr.mxu0 0.0
      %3071 = vmatpush1.msra.mxu0 0.0
      %3072 = vmatprep.subr.mxu0 0.0
      %3073 = vmatpush1.msra.mxu0 0.0
      %3074 = vmatprep.subr.mxu0 0.0
      %3075 = vmatpush1.msra.mxu0 0.0
      %3076 = vmatprep.subr.mxu0 0.0
      %3077 = vmatpush1.msra.mxu0 0.0
      %3078 = vmatprep.subr.mxu0 0.0
      %3079 = vmatpush1.msra.mxu0 0.0
      %3080 = vmatprep.subr.mxu0 0.0
      %3081 = vmatpush1.msra.mxu0 0.0
      %3082 = vmatprep.subr.mxu0 0.0
      %3083 = vmatpush1.msra.mxu0 0.0
      %3084 = vmatprep.subr.mxu0 0.0
      %3085 = vmatpush1.msra.mxu0 0.0
      %3086 = vmatprep.subr.mxu0 0.0
      %3087 = vmatpush1.msra.mxu0 0.0
      %3088 = vmatprep.subr.mxu0 0.0
      %3089 = vmatpush1.msra.mxu0 0.0
      %3090 = vmatprep.subr.mxu0 0.0
      %3091 = vmatpush1.msra.mxu0 0.0
      %3092 = vmatprep.subr.mxu0 0.0
      %3093 = vmatpush1.msra.mxu0 0.0
      %3094 = vmatprep.subr.mxu0 0.0
      %3095 = vmatpush1.msra.mxu0 0.0
      %3096 = vmatprep.subr.mxu0 0.0
      %3097 = vmatpush1.msra.mxu0 0.0
      %3098 = vmatprep.subr.mxu0 0.0
      %3099 = vmatpush1.msra.mxu0 0.0
      %3100 = vmatprep.subr.mxu0 0.0
      %3101 = vmatpush1.msra.mxu0 0.0
      %3102 = vmatprep.subr.mxu0 0.0
      %3103 = vmatpush1.msra.mxu0 0.0
      %3104 = vmatprep.subr.mxu0 0.0
      %3105 = vmatpush1.msra.mxu0 0.0
      %3106 = vmatprep.subr.mxu0 0.0
      %3107 = vmatpush1.msra.mxu0 0.0
      %3108 = vmatprep.subr.mxu0 0.0
      %3109 = vmatpush1.msra.mxu0 0.0
      %3110 = vmatprep.subr.mxu0 0.0
      %3111 = vmatpush1.msra.mxu0 0.0
      %3112 = vmatprep.subr.mxu0 0.0
      %3113 = vmatpush1.msra.mxu0 0.0
      %3114 = vmatprep.subr.mxu0 0.0
      %3115 = vmatpush1.msra.mxu0 0.0
      %3116 = vmatprep.subr.mxu0 0.0
      %3117 = vmatpush1.msra.mxu0 0.0
      %3118 = vmatprep.subr.mxu0 0.0
      %3119 = vmatpush1.msra.mxu0 0.0
      %3120 = vmatprep.subr.mxu0 0.0
      %3121 = vmatpush1.msra.mxu0 0.0
      %3122 = vmatprep.subr.mxu0 0.0
      %3123 = vmatpush1.msra.mxu0 0.0
      %3124 = vmatprep.mubr.f32.mxu0 0.0
      %3125 = vmatmul.mubr.f32.gmra.mrb[0].mxu0 %v3058
      %v3126 = vpop.f32.mrb[0].mxu0
      %v3127 = vadd.f32 %v384, %v3126
      %v3128 = vpop.f32.mrb[0].mxu0
      %3129 = vdwg.mxu0
      %3130 = vmatprep.subr.mxu0 0.0
      %3131 = vmatpush1.msra.mxu0 %v385
      %3132 = vmatprep.subr.mxu0 0.0
      %3133 = vmatpush1.msra.mxu0 %v386
      %3134 = vmatprep.subr.mxu0 0.0
      %3135 = vmatpush1.msra.mxu0 %v387
      %3136 = vmatprep.subr.mxu0 0.0
      %3137 = vmatpush1.msra.mxu0 %v388
      %3138 = vmatprep.subr.mxu0 0.0
      %3139 = vmatpush1.msra.mxu0 0.0
      %3140 = vmatprep.subr.mxu0 0.0
      %3141 = vmatpush1.msra.mxu0 0.0
      %3142 = vmatprep.subr.mxu0 0.0
      %3143 = vmatpush1.msra.mxu0 0.0
      %3144 = vmatprep.subr.mxu0 0.0
      %3145 = vmatpush1.msra.mxu0 0.0
      %3146 = vmatprep.subr.mxu0 0.0
      %3147 = vmatpush1.msra.mxu0 0.0
      %3148 = vmatprep.subr.mxu0 0.0
      %3149 = vmatpush1.msra.mxu0 0.0
      %3150 = vmatprep.subr.mxu0 0.0
      %3151 = vmatpush1.msra.mxu0 0.0
      %3152 = vmatprep.subr.mxu0 0.0
      %3153 = vmatpush1.msra.mxu0 0.0
      %3154 = vmatprep.subr.mxu0 0.0
      %3155 = vmatpush1.msra.mxu0 0.0
      %3156 = vmatprep.subr.mxu0 0.0
      %3157 = vmatpush1.msra.mxu0 0.0
      %3158 = vmatprep.subr.mxu0 0.0
      %3159 = vmatpush1.msra.mxu0 0.0
      %3160 = vmatprep.subr.mxu0 0.0
      %3161 = vmatpush1.msra.mxu0 0.0
      %3162 = vmatprep.subr.mxu0 0.0
      %3163 = vmatpush1.msra.mxu0 0.0
      %3164 = vmatprep.subr.mxu0 0.0
      %3165 = vmatpush1.msra.mxu0 0.0
      %3166 = vmatprep.subr.mxu0 0.0
      %3167 = vmatpush1.msra.mxu0 0.0
      %3168 = vmatprep.subr.mxu0 0.0
      %3169 = vmatpush1.msra.mxu0 0.0
      %3170 = vmatprep.subr.mxu0 0.0
      %3171 = vmatpush1.msra.mxu0 0.0
      %3172 = vmatprep.subr.mxu0 0.0
      %3173 = vmatpush1.msra.mxu0 0.0
      %3174 = vmatprep.subr.mxu0 0.0
      %3175 = vmatpush1.msra.mxu0 0.0
      %3176 = vmatprep.subr.mxu0 0.0
      %3177 = vmatpush1.msra.mxu0 0.0
      %3178 = vmatprep.subr.mxu0 0.0
      %3179 = vmatpush1.msra.mxu0 0.0
      %3180 = vmatprep.subr.mxu0 0.0
      %3181 = vmatpush1.msra.mxu0 0.0
      %3182 = vmatprep.subr.mxu0 0.0
      %3183 = vmatpush1.msra.mxu0 0.0
      %3184 = vmatprep.subr.mxu0 0.0
      %3185 = vmatpush1.msra.mxu0 0.0
      %3186 = vmatprep.subr.mxu0 0.0
      %3187 = vmatpush1.msra.mxu0 0.0
      %3188 = vmatprep.subr.mxu0 0.0
      %3189 = vmatpush1.msra.mxu0 0.0
      %3190 = vmatprep.subr.mxu0 0.0
      %3191 = vmatpush1.msra.mxu0 0.0
      %3192 = vmatprep.subr.mxu0 0.0
      %3193 = vmatpush1.msra.mxu0 0.0
      %3194 = vmatprep.mubr.f32.mxu0 0.0
      %3195 = vmatmul.mubr.f32.gmra.mrb[0].mxu0 %v2959
      %v3196 = vpop.f32.mrb[0].mxu0
      %v3197 = vadd.f32 %v389, %v3196
      %v3198 = vpop.f32.mrb[0].mxu0
      %3199 = vdwg.mxu0
      %3201 = vrot.lane.b32.xlu0 %v3197, 64
      %v3202 = vpop.permute.xlu0 %3201
      %v3204 = vadd.f32 %v3127, %v3202
      %v3205 = vsel %vm557, %v3204, -inf
      %3206 = vmax.xlane.f32.xlu0 %v3205
      %v3207 = vpop.xlane.xlu0 %3206
      %v3208 = vsub.f32 %v3204, %v3207
      %v3209 = vmul.f32 %v3208, 1.442695
      %v3210 = vpow.pop %v3209
      %3212 = vrot.lane.b32.xlu0 %v3210, 96
      %v3213 = vpop.permute.xlu0 %3212
      %v3215 = vsel %vm568, %v3213, 0.0
      %3216 = vadd.xlane.f32.xlu0 %v3215
      %v3217 = vpop.xlane.xlu0 %3216
      %v3218 = vrcp.pop %v3217
      %v3219 = vmul.f32 %v3217, %v3218
      %v3220 = vsub.f32 2.0, %v3219
      %v3221 = vmul.f32 %v3218, %v3220
      %v3222 = vmul.f32 %v3210, %v3221
      %3224 = vrot.lane.b32.xlu0 %v3222, 96
      %v3225 = vpop.permute.xlu0 %3224
      %v3226 = vsel %vm580, %v3225, 0
      %3228 = vmatprep.subr.mxu0 0.0
      %3229 = vmatpush1.msra.mxu0 %v390
      %3230 = vmatprep.subr.mxu0 0.0
      %3231 = vmatpush1.msra.mxu0 0.0
      %3232 = vmatprep.subr.mxu0 0.0
      %3233 = vmatpush1.msra.mxu0 0.0
      %3234 = vmatprep.subr.mxu0 0.0
      %3235 = vmatpush1.msra.mxu0 0.0
      %3236 = vmatprep.subr.mxu0 0.0
      %3237 = vmatpush1.msra.mxu0 0.0
      %3238 = vmatprep.subr.mxu0 0.0
      %3239 = vmatpush1.msra.mxu0 0.0
      %3240 = vmatprep.subr.mxu0 0.0
      %3241 = vmatpush1.msra.mxu0 0.0
      %3242 = vmatprep.subr.mxu0 0.0
      %3243 = vmatpush1.msra.mxu0 0.0
      %3244 = vmatprep.subr.mxu0 0.0
      %3245 = vmatpush1.msra.mxu0 0.0
      %3246 = vmatprep.subr.mxu0 0.0
      %3247 = vmatpush1.msra.mxu0 0.0
      %3248 = vmatprep.subr.mxu0 0.0
      %3249 = vmatpush1.msra.mxu0 0.0
      %3250 = vmatprep.subr.mxu0 0.0
      %3251 = vmatpush1.msra.mxu0 0.0
      %3252 = vmatprep.subr.mxu0 0.0
      %3253 = vmatpush1.msra.mxu0 0.0
      %3254 = vmatprep.subr.mxu0 0.0
      %3255 = vmatpush1.msra.mxu0 0.0
      %3256 = vmatprep.subr.mxu0 0.0
      %3257 = vmatpush1.msra.mxu0 0.0
      %3258 = vmatprep.subr.mxu0 0.0
      %3259 = vmatpush1.msra.mxu0 0.0
      %3260 = vmatprep.subr.mxu0 0.0
      %3261 = vmatpush1.msra.mxu0 0.0
      %3262 = vmatprep.subr.mxu0 0.0
      %3263 = vmatpush1.msra.mxu0 0.0
      %3264 = vmatprep.subr.mxu0 0.0
      %3265 = vmatpush1.msra.mxu0 0.0
      %3266 = vmatprep.subr.mxu0 0.0
      %3267 = vmatpush1.msra.mxu0 0.0
      %3268 = vmatprep.subr.mxu0 0.0
      %3269 = vmatpush1.msra.mxu0 0.0
      %3270 = vmatprep.subr.mxu0 0.0
      %3271 = vmatpush1.msra.mxu0 0.0
      %3272 = vmatprep.subr.mxu0 0.0
      %3273 = vmatpush1.msra.mxu0 0.0
      %3274 = vmatprep.subr.mxu0 0.0
      %3275 = vmatpush1.msra.mxu0 0.0
      %3276 = vmatprep.subr.mxu0 0.0
      %3277 = vmatpush1.msra.mxu0 0.0
      %3278 = vmatprep.subr.mxu0 0.0
      %3279 = vmatpush1.msra.mxu0 0.0
      %3280 = vmatprep.subr.mxu0 0.0
      %3281 = vmatpush1.msra.mxu0 0.0
      %3282 = vmatprep.subr.mxu0 0.0
      %3283 = vmatpush1.msra.mxu0 0.0
      %3284 = vmatprep.subr.mxu0 0.0
      %3285 = vmatpush1.msra.mxu0 0.0
      %3286 = vmatprep.subr.mxu0 0.0
      %3287 = vmatpush1.msra.mxu0 0.0
      %3288 = vmatprep.subr.mxu0 0.0
      %3289 = vmatpush1.msra.mxu0 0.0
      %3290 = vmatprep.subr.mxu0 0.0
      %3291 = vmatpush1.msra.mxu0 0.0
      %3292 = vmatprep.mubr.f32.mxu0 0.0
      %3293 = vmatmul.mubr.f32.gmra.mrb[0].mxu0 %v3226
      %v3294 = vpop.f32.mrb[0].mxu0
      %v3295 = vadd.f32 0.0, %v3294
      %v3296 = vpop.f32.mrb[0].mxu0
      %3297 = vdwg.mxu0
      %v3298 = vadd.f32 %v3127, %v3295
      %v3299 = vmax.f32 %v3298, 0.0
      %v3301 = vsel %vm405, %v3299, 0
      %3303 = vmatprep.subr.mxu0 0.0
      %3304 = vmatpush1.msra.mxu0 %v391
      %3305 = vmatprep.subr.mxu0 0.0
      %3306 = vmatpush1.msra.mxu0 %v392
      %3307 = vmatprep.subr.mxu0 0.0
      %3308 = vmatpush1.msra.mxu0 %v393
      %3309 = vmatprep.subr.mxu0 0.0
      %3310 = vmatpush1.msra.mxu0 %v394
      %3311 = vmatprep.subr.mxu0 0.0
      %3312 = vmatpush1.msra.mxu0 0.0
      %3313 = vmatprep.subr.mxu0 0.0
      %3314 = vmatpush1.msra.mxu0 0.0
      %3315 = vmatprep.subr.mxu0 0.0
      %3316 = vmatpush1.msra.mxu0 0.0
      %3317 = vmatprep.subr.mxu0 0.0
      %3318 = vmatpush1.msra.mxu0 0.0
      %3319 = vmatprep.subr.mxu0 0.0
      %3320 = vmatpush1.msra.mxu0 0.0
      %3321 = vmatprep.subr.mxu0 0.0
      %3322 = vmatpush1.msra.mxu0 0.0
      %3323 = vmatprep.subr.mxu0 0.0
      %3324 = vmatpush1.msra.mxu0 0.0
      %3325 = vmatprep.subr.mxu0 0.0
      %3326 = vmatpush1.msra.mxu0 0.0
      %3327 = vmatprep.subr.mxu0 0.0
      %3328 = vmatpush1.msra.mxu0 0.0
      %3329 = vmatprep.subr.mxu0 0.0
      %3330 = vmatpush1.msra.mxu0 0.0
      %3331 = vmatprep.subr.mxu0 0.0
      %3332 = vmatpush1.msra.mxu0 0.0
      %3333 = vmatprep.subr.mxu0 0.0
      %3334 = vmatpush1.msra.mxu0 0.0
      %3335 = vmatprep.subr.mxu0 0.0
      %3336 = vmatpush1.msra.mxu0 0.0
      %3337 = vmatprep.subr.mxu0 0.0
      %3338 = vmatpush1.msra.mxu0 0.0
      %3339 = vmatprep.subr.mxu0 0.0
      %3340 = vmatpush1.msra.mxu0 0.0
      %3341 = vmatprep.subr.mxu0 0.0
      %3342 = vmatpush1.msra.mxu0 0.0
      %3343 = vmatprep.subr.mxu0 0.0
      %3344 = vmatpush1.msra.mxu0 0.0
      %3345 = vmatprep.subr.mxu0 0.0
      %3346 = vmatpush1.msra.mxu0 0.0
      %3347 = vmatprep.subr.mxu0 0.0
      %3348 = vmatpush1.msra.mxu0 0.0
      %3349 = vmatprep.subr.mxu0 0.0
      %3350 = vmatpush1.msra.mxu0 0.0
      %3351 = vmatprep.subr.mxu0 0.0
      %3352 = vmatpush1.msra.mxu0 0.0
      %3353 = vmatprep.subr.mxu0 0.0
      %3354 = vmatpush1.msra.mxu0 0.0
      %3355 = vmatprep.subr.mxu0 0.0
      %3356 = vmatpush1.msra.mxu0 0.0
      %3357 = vmatprep.subr.mxu0 0.0
      %3358 = vmatpush1.msra.mxu0 0.0
      %3359 = vmatprep.subr.mxu0 0.0
      %3360 = vmatpush1.msra.mxu0 0.0
      %3361 = vmatprep.subr.mxu0 0.0
      %3362 = vmatpush1.msra.mxu0 0.0
      %3363 = vmatprep.subr.mxu0 0.0
      %3364 = vmatpush1.msra.mxu0 0.0
      %3365 = vmatprep.subr.mxu0 0.0
      %3366 = vmatpush1.msra.mxu0 0.0
      %3367 = vmatprep.mubr.f32.mxu0 0.0
      %3368 = vmatmul.mubr.f32.gmra.mrb[0].mxu0 %v3301
      %v3369 = vpop.f32.mrb[0].mxu0
      %v3370 = vadd.f32 %v395, %v3369
      %v3371 = vpop.f32.mrb[0].mxu0
      %3372 = vdwg.mxu0
      %v3373 = vadd.f32 %v3370, %v3197
      %v3374 = vxor.u32 %v3373, 2147483648
      %v3375 = vmul.f32 %v3374, 1.442695
      %v3376 = vpow.pop %v3375
      %v3377 = vadd.f32 %v3376, 1.0
      %v3378 = vrcp.pop %v3377
      %v3379 = vmul.f32 1.0, %v3378
      %v3380 = vmul.f32 %v3379, %v3202
      %3382 = vrot.lane.b32.xlu0 %v3380, 64
      %v3383 = vpop.permute.xlu0 %3382
      %v3385 = vadd.f32 %v3370, %v3383
      %v3386 = vtanh.pop %v3385
      %v3387 = vsub.f32 1.0, %v3379
      %3389 = vrot.lane.b32.xlu0 %v3386, 96
      %v3390 = vpop.permute.xlu0 %3389
      %v3392 = vmul.f32 %v3387, %v3390
      %v3393 = vmul.f32 %v3379, %v2955
      %v3394 = vadd.f32 %v3392, %v3393
      %3396 = vrot.lane.b32.xlu0 %v3394, 96
      %v3397 = vpop.permute.xlu0 %3396
      %v3398 = vsel %vm405, %v3397, 0
      %3400 = vmatprep.subr.mxu0 0.0
      %3401 = vmatpush1.msra.mxu0 %v396
      %3402 = vmatprep.subr.mxu0 0.0
      %3403 = vmatpush1.msra.mxu0 %v397
      %3404 = vmatprep.subr.mxu0 0.0
      %3405 = vmatpush1.msra.mxu0 %v398
      %3406 = vmatprep.subr.mxu0 0.0
      %3407 = vmatpush1.msra.mxu0 %v399
      %3408 = vmatprep.subr.mxu0 0.0
      %3409 = vmatpush1.msra.mxu0 0.0
      %3410 = vmatprep.subr.mxu0 0.0
      %3411 = vmatpush1.msra.mxu0 0.0
      %3412 = vmatprep.subr.mxu0 0.0
      %3413 = vmatpush1.msra.mxu0 0.0
      %3414 = vmatprep.subr.mxu0 0.0
      %3415 = vmatpush1.msra.mxu0 0.0
      %3416 = vmatprep.subr.mxu0 0.0
      %3417 = vmatpush1.msra.mxu0 0.0
      %3418 = vmatprep.subr.mxu0 0.0
      %3419 = vmatpush1.msra.mxu0 0.0
      %3420 = vmatprep.subr.mxu0 0.0
      %3421 = vmatpush1.msra.mxu0 0.0
      %3422 = vmatprep.subr.mxu0 0.0
      %3423 = vmatpush1.msra.mxu0 0.0
      %3424 = vmatprep.subr.mxu0 0.0
      %3425 = vmatpush1.msra.mxu0 0.0
      %3426 = vmatprep.subr.mxu0 0.0
      %3427 = vmatpush1.msra.mxu0 0.0
      %3428 = vmatprep.subr.mxu0 0.0
      %3429 = vmatpush1.msra.mxu0 0.0
      %3430 = vmatprep.subr.mxu0 0.0
      %3431 = vmatpush1.msra.mxu0 0.0
      %3432 = vmatprep.subr.mxu0 0.0
      %3433 = vmatpush1.msra.mxu0 0.0
      %3434 = vmatprep.subr.mxu0 0.0
      %3435 = vmatpush1.msra.mxu0 0.0
      %3436 = vmatprep.subr.mxu0 0.0
      %3437 = vmatpush1.msra.mxu0 0.0
      %3438 = vmatprep.subr.mxu0 0.0
      %3439 = vmatpush1.msra.mxu0 0.0
      %3440 = vmatprep.subr.mxu0 0.0
      %3441 = vmatpush1.msra.mxu0 0.0
      %3442 = vmatprep.subr.mxu0 0.0
      %3443 = vmatpush1.msra.mxu0 0.0
      %3444 = vmatprep.subr.mxu0 0.0
      %3445 = vmatpush1.msra.mxu0 0.0
      %3446 = vmatprep.subr.mxu0 0.0
      %3447 = vmatpush1.msra.mxu0 0.0
      %3448 = vmatprep.subr.mxu0 0.0
      %3449 = vmatpush1.msra.mxu0 0.0
      %3450 = vmatprep.subr.mxu0 0.0
      %3451 = vmatpush1.msra.mxu0 0.0
      %3452 = vmatprep.subr.mxu0 0.0
      %3453 = vmatpush1.msra.mxu0 0.0
      %3454 = vmatprep.subr.mxu0 0.0
      %3455 = vmatpush1.msra.mxu0 0.0
      %3456 = vmatprep.subr.mxu0 0.0
      %3457 = vmatpush1.msra.mxu0 0.0
      %3458 = vmatprep.subr.mxu0 0.0
      %3459 = vmatpush1.msra.mxu0 0.0
      %3460 = vmatprep.subr.mxu0 0.0
      %3461 = vmatpush1.msra.mxu0 0.0
      %3462 = vmatprep.subr.mxu0 0.0
      %3463 = vmatpush1.msra.mxu0 0.0
      %3464 = vmatprep.mubr.f32.mxu0 0.0
      %3465 = vmatmul.mubr.f32.gmra.mrb[0].mxu0 %v3398
      %v3466 = vpop.f32.mrb[0].mxu0
      %v3467 = vadd.f32 %v400, %v3466
      %v3468 = vpop.f32.mrb[0].mxu0
      %3469 = vdwg.mxu0
      %v3470 = vsel %vm832, %v3467, -inf
      %3471 = vmax.xlane.f32.xlu0 %v3470
      %v3472 = vpop.xlane.xlu0 %3471
      %v3473 = vsub.f32 %v3467, %v3472
      %v3474 = vmul.f32 %v3473, 1.442695
      %v3475 = vpow.pop %v3474
      %v3476 = vsel %vm832, %v3475, 0.0
      %3477 = vadd.xlane.f32.xlu0 %v3476
      %v3478 = vpop.xlane.xlu0 %3477
      %v3479 = vlog2.pop %v3478
      %v3480 = vmul.f32 %v3479, 0.6931472
      %v3481 = vsub.f32 %v3473, %v3480
      %3482 = vrot.lane.b32.xlu0 %v3394, 32
      %v3483 = vpop.permute.xlu0 %3482
      %3485 = vrot.lane.b32.xlu0 %v3222, 64
      %v3486 = vpop.permute.xlu0 %3485
      %v3488 = vsel %vm851, %v3481, %v3483
      %v3489 = vsel %vm853, %v3488, %v3486
      %v3490 = vsel %vm855, %v3489, 0.0
      %3491 = vst [vmem:[%s371 + $0x6] sm:$0x1] %v3490
      %s3492 = sadd.s32 %s372, 7
      %s3493 = sld [smem:[#allocation4 + %s3492]]
      %s3494 = scalar_lea.vmem %s1, %s3493
      %v3495 = vld [vmem:[%s3494] sm:$0x1]
      %v3497 = vsel %vm405, %v3495, 0
      %3499 = vmatprep.subr.mxu0 0.0
      %3500 = vmatpush1.msra.mxu0 %v380
      %3501 = vmatprep.subr.mxu0 0.0
      %3502 = vmatpush1.msra.mxu0 %v381
      %3503 = vmatprep.subr.mxu0 0.0
      %3504 = vmatpush1.msra.mxu0 %v382
      %3505 = vmatprep.subr.mxu0 0.0
      %3506 = vmatpush1.msra.mxu0 %v383
      %3507 = vmatprep.subr.mxu0 0.0
      %3508 = vmatpush1.msra.mxu0 0.0
      %3509 = vmatprep.subr.mxu0 0.0
      %3510 = vmatpush1.msra.mxu0 0.0
      %3511 = vmatprep.subr.mxu0 0.0
      %3512 = vmatpush1.msra.mxu0 0.0
      %3513 = vmatprep.subr.mxu0 0.0
      %3514 = vmatpush1.msra.mxu0 0.0
      %3515 = vmatprep.subr.mxu0 0.0
      %3516 = vmatpush1.msra.mxu0 0.0
      %3517 = vmatprep.subr.mxu0 0.0
      %3518 = vmatpush1.msra.mxu0 0.0
      %3519 = vmatprep.subr.mxu0 0.0
      %3520 = vmatpush1.msra.mxu0 0.0
      %3521 = vmatprep.subr.mxu0 0.0
      %3522 = vmatpush1.msra.mxu0 0.0
      %3523 = vmatprep.subr.mxu0 0.0
      %3524 = vmatpush1.msra.mxu0 0.0
      %3525 = vmatprep.subr.mxu0 0.0
      %3526 = vmatpush1.msra.mxu0 0.0
      %3527 = vmatprep.subr.mxu0 0.0
      %3528 = vmatpush1.msra.mxu0 0.0
      %3529 = vmatprep.subr.mxu0 0.0
      %3530 = vmatpush1.msra.mxu0 0.0
      %3531 = vmatprep.subr.mxu0 0.0
      %3532 = vmatpush1.msra.mxu0 0.0
      %3533 = vmatprep.subr.mxu0 0.0
      %3534 = vmatpush1.msra.mxu0 0.0
      %3535 = vmatprep.subr.mxu0 0.0
      %3536 = vmatpush1.msra.mxu0 0.0
      %3537 = vmatprep.subr.mxu0 0.0
      %3538 = vmatpush1.msra.mxu0 0.0
      %3539 = vmatprep.subr.mxu0 0.0
      %3540 = vmatpush1.msra.mxu0 0.0
      %3541 = vmatprep.subr.mxu0 0.0
      %3542 = vmatpush1.msra.mxu0 0.0
      %3543 = vmatprep.subr.mxu0 0.0
      %3544 = vmatpush1.msra.mxu0 0.0
      %3545 = vmatprep.subr.mxu0 0.0
      %3546 = vmatpush1.msra.mxu0 0.0
      %3547 = vmatprep.subr.mxu0 0.0
      %3548 = vmatpush1.msra.mxu0 0.0
      %3549 = vmatprep.subr.mxu0 0.0
      %3550 = vmatpush1.msra.mxu0 0.0
      %3551 = vmatprep.subr.mxu0 0.0
      %3552 = vmatpush1.msra.mxu0 0.0
      %3553 = vmatprep.subr.mxu0 0.0
      %3554 = vmatpush1.msra.mxu0 0.0
      %3555 = vmatprep.subr.mxu0 0.0
      %3556 = vmatpush1.msra.mxu0 0.0
      %3557 = vmatprep.subr.mxu0 0.0
      %3558 = vmatpush1.msra.mxu0 0.0
      %3559 = vmatprep.subr.mxu0 0.0
      %3560 = vmatpush1.msra.mxu0 0.0
      %3561 = vmatprep.subr.mxu0 0.0
      %3562 = vmatpush1.msra.mxu0 0.0
      %3563 = vmatprep.mubr.f32.mxu0 0.0
      %3564 = vmatmul.mubr.f32.gmra.mrb[0].mxu0 %v3497
      %v3565 = vpop.f32.mrb[0].mxu0
      %v3566 = vadd.f32 %v384, %v3565
      %v3567 = vpop.f32.mrb[0].mxu0
      %3568 = vdwg.mxu0
      %3569 = vmatprep.subr.mxu0 0.0
      %3570 = vmatpush1.msra.mxu0 %v385
      %3571 = vmatprep.subr.mxu0 0.0
      %3572 = vmatpush1.msra.mxu0 %v386
      %3573 = vmatprep.subr.mxu0 0.0
      %3574 = vmatpush1.msra.mxu0 %v387
      %3575 = vmatprep.subr.mxu0 0.0
      %3576 = vmatpush1.msra.mxu0 %v388
      %3577 = vmatprep.subr.mxu0 0.0
      %3578 = vmatpush1.msra.mxu0 0.0
      %3579 = vmatprep.subr.mxu0 0.0
      %3580 = vmatpush1.msra.mxu0 0.0
      %3581 = vmatprep.subr.mxu0 0.0
      %3582 = vmatpush1.msra.mxu0 0.0
      %3583 = vmatprep.subr.mxu0 0.0
      %3584 = vmatpush1.msra.mxu0 0.0
      %3585 = vmatprep.subr.mxu0 0.0
      %3586 = vmatpush1.msra.mxu0 0.0
      %3587 = vmatprep.subr.mxu0 0.0
      %3588 = vmatpush1.msra.mxu0 0.0
      %3589 = vmatprep.subr.mxu0 0.0
      %3590 = vmatpush1.msra.mxu0 0.0
      %3591 = vmatprep.subr.mxu0 0.0
      %3592 = vmatpush1.msra.mxu0 0.0
      %3593 = vmatprep.subr.mxu0 0.0
      %3594 = vmatpush1.msra.mxu0 0.0
      %3595 = vmatprep.subr.mxu0 0.0
      %3596 = vmatpush1.msra.mxu0 0.0
      %3597 = vmatprep.subr.mxu0 0.0
      %3598 = vmatpush1.msra.mxu0 0.0
      %3599 = vmatprep.subr.mxu0 0.0
      %3600 = vmatpush1.msra.mxu0 0.0
      %3601 = vmatprep.subr.mxu0 0.0
      %3602 = vmatpush1.msra.mxu0 0.0
      %3603 = vmatprep.subr.mxu0 0.0
      %3604 = vmatpush1.msra.mxu0 0.0
      %3605 = vmatprep.subr.mxu0 0.0
      %3606 = vmatpush1.msra.mxu0 0.0
      %3607 = vmatprep.subr.mxu0 0.0
      %3608 = vmatpush1.msra.mxu0 0.0
      %3609 = vmatprep.subr.mxu0 0.0
      %3610 = vmatpush1.msra.mxu0 0.0
      %3611 = vmatprep.subr.mxu0 0.0
      %3612 = vmatpush1.msra.mxu0 0.0
      %3613 = vmatprep.subr.mxu0 0.0
      %3614 = vmatpush1.msra.mxu0 0.0
      %3615 = vmatprep.subr.mxu0 0.0
      %3616 = vmatpush1.msra.mxu0 0.0
      %3617 = vmatprep.subr.mxu0 0.0
      %3618 = vmatpush1.msra.mxu0 0.0
      %3619 = vmatprep.subr.mxu0 0.0
      %3620 = vmatpush1.msra.mxu0 0.0
      %3621 = vmatprep.subr.mxu0 0.0
      %3622 = vmatpush1.msra.mxu0 0.0
      %3623 = vmatprep.subr.mxu0 0.0
      %3624 = vmatpush1.msra.mxu0 0.0
      %3625 = vmatprep.subr.mxu0 0.0
      %3626 = vmatpush1.msra.mxu0 0.0
      %3627 = vmatprep.subr.mxu0 0.0
      %3628 = vmatpush1.msra.mxu0 0.0
      %3629 = vmatprep.subr.mxu0 0.0
      %3630 = vmatpush1.msra.mxu0 0.0
      %3631 = vmatprep.subr.mxu0 0.0
      %3632 = vmatpush1.msra.mxu0 0.0
      %3633 = vmatprep.mubr.f32.mxu0 0.0
      %3634 = vmatmul.mubr.f32.gmra.mrb[0].mxu0 %v3398
      %v3635 = vpop.f32.mrb[0].mxu0
      %v3636 = vadd.f32 %v389, %v3635
      %v3637 = vpop.f32.mrb[0].mxu0
      %3638 = vdwg.mxu0
      %3640 = vrot.lane.b32.xlu0 %v3636, 64
      %v3641 = vpop.permute.xlu0 %3640
      %v3643 = vadd.f32 %v3566, %v3641
      %v3644 = vsel %vm557, %v3643, -inf
      %3645 = vmax.xlane.f32.xlu0 %v3644
      %v3646 = vpop.xlane.xlu0 %3645
      %v3647 = vsub.f32 %v3643, %v3646
      %v3648 = vmul.f32 %v3647, 1.442695
      %v3649 = vpow.pop %v3648
      %3651 = vrot.lane.b32.xlu0 %v3649, 96
      %v3652 = vpop.permute.xlu0 %3651
      %v3654 = vsel %vm568, %v3652, 0.0
      %3655 = vadd.xlane.f32.xlu0 %v3654
      %v3656 = vpop.xlane.xlu0 %3655
      %v3657 = vrcp.pop %v3656
      %v3658 = vmul.f32 %v3656, %v3657
      %v3659 = vsub.f32 2.0, %v3658
      %v3660 = vmul.f32 %v3657, %v3659
      %v3661 = vmul.f32 %v3649, %v3660
      %3663 = vrot.lane.b32.xlu0 %v3661, 96
      %v3664 = vpop.permute.xlu0 %3663
      %v3665 = vsel %vm580, %v3664, 0
      %3667 = vmatprep.subr.mxu0 0.0
      %3668 = vmatpush1.msra.mxu0 %v390
      %3669 = vmatprep.subr.mxu0 0.0
      %3670 = vmatpush1.msra.mxu0 0.0
      %3671 = vmatprep.subr.mxu0 0.0
      %3672 = vmatpush1.msra.mxu0 0.0
      %3673 = vmatprep.subr.mxu0 0.0
      %3674 = vmatpush1.msra.mxu0 0.0
      %3675 = vmatprep.subr.mxu0 0.0
      %3676 = vmatpush1.msra.mxu0 0.0
      %3677 = vmatprep.subr.mxu0 0.0
      %3678 = vmatpush1.msra.mxu0 0.0
      %3679 = vmatprep.subr.mxu0 0.0
      %3680 = vmatpush1.msra.mxu0 0.0
      %3681 = vmatprep.subr.mxu0 0.0
      %3682 = vmatpush1.msra.mxu0 0.0
      %3683 = vmatprep.subr.mxu0 0.0
      %3684 = vmatpush1.msra.mxu0 0.0
      %3685 = vmatprep.subr.mxu0 0.0
      %3686 = vmatpush1.msra.mxu0 0.0
      %3687 = vmatprep.subr.mxu0 0.0
      %3688 = vmatpush1.msra.mxu0 0.0
      %3689 = vmatprep.subr.mxu0 0.0
      %3690 = vmatpush1.msra.mxu0 0.0
      %3691 = vmatprep.subr.mxu0 0.0
      %3692 = vmatpush1.msra.mxu0 0.0
      %3693 = vmatprep.subr.mxu0 0.0
      %3694 = vmatpush1.msra.mxu0 0.0
      %3695 = vmatprep.subr.mxu0 0.0
      %3696 = vmatpush1.msra.mxu0 0.0
      %3697 = vmatprep.subr.mxu0 0.0
      %3698 = vmatpush1.msra.mxu0 0.0
      %3699 = vmatprep.subr.mxu0 0.0
      %3700 = vmatpush1.msra.mxu0 0.0
      %3701 = vmatprep.subr.mxu0 0.0
      %3702 = vmatpush1.msra.mxu0 0.0
      %3703 = vmatprep.subr.mxu0 0.0
      %3704 = vmatpush1.msra.mxu0 0.0
      %3705 = vmatprep.subr.mxu0 0.0
      %3706 = vmatpush1.msra.mxu0 0.0
      %3707 = vmatprep.subr.mxu0 0.0
      %3708 = vmatpush1.msra.mxu0 0.0
      %3709 = vmatprep.subr.mxu0 0.0
      %3710 = vmatpush1.msra.mxu0 0.0
      %3711 = vmatprep.subr.mxu0 0.0
      %3712 = vmatpush1.msra.mxu0 0.0
      %3713 = vmatprep.subr.mxu0 0.0
      %3714 = vmatpush1.msra.mxu0 0.0
      %3715 = vmatprep.subr.mxu0 0.0
      %3716 = vmatpush1.msra.mxu0 0.0
      %3717 = vmatprep.subr.mxu0 0.0
      %3718 = vmatpush1.msra.mxu0 0.0
      %3719 = vmatprep.subr.mxu0 0.0
      %3720 = vmatpush1.msra.mxu0 0.0
      %3721 = vmatprep.subr.mxu0 0.0
      %3722 = vmatpush1.msra.mxu0 0.0
      %3723 = vmatprep.subr.mxu0 0.0
      %3724 = vmatpush1.msra.mxu0 0.0
      %3725 = vmatprep.subr.mxu0 0.0
      %3726 = vmatpush1.msra.mxu0 0.0
      %3727 = vmatprep.subr.mxu0 0.0
      %3728 = vmatpush1.msra.mxu0 0.0
      %3729 = vmatprep.subr.mxu0 0.0
      %3730 = vmatpush1.msra.mxu0 0.0
      %3731 = vmatprep.mubr.f32.mxu0 0.0
      %3732 = vmatmul.mubr.f32.gmra.mrb[0].mxu0 %v3665
      %v3733 = vpop.f32.mrb[0].mxu0
      %v3734 = vadd.f32 0.0, %v3733
      %v3735 = vpop.f32.mrb[0].mxu0
      %3736 = vdwg.mxu0
      %v3737 = vadd.f32 %v3566, %v3734
      %v3738 = vmax.f32 %v3737, 0.0
      %v3740 = vsel %vm405, %v3738, 0
      %3742 = vmatprep.subr.mxu0 0.0
      %3743 = vmatpush1.msra.mxu0 %v391
      %3744 = vmatprep.subr.mxu0 0.0
      %3745 = vmatpush1.msra.mxu0 %v392
      %3746 = vmatprep.subr.mxu0 0.0
      %3747 = vmatpush1.msra.mxu0 %v393
      %3748 = vmatprep.subr.mxu0 0.0
      %3749 = vmatpush1.msra.mxu0 %v394
      %3750 = vmatprep.subr.mxu0 0.0
      %3751 = vmatpush1.msra.mxu0 0.0
      %3752 = vmatprep.subr.mxu0 0.0
      %3753 = vmatpush1.msra.mxu0 0.0
      %3754 = vmatprep.subr.mxu0 0.0
      %3755 = vmatpush1.msra.mxu0 0.0
      %3756 = vmatprep.subr.mxu0 0.0
      %3757 = vmatpush1.msra.mxu0 0.0
      %3758 = vmatprep.subr.mxu0 0.0
      %3759 = vmatpush1.msra.mxu0 0.0
      %3760 = vmatprep.subr.mxu0 0.0
      %3761 = vmatpush1.msra.mxu0 0.0
      %3762 = vmatprep.subr.mxu0 0.0
      %3763 = vmatpush1.msra.mxu0 0.0
      %3764 = vmatprep.subr.mxu0 0.0
      %3765 = vmatpush1.msra.mxu0 0.0
      %3766 = vmatprep.subr.mxu0 0.0
      %3767 = vmatpush1.msra.mxu0 0.0
      %3768 = vmatprep.subr.mxu0 0.0
      %3769 = vmatpush1.msra.mxu0 0.0
      %3770 = vmatprep.subr.mxu0 0.0
      %3771 = vmatpush1.msra.mxu0 0.0
      %3772 = vmatprep.subr.mxu0 0.0
      %3773 = vmatpush1.msra.mxu0 0.0
      %3774 = vmatprep.subr.mxu0 0.0
      %3775 = vmatpush1.msra.mxu0 0.0
      %3776 = vmatprep.subr.mxu0 0.0
      %3777 = vmatpush1.msra.mxu0 0.0
      %3778 = vmatprep.subr.mxu0 0.0
      %3779 = vmatpush1.msra.mxu0 0.0
      %3780 = vmatprep.subr.mxu0 0.0
      %3781 = vmatpush1.msra.mxu0 0.0
      %3782 = vmatprep.subr.mxu0 0.0
      %3783 = vmatpush1.msra.mxu0 0.0
      %3784 = vmatprep.subr.mxu0 0.0
      %3785 = vmatpush1.msra.mxu0 0.0
      %3786 = vmatprep.subr.mxu0 0.0
      %3787 = vmatpush1.msra.mxu0 0.0
      %3788 = vmatprep.subr.mxu0 0.0
      %3789 = vmatpush1.msra.mxu0 0.0
      %3790 = vmatprep.subr.mxu0 0.0
      %3791 = vmatpush1.msra.mxu0 0.0
      %3792 = vmatprep.subr.mxu0 0.0
      %3793 = vmatpush1.msra.mxu0 0.0
      %3794 = vmatprep.subr.mxu0 0.0
      %3795 = vmatpush1.msra.mxu0 0.0
      %3796 = vmatprep.subr.mxu0 0.0
      %3797 = vmatpush1.msra.mxu0 0.0
      %3798 = vmatprep.subr.mxu0 0.0
      %3799 = vmatpush1.msra.mxu0 0.0
      %3800 = vmatprep.subr.mxu0 0.0
      %3801 = vmatpush1.msra.mxu0 0.0
      %3802 = vmatprep.subr.mxu0 0.0
      %3803 = vmatpush1.msra.mxu0 0.0
      %3804 = vmatprep.subr.mxu0 0.0
      %3805 = vmatpush1.msra.mxu0 0.0
      %3806 = vmatprep.mubr.f32.mxu0 0.0
      %3807 = vmatmul.mubr.f32.gmra.mrb[0].mxu0 %v3740
      %v3808 = vpop.f32.mrb[0].mxu0
      %v3809 = vadd.f32 %v395, %v3808
      %v3810 = vpop.f32.mrb[0].mxu0
      %3811 = vdwg.mxu0
      %v3812 = vadd.f32 %v3809, %v3636
      %v3813 = vxor.u32 %v3812, 2147483648
      %v3814 = vmul.f32 %v3813, 1.442695
      %v3815 = vpow.pop %v3814
      %v3816 = vadd.f32 %v3815, 1.0
      %v3817 = vrcp.pop %v3816
      %v3818 = vmul.f32 1.0, %v3817
      %v3819 = vmul.f32 %v3818, %v3641
      %3821 = vrot.lane.b32.xlu0 %v3819, 64
      %v3822 = vpop.permute.xlu0 %3821
      %v3824 = vadd.f32 %v3809, %v3822
      %v3825 = vtanh.pop %v3824
      %v3826 = vsub.f32 1.0, %v3818
      %3828 = vrot.lane.b32.xlu0 %v3825, 96
      %v3829 = vpop.permute.xlu0 %3828
      %v3831 = vmul.f32 %v3826, %v3829
      %v3832 = vmul.f32 %v3818, %v3394
      %v3833 = vadd.f32 %v3831, %v3832
      %3835 = vrot.lane.b32.xlu0 %v3833, 96
      %v3836 = vpop.permute.xlu0 %3835
      %v3837 = vsel %vm405, %v3836, 0
      %3839 = vmatprep.subr.mxu0 0.0
      %3840 = vmatpush1.msra.mxu0 %v396
      %3841 = vmatprep.subr.mxu0 0.0
      %3842 = vmatpush1.msra.mxu0 %v397
      %3843 = vmatprep.subr.mxu0 0.0
      %3844 = vmatpush1.msra.mxu0 %v398
      %3845 = vmatprep.subr.mxu0 0.0
      %3846 = vmatpush1.msra.mxu0 %v399
      %3847 = vmatprep.subr.mxu0 0.0
      %3848 = vmatpush1.msra.mxu0 0.0
      %3849 = vmatprep.subr.mxu0 0.0
      %3850 = vmatpush1.msra.mxu0 0.0
      %3851 = vmatprep.subr.mxu0 0.0
      %3852 = vmatpush1.msra.mxu0 0.0
      %3853 = vmatprep.subr.mxu0 0.0
      %3854 = vmatpush1.msra.mxu0 0.0
      %3855 = vmatprep.subr.mxu0 0.0
      %3856 = vmatpush1.msra.mxu0 0.0
      %3857 = vmatprep.subr.mxu0 0.0
      %3858 = vmatpush1.msra.mxu0 0.0
      %3859 = vmatprep.subr.mxu0 0.0
      %3860 = vmatpush1.msra.mxu0 0.0
      %3861 = vmatprep.subr.mxu0 0.0
      %3862 = vmatpush1.msra.mxu0 0.0
      %3863 = vmatprep.subr.mxu0 0.0
      %3864 = vmatpush1.msra.mxu0 0.0
      %3865 = vmatprep.subr.mxu0 0.0
      %3866 = vmatpush1.msra.mxu0 0.0
      %3867 = vmatprep.subr.mxu0 0.0
      %3868 = vmatpush1.msra.mxu0 0.0
      %3869 = vmatprep.subr.mxu0 0.0
      %3870 = vmatpush1.msra.mxu0 0.0
      %3871 = vmatprep.subr.mxu0 0.0
      %3872 = vmatpush1.msra.mxu0 0.0
      %3873 = vmatprep.subr.mxu0 0.0
      %3874 = vmatpush1.msra.mxu0 0.0
      %3875 = vmatprep.subr.mxu0 0.0
      %3876 = vmatpush1.msra.mxu0 0.0
      %3877 = vmatprep.subr.mxu0 0.0
      %3878 = vmatpush1.msra.mxu0 0.0
      %3879 = vmatprep.subr.mxu0 0.0
      %3880 = vmatpush1.msra.mxu0 0.0
      %3881 = vmatprep.subr.mxu0 0.0
      %3882 = vmatpush1.msra.mxu0 0.0
      %3883 = vmatprep.subr.mxu0 0.0
      %3884 = vmatpush1.msra.mxu0 0.0
      %3885 = vmatprep.subr.mxu0 0.0
      %3886 = vmatpush1.msra.mxu0 0.0
      %3887 = vmatprep.subr.mxu0 0.0
      %3888 = vmatpush1.msra.mxu0 0.0
      %3889 = vmatprep.subr.mxu0 0.0
      %3890 = vmatpush1.msra.mxu0 0.0
      %3891 = vmatprep.subr.mxu0 0.0
      %3892 = vmatpush1.msra.mxu0 0.0
      %3893 = vmatprep.subr.mxu0 0.0
      %3894 = vmatpush1.msra.mxu0 0.0
      %3895 = vmatprep.subr.mxu0 0.0
      %3896 = vmatpush1.msra.mxu0 0.0
      %3897 = vmatprep.subr.mxu0 0.0
      %3898 = vmatpush1.msra.mxu0 0.0
      %3899 = vmatprep.subr.mxu0 0.0
      %3900 = vmatpush1.msra.mxu0 0.0
      %3901 = vmatprep.subr.mxu0 0.0
      %3902 = vmatpush1.msra.mxu0 0.0
      %3903 = vmatprep.mubr.f32.mxu0 0.0
      %3904 = vmatmul.mubr.f32.gmra.mrb[0].mxu0 %v3837
      %v3905 = vpop.f32.mrb[0].mxu0
      %v3906 = vadd.f32 %v400, %v3905
      %v3907 = vpop.f32.mrb[0].mxu0
      %3908 = vdwg.mxu0
      %v3909 = vsel %vm832, %v3906, -inf
      %3910 = vmax.xlane.f32.xlu0 %v3909
      %v3911 = vpop.xlane.xlu0 %3910
      %v3912 = vsub.f32 %v3906, %v3911
      %v3913 = vmul.f32 %v3912, 1.442695
      %v3914 = vpow.pop %v3913
      %v3915 = vsel %vm832, %v3914, 0.0
      %3916 = vadd.xlane.f32.xlu0 %v3915
      %v3917 = vpop.xlane.xlu0 %3916
      %v3918 = vlog2.pop %v3917
      %v3919 = vmul.f32 %v3918, 0.6931472
      %v3920 = vsub.f32 %v3912, %v3919
      %3921 = vrot.lane.b32.xlu0 %v3833, 32
      %v3922 = vpop.permute.xlu0 %3921
      %3924 = vrot.lane.b32.xlu0 %v3661, 64
      %v3925 = vpop.permute.xlu0 %3924
      %v3927 = vsel %vm851, %v3920, %v3922
      %v3928 = vsel %vm853, %v3927, %v3925
      %v3929 = vsel %vm855, %v3928, 0.0
      %3930 = vst [vmem:[%s371 + $0x7] sm:$0x1] %v3929
      %vm3932 = vcmask 253952
      %3933 = vst.msk [vmem:[#allocation2] sm:$0x1] %vm3932, %v3836
      %p3934 = scmp.lt.s32.totalorder %s29, 1
      %s3935 = scalar_select %p3934, %s29, 1
      %s3936 = smul.addr %s3935, 8
      %s3937 = scalar_lea.vmem %s12, %s3936
      // Predicated region
      $region69: #{attn_decoder_decode.1} parent=63 // pred_check
        %p3938 = pneg %p278
      $region70: #{attn_decoder_decode.1} parent=63 // pred_check_branch
        %3940 = sbr.rel (%p3938) target = $region72
      $region71: #{attn_decoder_decode.1} parent=63 // pred_region
        _
      $region72: #{attn_decoder_decode.1} parent=63 // pred_fallthru
        _
    $region64: #{attn_decoder_decode.1} parent=5 // pred_fallthru
      _
    %p3941 = scmp.le.s32.totalorder 2, %s24
    // Predicated region
    $region73: #{attn_decoder_decode.1} parent=5 // pred_check
      %p3942 = pneg %p3941
    $region74: #{attn_decoder_decode.1} parent=5 // pred_check_branch
      %3944 = sbr.rel (%p3942) target = $region76
    $region75: #{attn_decoder_decode.1} parent=5 // pred_region
      %s3945 = ssub.s32 %s24, 2
      // Predicated region
      $region77: #{attn_decoder_decode.1} parent=75 // pred_check
        %p3946 = pneg %p284
      $region78: #{attn_decoder_decode.1} parent=75 // pred_check_branch
        %3948 = sbr.rel (%p3946) target = $region80
      $region79: #{attn_decoder_decode.1} parent=75 // pred_region
        %p3949 = scmp.lt.s32.totalorder %s30, 1
        %s3950 = scalar_select %p3949, %s30, 1
        %s3951 = smul.addr %s3950, 8
        %s3952 = scalar_lea.vmem %s12, %s3951
      $region80: #{attn_decoder_decode.1} parent=75 // pred_fallthru
        _
    $region76: #{attn_decoder_decode.1} parent=5 // pred_fallthru
      _
  $region6: #{attn_decoder_decode.1} parent=0 // loop_footer
    %s28 = sadd.s32 1, %s24
  $region7: #{attn_decoder_decode.1} parent=0 // loop_footer_branch
    %23 = sbr.rel target = $region3
  $region8: #{attn_decoder_decode.1} parent=0 // loop_exit
    _

</llo_original>
